<compile_context>
chip_gen: v7x
topology: tpu7x:2x2x1
jax: 0.10.0
libtpu: 0.0.40
codegen_flags: <defaults>
</compile_context>

<pallas_src>
import functools

import jax
import jax.numpy as jnp
from jax.experimental import pallas as pl
from jax.experimental.pallas import tpu as pltpu


def _rdb_conv_kernel(x_ref, top_ref, bot_ref, w_ref, b_ref, out_ref, xpad_ref,
                     *, T, W, Cin, G, K, use_im2col, split_store):
    """One (image, row-strip) per grid step.

    x_ref   : (1, T, W, Cin)          unpadded strip (original dtype)
    top_ref : (1, pad, W, Cin)        rows just above the strip (zeros at border)
    bot_ref : (1, pad, W, Cin)        rows just below the strip (zeros at border)
    w_ref   : (K*K*Cin, G) or (K*K, Cin, G)   bf16 weights, (ky, kx, cin) order
    b_ref   : (1, G)                  f32 bias
    out_ref : (1, T, W, Cin+G)        [x , relu(conv(x))] strip
    xpad_ref: (T+2p, W+2p, Cin) bf16  VMEM scratch holding the zero-padded strip
    """
    pad = (K - 1) // 2
    x = x_ref[0]                                                  # (T, W, Cin)

    # ---- build the zero-padded bf16 strip in the scratch (no concat pads) ---
    xpad_ref[pad:T + pad, pad:W + pad, :] = x.astype(jnp.bfloat16)
    xpad_ref[0:pad, pad:W + pad, :] = top_ref[0].astype(jnp.bfloat16)
    xpad_ref[T + pad:T + 2 * pad, pad:W + pad, :] = bot_ref[0].astype(jnp.bfloat16)
    zcol = jnp.zeros((T + 2 * pad, pad, Cin), jnp.bfloat16)
    xpad_ref[:, 0:pad, :] = zcol                   # left border (incl. corners)
    xpad_ref[:, W + pad:W + 2 * pad, :] = zcol     # right border (incl. corners)

    # ---- convolution on the MXU, f32 accumulation ---------------------------
    if use_im2col:
        # Lane-aligned Cin: one big-contraction matmul over K*K*Cin.
        cols = [xpad_ref[dy:dy + T, dx:dx + W, :]
                for dy in range(K) for dx in range(K)]
        patches = jnp.concatenate(cols, axis=-1).reshape(T * W, K * K * Cin)
        acc = jnp.dot(patches, w_ref[...], preferred_element_type=jnp.float32)
    else:
        # Typical RDN widths: K*K shifted dots, one f32 accumulator, no K*K
        # im2col buffer and no lane-packing relayouts.
        acc = None
        for tap in range(K * K):
            dy, dx = tap // K, tap % K
            win = xpad_ref[dy:dy + T, dx:dx + W, :].reshape(T * W, Cin)
            part = jnp.dot(win, w_ref[tap], preferred_element_type=jnp.float32)
            acc = part if acc is None else acc + part

    conv = jnp.maximum(acc + b_ref[...], 0.0)        # f32 bias + ReLU epilogue
    conv3 = conv.reshape(T, W, G).astype(out_ref.dtype)

    # ---- [x , relu(conv)] strip store ---------------------------------------
    if split_store:
        # Cin lane-aligned: two unmasked slab stores, no concat copy.
        out_ref[0, :, :, 0:Cin] = x.astype(out_ref.dtype)
        out_ref[0, :, :, Cin:Cin + G] = conv3
    else:
        # Cin not a lane multiple: one fused concat + single store.
        out_ref[0] = jnp.concatenate([x.astype(out_ref.dtype), conv3], axis=-1)


def _vmem_limits():
    """(vmem_limit_bytes, per-strip VMEM budget) with headroom for the compiler."""
    try:
        cap = int(pltpu.get_tpu_info().vmem_capacity_bytes)
    except Exception:
        cap = 64 * 1024 * 1024         # conservative default (v7x per-core VMEM)
    limit = min(int(cap * 0.8), 100 * 1024 * 1024)
    budget = limit // 2                # target working set for one strip
    return limit, budget


def _pick_tile_h(H, W, Cin, G, K, in_bytes, out_bytes, use_im2col, budget):
    """Largest strip height that divides H and fits the VMEM budget."""
    pad = (K - 1) // 2
    Cout = Cin + G
    per_row = (
        2 * W * Cin * in_bytes            # double-buffered input strip
        + 2 * W * Cout * out_bytes        # double-buffered output strip
        + (W + 2 * pad) * Cin * 2         # bf16 padded scratch
        + 3 * W * Cin * 2                 # shifted-window temporaries (bf16)
        + 2 * W * G * 4                   # f32 accumulator + epilogue temp
        + W * Cout * out_bytes            # pre-store assembly temp
    )
    if use_im2col:
        per_row += 2 * W * Cin * K * K * 2   # bf16 im2col patches (+ headroom)
    tile = max(1, min(int(budget // max(per_row, 1)), H))
    while H % tile:                       # largest divisor of H <= tile
        tile -= 1
    if tile < pad:                        # halo rows must come from one strip
        tile = H
    return tile


def rdb_conv_forward_nhwc(x_nhwc, w_oihw, bias, kSize=3):
    """NHWC (channels-last) entry point — use this inside a full NHWC model."""
    N, H, W, Cin = x_nhwc.shape
    G = w_oihw.shape[0]
    K = kSize
    assert K % 2 == 1 and K >= 3, "RDB_Conv kernel assumes odd kSize >= 3"
    assert w_oihw.shape == (G, Cin, K, K)
    pad = (K - 1) // 2
    Cout = Cin + G

    use_im2col = (Cin % 128 == 0)      # lane-aligned taps -> single matmul
    split_store = (Cin % 128 == 0)     # lane-aligned split stores

    in_bytes = jnp.dtype(x_nhwc.dtype).itemsize
    vmem_limit, vmem_budget = _vmem_limits()
    T = _pick_tile_h(H, W, Cin, G, K, in_bytes, in_bytes, use_im2col, vmem_budget)
    S = H // T

    # Weights: (O,I,kh,kw) -> (kh,kw,I,O); bf16 MXU operands.
    w_khwio = jnp.transpose(w_oihw, (2, 3, 1, 0)).astype(jnp.bfloat16)
    if use_im2col:
        w_mat = w_khwio.reshape(K * K * Cin, G)
        w_spec = pl.BlockSpec((K * K * Cin, G), lambda n, s: (0, 0))
    else:
        w_mat = w_khwio.reshape(K * K, Cin, G)
        w_spec = pl.BlockSpec((K * K, Cin, G), lambda n, s: (0, 0, 0))
    b2d = bias.reshape(1, G).astype(jnp.float32)

    # Per-strip halo rows (zeros at the image top/bottom).  Tiny: 2*pad rows of
    # HBM traffic per TILE_H rows; keeps all inputs on auto-pipelined BlockSpecs.
    if S > 1:
        xs = x_nhwc.reshape(N, S, T, W, Cin)
        zhalo = jnp.zeros((N, 1, pad, W, Cin), x_nhwc.dtype)
        tops = jnp.concatenate([zhalo, xs[:, :-1, T - pad:, :, :]], axis=1)
        bots = jnp.concatenate([xs[:, 1:, :pad, :, :], zhalo], axis=1)
    else:
        tops = jnp.zeros((N, 1, pad, W, Cin), x_nhwc.dtype)
        bots = jnp.zeros((N, 1, pad, W, Cin), x_nhwc.dtype)
    tops = tops.reshape(N, S * pad, W, Cin)
    bots = bots.reshape(N, S * pad, W, Cin)

    kernel = functools.partial(
        _rdb_conv_kernel, T=T, W=W, Cin=Cin, G=G, K=K,
        use_im2col=use_im2col, split_store=split_store)

    return pl.pallas_call(
        kernel,
        out_shape=jax.ShapeDtypeStruct((N, H, W, Cout), x_nhwc.dtype),
        grid=(N, S),
        in_specs=[
            pl.BlockSpec((1, T, W, Cin), lambda n, s: (n, s, 0, 0)),     # strip
            pl.BlockSpec((1, pad, W, Cin), lambda n, s: (n, s, 0, 0)),   # top halo
            pl.BlockSpec((1, pad, W, Cin), lambda n, s: (n, s, 0, 0)),   # bottom halo
            w_spec,
            pl.BlockSpec((1, G), lambda n, s: (0, 0)),
        ],
        out_specs=pl.BlockSpec((1, T, W, Cout), lambda n, s: (n, s, 0, 0)),
        scratch_shapes=[
            pltpu.VMEM((T + 2 * pad, W + 2 * pad, Cin), jnp.bfloat16)],
        compiler_params=pltpu.CompilerParams(
            dimension_semantics=("parallel", "parallel"),
            vmem_limit_bytes=vmem_limit,
        ),
    )(x_nhwc, tops, bots, w_mat, b2d)


def rdb_conv_forward(x_nchw, w_oihw, bias, kSize=3):
    """PyTorch-compatible NCHW interface (RDB_Conv.forward equivalent).

    The two transposes below are per-call HBM passes; in a full RDN keep the
    whole network NHWC (rdb_conv_forward_nhwc) and transpose only at the
    model boundaries.
    """
    x_nhwc = jnp.transpose(x_nchw, (0, 2, 3, 1))
    out_nhwc = rdb_conv_forward_nhwc(x_nhwc, w_oihw, bias, kSize)
    return jnp.transpose(out_nhwc, (0, 3, 1, 2))


def _reference(x_nchw, w_oihw, bias, kSize=3):
    """Pure-JAX f32 reference matching nn.Conv2d(pad=(k-1)//2) + ReLU + cat."""
    pad = (kSize - 1) // 2
    conv = jax.lax.conv_general_dilated(
        x_nchw, w_oihw,
        window_strides=(1, 1),
        padding=[(pad, pad), (pad, pad)],
        dimension_numbers=("NCHW", "OIHW", "NCHW"),
    ) + bias.reshape(1, -1, 1, 1)
    return jnp.concatenate([x_nchw, jnp.maximum(conv, 0.0)], axis=1)


if __name__ == "__main__":
    # Small, module-consistent shapes: inChannels=4, growRate=8, kSize=3.
    N, Cin, H, W = 2, 4, 16, 16
    G, K = 8, 3

    key = jax.random.PRNGKey(0)
    kx, kw, kb = jax.random.split(key, 3)
    x = jax.random.normal(kx, (N, Cin, H, W), dtype=jnp.float32)
    # Deterministic synthetic "Conv2d" parameters (not a checkpoint).
    w = 0.1 * jax.random.normal(kw, (G, Cin, K, K), dtype=jnp.float32)
    b = 0.1 * jax.random.normal(kb, (G,), dtype=jnp.float32)

    out = jax.block_until_ready(rdb_conv_forward(x, w, b, kSize=K))
    ref = _reference(x, w, b, kSize=K)

    assert out.shape == (N, Cin + G, H, W), out.shape
    # Passthrough channels are stored straight from the f32 input -> exact.
    assert jnp.allclose(out[:, :Cin], x, rtol=0.0, atol=1e-6), "passthrough mismatch"
    # Conv+ReLU channels use bf16 MXU operands (f32 accumulate) vs f32 ref.
    assert jnp.allclose(out[:, Cin:], ref[:, Cin:], rtol=1e-2, atol=1e-2), \
        "conv mismatch vs reference"

    print("KERNEL_OK")
</pallas_src>

<mosaic_0001>
module attributes {stable_mosaic.version = 11 : i64} {
  func.func @_rdb_conv_kernel(%arg0: i32, %arg1: i32, %arg2: memref<1x16x16x4xf32, #tpu.memory_space<vmem>>, %arg3: memref<1x1x16x4xf32, #tpu.memory_space<vmem>>, %arg4: memref<1x1x16x4xf32, #tpu.memory_space<vmem>>, %arg5: memref<9x4x8xbf16, #tpu.memory_space<vmem>>, %arg6: memref<1x8xf32, #tpu.memory_space<vmem>>, %arg7: memref<1x16x16x12xf32, #tpu.memory_space<vmem>>, %arg8: memref<18x18x4xbf16, #tpu.memory_space<vmem>>) attributes {dimension_semantics = [#tpu.dimension_semantics<parallel>, #tpu.dimension_semantics<parallel>], iteration_bounds = array<i64: 2, 1>, scalar_prefetch = 0 : i64, scratch_operands = 1 : i64, tpu.core_type = #tpu.core_type<tc>, window_params = [{transform_indices = @transform_0, window_bounds = array<i64: 1, 16, 16, 4>}, {transform_indices = @transform_1, window_bounds = array<i64: 1, 1, 16, 4>}, {transform_indices = @transform_2, window_bounds = array<i64: 1, 1, 16, 4>}, {pipeline_mode = #tpu.pipeline_mode<synchronous>, transform_indices = @transform_3, window_bounds = array<i64: 9, 4, 8>}, {pipeline_mode = #tpu.pipeline_mode<synchronous>, transform_indices = @transform_4, window_bounds = array<i64: 1, 8>}, {transform_indices = @transform_5, window_bounds = array<i64: 1, 16, 16, 12>}]} {
    %c0 = arith.constant 0 : index
    %c0_0 = arith.constant 0 : index
    %c0_1 = arith.constant 0 : index
    %c0_2 = arith.constant 0 : index
    %0 = vector.load %arg2[%c0, %c0_0, %c0_1, %c0_2] : memref<1x16x16x4xf32, #tpu.memory_space<vmem>>, vector<1x16x16x4xf32>
    %1 = vector.shape_cast %0 : vector<1x16x16x4xf32> to vector<16x16x4xf32>
    %2 = arith.truncf %1 : vector<16x16x4xf32> to vector<16x16x4xbf16>
    %c1 = arith.constant 1 : index
    %c1_3 = arith.constant 1 : index
    %c0_4 = arith.constant 0 : index
    %3 = vector.load %arg8[%c1, %c1_3, %c0_4] : memref<18x18x4xbf16, #tpu.memory_space<vmem>>, vector<16x16x4xbf16>
    tpu.vector_store %arg8[%c1, %c1_3, %c0_4], %2 {strides = array<i32>} : memref<18x18x4xbf16, #tpu.memory_space<vmem>>, vector<16x16x4xbf16>,
    %c0_5 = arith.constant 0 : index
    %c0_6 = arith.constant 0 : index
    %c0_7 = arith.constant 0 : index
    %c0_8 = arith.constant 0 : index
    %4 = vector.load %arg3[%c0_5, %c0_6, %c0_7, %c0_8] : memref<1x1x16x4xf32, #tpu.memory_space<vmem>>, vector<1x1x16x4xf32>
    %5 = vector.shape_cast %4 : vector<1x1x16x4xf32> to vector<1x16x4xf32>
    %6 = arith.truncf %5 : vector<1x16x4xf32> to vector<1x16x4xbf16>
    %c0_9 = arith.constant 0 : index
    %c1_10 = arith.constant 1 : index
    %c0_11 = arith.constant 0 : index
    %7 = vector.load %arg8[%c0_9, %c1_10, %c0_11] : memref<18x18x4xbf16, #tpu.memory_space<vmem>>, vector<1x16x4xbf16>
    tpu.vector_store %arg8[%c0_9, %c1_10, %c0_11], %6 {strides = array<i32>} : memref<18x18x4xbf16, #tpu.memory_space<vmem>>, vector<1x16x4xbf16>,
    %c0_12 = arith.constant 0 : index
    %c0_13 = arith.constant 0 : index
    %c0_14 = arith.constant 0 : index
    %c0_15 = arith.constant 0 : index
    %8 = vector.load %arg4[%c0_12, %c0_13, %c0_14, %c0_15] : memref<1x1x16x4xf32, #tpu.memory_space<vmem>>, vector<1x1x16x4xf32>
    %9 = vector.shape_cast %8 : vector<1x1x16x4xf32> to vector<1x16x4xf32>
    %10 = arith.truncf %9 : vector<1x16x4xf32> to vector<1x16x4xbf16>
    %c17 = arith.constant 17 : index
    %c1_16 = arith.constant 1 : index
    %c0_17 = arith.constant 0 : index
    %11 = vector.load %arg8[%c17, %c1_16, %c0_17] : memref<18x18x4xbf16, #tpu.memory_space<vmem>>, vector<1x16x4xbf16>
    tpu.vector_store %arg8[%c17, %c1_16, %c0_17], %10 {strides = array<i32>} : memref<18x18x4xbf16, #tpu.memory_space<vmem>>, vector<1x16x4xbf16>,
    %cst = arith.constant 0.000000e+00 : bf16
    %12 = vector.broadcast %cst : bf16 to vector<18x1x4xbf16>
    %c0_18 = arith.constant 0 : index
    %c0_19 = arith.constant 0 : index
    %c0_20 = arith.constant 0 : index
    %13 = vector.load %arg8[%c0_18, %c0_19, %c0_20] : memref<18x18x4xbf16, #tpu.memory_space<vmem>>, vector<18x1x4xbf16>
    tpu.vector_store %arg8[%c0_18, %c0_19, %c0_20], %12 {strides = array<i32>} : memref<18x18x4xbf16, #tpu.memory_space<vmem>>, vector<18x1x4xbf16>,
    %c0_21 = arith.constant 0 : index
    %c17_22 = arith.constant 17 : index
    %c0_23 = arith.constant 0 : index
    %14 = vector.load %arg8[%c0_21, %c17_22, %c0_23] : memref<18x18x4xbf16, #tpu.memory_space<vmem>>, vector<18x1x4xbf16>
    tpu.vector_store %arg8[%c0_21, %c17_22, %c0_23], %12 {strides = array<i32>} : memref<18x18x4xbf16, #tpu.memory_space<vmem>>, vector<18x1x4xbf16>,
    %c0_24 = arith.constant 0 : index
    %c0_25 = arith.constant 0 : index
    %c0_26 = arith.constant 0 : index
    %15 = vector.load %arg8[%c0_24, %c0_25, %c0_26] : memref<18x18x4xbf16, #tpu.memory_space<vmem>>, vector<16x16x4xbf16>
    %16 = vector.shape_cast %15 : vector<16x16x4xbf16> to vector<256x4xbf16>
    %c0_27 = arith.constant 0 : index
    %c0_28 = arith.constant 0 : index
    %c0_29 = arith.constant 0 : index
    %17 = vector.load %arg5[%c0_27, %c0_28, %c0_29] : memref<9x4x8xbf16, #tpu.memory_space<vmem>>, vector<1x4x8xbf16>
    %18 = vector.shape_cast %17 : vector<1x4x8xbf16> to vector<4x8xbf16>
    %cst_30 = arith.constant dense<0.000000e+00> : vector<256x8xf32>
    %19 = tpu.matmul %16, %18, %cst_30 {dimension_numbers = #tpu.dot_dimension_numbers<[1], [0], [0], [1], [0, 0, 1, 1], [], []>} : vector<256x4xbf16>, vector<4x8xbf16>, vector<256x8xf32> -> vector<256x8xf32>
    %c0_31 = arith.constant 0 : index
    %c1_32 = arith.constant 1 : index
    %c0_33 = arith.constant 0 : index
    %20 = vector.load %arg8[%c0_31, %c1_32, %c0_33] : memref<18x18x4xbf16, #tpu.memory_space<vmem>>, vector<16x16x4xbf16>
    %21 = vector.shape_cast %20 : vector<16x16x4xbf16> to vector<256x4xbf16>
    %c1_34 = arith.constant 1 : index
    %c0_35 = arith.constant 0 : index
    %c0_36 = arith.constant 0 : index
    %22 = vector.load %arg5[%c1_34, %c0_35, %c0_36] : memref<9x4x8xbf16, #tpu.memory_space<vmem>>, vector<1x4x8xbf16>
    %23 = vector.shape_cast %22 : vector<1x4x8xbf16> to vector<4x8xbf16>
    %cst_37 = arith.constant dense<0.000000e+00> : vector<256x8xf32>
    %24 = tpu.matmul %21, %23, %cst_37 {dimension_numbers = #tpu.dot_dimension_numbers<[1], [0], [0], [1], [0, 0, 1, 1], [], []>} : vector<256x4xbf16>, vector<4x8xbf16>, vector<256x8xf32> -> vector<256x8xf32>
    %25 = arith.addf %19, %24 : vector<256x8xf32>
    %c0_38 = arith.constant 0 : index
    %c2 = arith.constant 2 : index
    %c0_39 = arith.constant 0 : index
    %26 = vector.load %arg8[%c0_38, %c2, %c0_39] : memref<18x18x4xbf16, #tpu.memory_space<vmem>>, vector<16x16x4xbf16>
    %27 = vector.shape_cast %26 : vector<16x16x4xbf16> to vector<256x4xbf16>
    %c2_40 = arith.constant 2 : index
    %c0_41 = arith.constant 0 : index
    %c0_42 = arith.constant 0 : index
    %28 = vector.load %arg5[%c2_40, %c0_41, %c0_42] : memref<9x4x8xbf16, #tpu.memory_space<vmem>>, vector<1x4x8xbf16>
    %29 = vector.shape_cast %28 : vector<1x4x8xbf16> to vector<4x8xbf16>
    %cst_43 = arith.constant dense<0.000000e+00> : vector<256x8xf32>
    %30 = tpu.matmul %27, %29, %cst_43 {dimension_numbers = #tpu.dot_dimension_numbers<[1], [0], [0], [1], [0, 0, 1, 1], [], []>} : vector<256x4xbf16>, vector<4x8xbf16>, vector<256x8xf32> -> vector<256x8xf32>
    %31 = arith.addf %25, %30 : vector<256x8xf32>
    %c1_44 = arith.constant 1 : index
    %c0_45 = arith.constant 0 : index
    %c0_46 = arith.constant 0 : index
    %32 = vector.load %arg8[%c1_44, %c0_45, %c0_46] : memref<18x18x4xbf16, #tpu.memory_space<vmem>>, vector<16x16x4xbf16>
    %33 = vector.shape_cast %32 : vector<16x16x4xbf16> to vector<256x4xbf16>
    %c3 = arith.constant 3 : index
    %c0_47 = arith.constant 0 : index
    %c0_48 = arith.constant 0 : index
    %34 = vector.load %arg5[%c3, %c0_47, %c0_48] : memref<9x4x8xbf16, #tpu.memory_space<vmem>>, vector<1x4x8xbf16>
    %35 = vector.shape_cast %34 : vector<1x4x8xbf16> to vector<4x8xbf16>
    %cst_49 = arith.constant dense<0.000000e+00> : vector<256x8xf32>
    %36 = tpu.matmul %33, %35, %cst_49 {dimension_numbers = #tpu.dot_dimension_numbers<[1], [0], [0], [1], [0, 0, 1, 1], [], []>} : vector<256x4xbf16>, vector<4x8xbf16>, vector<256x8xf32> -> vector<256x8xf32>
    %37 = arith.addf %31, %36 : vector<256x8xf32>
    %c1_50 = arith.constant 1 : index
    %c1_51 = arith.constant 1 : index
    %c0_52 = arith.constant 0 : index
    %38 = vector.load %arg8[%c1_50, %c1_51, %c0_52] : memref<18x18x4xbf16, #tpu.memory_space<vmem>>, vector<16x16x4xbf16>
    %39 = vector.shape_cast %38 : vector<16x16x4xbf16> to vector<256x4xbf16>
    %c4 = arith.constant 4 : index
    %c0_53 = arith.constant 0 : index
    %c0_54 = arith.constant 0 : index
    %40 = vector.load %arg5[%c4, %c0_53, %c0_54] : memref<9x4x8xbf16, #tpu.memory_space<vmem>>, vector<1x4x8xbf16>
    %41 = vector.shape_cast %40 : vector<1x4x8xbf16> to vector<4x8xbf16>
    %cst_55 = arith.constant dense<0.000000e+00> : vector<256x8xf32>
    %42 = tpu.matmul %39, %41, %cst_55 {dimension_numbers = #tpu.dot_dimension_numbers<[1], [0], [0], [1], [0, 0, 1, 1], [], []>} : vector<256x4xbf16>, vector<4x8xbf16>, vector<256x8xf32> -> vector<256x8xf32>
    %43 = arith.addf %37, %42 : vector<256x8xf32>
    %c1_56 = arith.constant 1 : index
    %c2_57 = arith.constant 2 : index
    %c0_58 = arith.constant 0 : index
    %44 = vector.load %arg8[%c1_56, %c2_57, %c0_58] : memref<18x18x4xbf16, #tpu.memory_space<vmem>>, vector<16x16x4xbf16>
    %45 = vector.shape_cast %44 : vector<16x16x4xbf16> to vector<256x4xbf16>
    %c5 = arith.constant 5 : index
    %c0_59 = arith.constant 0 : index
    %c0_60 = arith.constant 0 : index
    %46 = vector.load %arg5[%c5, %c0_59, %c0_60] : memref<9x4x8xbf16, #tpu.memory_space<vmem>>, vector<1x4x8xbf16>
    %47 = vector.shape_cast %46 : vector<1x4x8xbf16> to vector<4x8xbf16>
    %cst_61 = arith.constant dense<0.000000e+00> : vector<256x8xf32>
    %48 = tpu.matmul %45, %47, %cst_61 {dimension_numbers = #tpu.dot_dimension_numbers<[1], [0], [0], [1], [0, 0, 1, 1], [], []>} : vector<256x4xbf16>, vector<4x8xbf16>, vector<256x8xf32> -> vector<256x8xf32>
    %49 = arith.addf %43, %48 : vector<256x8xf32>
    %c2_62 = arith.constant 2 : index
    %c0_63 = arith.constant 0 : index
    %c0_64 = arith.constant 0 : index
    %50 = vector.load %arg8[%c2_62, %c0_63, %c0_64] : memref<18x18x4xbf16, #tpu.memory_space<vmem>>, vector<16x16x4xbf16>
    %51 = vector.shape_cast %50 : vector<16x16x4xbf16> to vector<256x4xbf16>
    %c6 = arith.constant 6 : index
    %c0_65 = arith.constant 0 : index
    %c0_66 = arith.constant 0 : index
    %52 = vector.load %arg5[%c6, %c0_65, %c0_66] : memref<9x4x8xbf16, #tpu.memory_space<vmem>>, vector<1x4x8xbf16>
    %53 = vector.shape_cast %52 : vector<1x4x8xbf16> to vector<4x8xbf16>
    %cst_67 = arith.constant dense<0.000000e+00> : vector<256x8xf32>
    %54 = tpu.matmul %51, %53, %cst_67 {dimension_numbers = #tpu.dot_dimension_numbers<[1], [0], [0], [1], [0, 0, 1, 1], [], []>} : vector<256x4xbf16>, vector<4x8xbf16>, vector<256x8xf32> -> vector<256x8xf32>
    %55 = arith.addf %49, %54 : vector<256x8xf32>
    %c2_68 = arith.constant 2 : index
    %c1_69 = arith.constant 1 : index
    %c0_70 = arith.constant 0 : index
    %56 = vector.load %arg8[%c2_68, %c1_69, %c0_70] : memref<18x18x4xbf16, #tpu.memory_space<vmem>>, vector<16x16x4xbf16>
    %57 = vector.shape_cast %56 : vector<16x16x4xbf16> to vector<256x4xbf16>
    %c7 = arith.constant 7 : index
    %c0_71 = arith.constant 0 : index
    %c0_72 = arith.constant 0 : index
    %58 = vector.load %arg5[%c7, %c0_71, %c0_72] : memref<9x4x8xbf16, #tpu.memory_space<vmem>>, vector<1x4x8xbf16>
    %59 = vector.shape_cast %58 : vector<1x4x8xbf16> to vector<4x8xbf16>
    %cst_73 = arith.constant dense<0.000000e+00> : vector<256x8xf32>
    %60 = tpu.matmul %57, %59, %cst_73 {dimension_numbers = #tpu.dot_dimension_numbers<[1], [0], [0], [1], [0, 0, 1, 1], [], []>} : vector<256x4xbf16>, vector<4x8xbf16>, vector<256x8xf32> -> vector<256x8xf32>
    %61 = arith.addf %55, %60 : vector<256x8xf32>
    %c2_74 = arith.constant 2 : index
    %c2_75 = arith.constant 2 : index
    %c0_76 = arith.constant 0 : index
    %62 = vector.load %arg8[%c2_74, %c2_75, %c0_76] : memref<18x18x4xbf16, #tpu.memory_space<vmem>>, vector<16x16x4xbf16>
    %63 = vector.shape_cast %62 : vector<16x16x4xbf16> to vector<256x4xbf16>
    %c8 = arith.constant 8 : index
    %c0_77 = arith.constant 0 : index
    %c0_78 = arith.constant 0 : index
    %64 = vector.load %arg5[%c8, %c0_77, %c0_78] : memref<9x4x8xbf16, #tpu.memory_space<vmem>>, vector<1x4x8xbf16>
    %65 = vector.shape_cast %64 : vector<1x4x8xbf16> to vector<4x8xbf16>
    %cst_79 = arith.constant dense<0.000000e+00> : vector<256x8xf32>
    %66 = tpu.matmul %63, %65, %cst_79 {dimension_numbers = #tpu.dot_dimension_numbers<[1], [0], [0], [1], [0, 0, 1, 1], [], []>} : vector<256x4xbf16>, vector<4x8xbf16>, vector<256x8xf32> -> vector<256x8xf32>
    %67 = arith.addf %61, %66 : vector<256x8xf32>
    %c0_80 = arith.constant 0 : index
    %c0_81 = arith.constant 0 : index
    %68 = vector.load %arg6[%c0_80, %c0_81] : memref<1x8xf32, #tpu.memory_space<vmem>>, vector<1x8xf32>
    %69 = vector.broadcast %68 : vector<1x8xf32> to vector<256x8xf32>
    %70 = arith.addf %67, %69 : vector<256x8xf32>
    %cst_82 = arith.constant 0.000000e+00 : f32
    %71 = vector.broadcast %cst_82 : f32 to vector<256x8xf32>
    %72 = arith.maximumf %70, %71 : vector<256x8xf32>
    %73 = vector.shape_cast %72 : vector<256x8xf32> to vector<16x16x8xf32>
    %74 = tpu.concatenate %1, %73 in 2 : vector<16x16x4xf32>, vector<16x16x8xf32> -> vector<16x16x12xf32>
    %c0_83 = arith.constant 0 : index
    %c0_84 = arith.constant 0 : index
    %c0_85 = arith.constant 0 : index
    %c0_86 = arith.constant 0 : index
    %75 = vector.load %arg7[%c0_83, %c0_84, %c0_85, %c0_86] : memref<1x16x16x12xf32, #tpu.memory_space<vmem>>, vector<1x16x16x12xf32>
    %76 = vector.shape_cast %75 : vector<1x16x16x12xf32> to vector<16x16x12xf32>
    %77 = vector.shape_cast %74 : vector<16x16x12xf32> to vector<1x16x16x12xf32>
    tpu.vector_store %arg7[%c0_83, %c0_84, %c0_85, %c0_86], %77 {strides = array<i32>} : memref<1x16x16x12xf32, #tpu.memory_space<vmem>>, vector<1x16x16x12xf32>,
    return
  }
  func.func @transform_0(%arg0: i32, %arg1: i32) -> (i32, i32, i32, i32) {
    %c0_i32 = arith.constant 0 : i32
    %c0_i32_0 = arith.constant 0 : i32
    %c0_i32_1 = arith.constant 0 : i32
    return %arg0, %arg1, %c0_i32, %c0_i32_0 : i32, i32, i32, i32
  }
  func.func @transform_1(%arg0: i32, %arg1: i32) -> (i32, i32, i32, i32) {
    %c0_i32 = arith.constant 0 : i32
    %c0_i32_0 = arith.constant 0 : i32
    %c0_i32_1 = arith.constant 0 : i32
    return %arg0, %arg1, %c0_i32, %c0_i32_0 : i32, i32, i32, i32
  }
  func.func @transform_2(%arg0: i32, %arg1: i32) -> (i32, i32, i32, i32) {
    %c0_i32 = arith.constant 0 : i32
    %c0_i32_0 = arith.constant 0 : i32
    %c0_i32_1 = arith.constant 0 : i32
    return %arg0, %arg1, %c0_i32, %c0_i32_0 : i32, i32, i32, i32
  }
  func.func @transform_3(%arg0: i32, %arg1: i32) -> (i32, i32, i32) {
    %c0_i32 = arith.constant 0 : i32
    %c0_i32_0 = arith.constant 0 : i32
    %c0_i32_1 = arith.constant 0 : i32
    %c0_i32_2 = arith.constant 0 : i32
    return %c0_i32, %c0_i32_0, %c0_i32_1 : i32, i32, i32
  }
  func.func @transform_4(%arg0: i32, %arg1: i32) -> (i32, i32) {
    %c0_i32 = arith.constant 0 : i32
    %c0_i32_0 = arith.constant 0 : i32
    %c0_i32_1 = arith.constant 0 : i32
    return %c0_i32, %c0_i32_0 : i32, i32
  }
  func.func @transform_5(%arg0: i32, %arg1: i32) -> (i32, i32, i32, i32) {
    %c0_i32 = arith.constant 0 : i32
    %c0_i32_0 = arith.constant 0 : i32
    %c0_i32_1 = arith.constant 0 : i32
    return %arg0, %arg1, %c0_i32, %c0_i32_0 : i32, i32, i32, i32
  }
}

</mosaic_0001>

<llo_original>
// kernel: tpu_custom_call.1
$region0: #{tpu_custom_call.1}
  #allocation0 [shape = 'u32[]', space=smem, size = 0x4, offset = 0x4, fixed_abs, tag = 'smem constant byte address 0x4 - core index']
  #allocation1 [shape = 'u32[144,128]{1,0:T(1,128)}', space=vmem, size = 0x12000, scoped, tag = 'internal scratch']
  #allocation2 [shape = 'bf16[18,18,4]{2,1,0:T(8,128)(2,1)}', space=vmem, size = 0x1b000, scoped, tag = 'scratch operand']
  %s0 = inlined_call_operand.vmem [shape: f32[2,16,16,4], index: 0, kind: input, shape index: {}]
  %s1 = inlined_call_operand.vmem [shape: f32[2,1,16,4], index: 1, kind: input, shape index: {}]
  %s2 = inlined_call_operand.vmem [shape: f32[2,1,16,4], index: 2, kind: input, shape index: {}]
  %s3 = inlined_call_operand.vmem [shape: bf16[9,4,8], index: 3, kind: input, shape index: {}]
  %s4 = inlined_call_operand.vmem [shape: f32[1,8], index: 4, kind: input, shape index: {}]
  %s5 = inlined_call_operand.vmem [shape: f32[2,16,16,12], index: 5, kind: output, shape index: {}]
  %s6 = sld [smem:[#allocation0]]
  $region53: #{tpu_custom_call.1} parent=0
    _
  %s8 = ssub.s32 1, %s6
  %s9 = scalar_select 0, %s8, %s6
  loop: start=0, step=1, limit=4
  $region2: #{tpu_custom_call.1} parent=0 // loop_pre_header
    _
  $region3: #{tpu_custom_call.1} parent=0 // loop_header
    %s11 = sphi 0, %s15
    %p12 = scmp.ge.s32.totalorder %s11, 4
    %s18 = sphi 0, %s30
    %s19 = sphi 0, %s26
    %s20 = sphi 0, %s18
    %s21 = sphi 0, %s19
    %s22 = sphi 0, %s20
    %s23 = sphi 0, %s21
    %s35 = sphi 0, %s37
    %s38 = sphi 0, %s35
    %s39 = sphi 0, %s38
    %s55 = sphi 0, %s39
    %s63 = sphi 0, %s65
    %s66 = sphi 0, %s63
    %s67 = sphi 0, %s66
    %s83 = sphi 0, %s67
    %s91 = sphi 0, %s93
    %s94 = sphi 0, %s91
    %s95 = sphi 0, %s94
    %s111 = sphi 0, %s95
    %s115 = sphi 0, %s115
    %s117 = sphi 0, %s115
    %s118 = sphi 0, %s117
    %s132 = sphi 0, %s118
    %s136 = sphi 0, %s136
    %s138 = sphi 0, %s136
    %s139 = sphi 0, %s138
    %s153 = sphi 0, %s139
    %s161 = sphi 0, %s163
    %s164 = sphi 0, %s161
    %s165 = sphi 0, %s164
    %s181 = sphi 0, %s165
  $region4: #{tpu_custom_call.1} parent=0 // loop_header_branch
    %14 = sbr.rel (%p12) target = $region8
  $region5: #{tpu_custom_call.1} parent=0 // loop_body
    %s16 = ssub.s32 %s11, 1
    %s17 = ssub.s32 %s11, 2
    %s24 = sadd.s32 1, %s19
    %p25 = scmp.ge.s32.totalorder %s24, 1
    %s26 = scalar_select %p25, 0, %s24
    %s27 = sadd.s32 1, %s18
    %s28 = scalar_select %p25, %s27, %s18
    %p29 = scmp.ge.s32.totalorder %s28, 2
    %s30 = scalar_select %p29, 0, %s28
    %s31 = ssub.s32 %s18, %s30
    %s32 = ssub.s32 %s19, %s26
    %s33 = sor.u32 %s31, %s32
    %p34 = scmp.eq.s32.totalorder %s33, 0
    %s36 = sadd.s32 %s35, 1
    %s37 = scalar_select %p34, %s35, %s36
    %p40 = pneg %p34
    %p41 = scmp.eq.s32.totalorder %s11, 1
    %p42 = por %p40, %p41
    %p43 = scmp.ne.s32.totalorder %s35, %s38
    %p44 = scmp.eq.s32.totalorder %s11, 0
    %p45 = por %p43, %p44
    %p46 = scmp.ne.s32.totalorder %s35, %s38
    %p47 = scmp.eq.s32.totalorder %s16, 1
    %p48 = por %p46, %p47
    %p49 = scmp.ne.s32.totalorder %s38, %s39
    %p50 = scmp.eq.s32.totalorder %s16, 0
    %p51 = por %p49, %p50
    %p52 = scmp.ne.s32.totalorder %s38, %s39
    %p53 = scmp.eq.s32.totalorder %s17, 1
    %p54 = por %p52, %p53
    %p56 = scmp.ne.s32.totalorder %s39, %s55
    %p57 = scmp.eq.s32.totalorder %s17, 0
    %p58 = por %p56, %p57
    %s59 = ssub.s32 %s18, %s30
    %s60 = ssub.s32 %s19, %s26
    %s61 = sor.u32 %s59, %s60
    %p62 = scmp.eq.s32.totalorder %s61, 0
    %s64 = sadd.s32 %s63, 1
    %s65 = scalar_select %p62, %s63, %s64
    %p68 = pneg %p62
    %p69 = scmp.eq.s32.totalorder %s11, 1
    %p70 = por %p68, %p69
    %p71 = scmp.ne.s32.totalorder %s63, %s66
    %p72 = scmp.eq.s32.totalorder %s11, 0
    %p73 = por %p71, %p72
    %p74 = scmp.ne.s32.totalorder %s63, %s66
    %p75 = scmp.eq.s32.totalorder %s16, 1
    %p76 = por %p74, %p75
    %p77 = scmp.ne.s32.totalorder %s66, %s67
    %p78 = scmp.eq.s32.totalorder %s16, 0
    %p79 = por %p77, %p78
    %p80 = scmp.ne.s32.totalorder %s66, %s67
    %p81 = scmp.eq.s32.totalorder %s17, 1
    %p82 = por %p80, %p81
    %p84 = scmp.ne.s32.totalorder %s67, %s83
    %p85 = scmp.eq.s32.totalorder %s17, 0
    %p86 = por %p84, %p85
    %s87 = ssub.s32 %s18, %s30
    %s88 = ssub.s32 %s19, %s26
    %s89 = sor.u32 %s87, %s88
    %p90 = scmp.eq.s32.totalorder %s89, 0
    %s92 = sadd.s32 %s91, 1
    %s93 = scalar_select %p90, %s91, %s92
    %p96 = pneg %p90
    %p97 = scmp.eq.s32.totalorder %s11, 1
    %p98 = por %p96, %p97
    %p99 = scmp.ne.s32.totalorder %s91, %s94
    %p100 = scmp.eq.s32.totalorder %s11, 0
    %p101 = por %p99, %p100
    %p102 = scmp.ne.s32.totalorder %s91, %s94
    %p103 = scmp.eq.s32.totalorder %s16, 1
    %p104 = por %p102, %p103
    %p105 = scmp.ne.s32.totalorder %s94, %s95
    %p106 = scmp.eq.s32.totalorder %s16, 0
    %p107 = por %p105, %p106
    %p108 = scmp.ne.s32.totalorder %s94, %s95
    %p109 = scmp.eq.s32.totalorder %s17, 1
    %p110 = por %p108, %p109
    %p112 = scmp.ne.s32.totalorder %s95, %s111
    %p113 = scmp.eq.s32.totalorder %s17, 0
    %p114 = por %p112, %p113
    %s116 = sadd.s32 %s115, 1
    %p119 = scmp.eq.s32.totalorder %s11, 1
    %p120 = scmp.ne.s32.totalorder %s115, %s117
    %p121 = scmp.eq.s32.totalorder %s11, 0
    %p122 = por %p120, %p121
    %p123 = scmp.ne.s32.totalorder %s115, %s117
    %p124 = scmp.eq.s32.totalorder %s16, 1
    %p125 = por %p123, %p124
    %p126 = scmp.ne.s32.totalorder %s117, %s118
    %p127 = scmp.eq.s32.totalorder %s16, 0
    %p128 = por %p126, %p127
    %p129 = scmp.ne.s32.totalorder %s117, %s118
    %p130 = scmp.eq.s32.totalorder %s17, 1
    %p131 = por %p129, %p130
    %p133 = scmp.ne.s32.totalorder %s118, %s132
    %p134 = scmp.eq.s32.totalorder %s17, 0
    %p135 = por %p133, %p134
    %s137 = sadd.s32 %s136, 1
    %p140 = scmp.eq.s32.totalorder %s11, 1
    %p141 = scmp.ne.s32.totalorder %s136, %s138
    %p142 = scmp.eq.s32.totalorder %s11, 0
    %p143 = por %p141, %p142
    %p144 = scmp.ne.s32.totalorder %s136, %s138
    %p145 = scmp.eq.s32.totalorder %s16, 1
    %p146 = por %p144, %p145
    %p147 = scmp.ne.s32.totalorder %s138, %s139
    %p148 = scmp.eq.s32.totalorder %s16, 0
    %p149 = por %p147, %p148
    %p150 = scmp.ne.s32.totalorder %s138, %s139
    %p151 = scmp.eq.s32.totalorder %s17, 1
    %p152 = por %p150, %p151
    %p154 = scmp.ne.s32.totalorder %s139, %s153
    %p155 = scmp.eq.s32.totalorder %s17, 0
    %p156 = por %p154, %p155
    %s157 = ssub.s32 %s18, %s30
    %s158 = ssub.s32 %s19, %s26
    %s159 = sor.u32 %s157, %s158
    %p160 = scmp.eq.s32.totalorder %s159, 0
    %s162 = sadd.s32 %s161, 1
    %s163 = scalar_select %p160, %s161, %s162
    %p166 = pneg %p160
    %p167 = scmp.eq.s32.totalorder %s11, 1
    %p168 = por %p166, %p167
    %p169 = scmp.ne.s32.totalorder %s161, %s164
    %p170 = scmp.eq.s32.totalorder %s11, 0
    %p171 = por %p169, %p170
    %p172 = scmp.ne.s32.totalorder %s161, %s164
    %p173 = scmp.eq.s32.totalorder %s16, 1
    %p174 = por %p172, %p173
    %p175 = scmp.ne.s32.totalorder %s164, %s165
    %p176 = scmp.eq.s32.totalorder %s16, 0
    %p177 = por %p175, %p176
    %p178 = scmp.ne.s32.totalorder %s164, %s165
    %p179 = scmp.eq.s32.totalorder %s17, 1
    %p180 = por %p178, %p179
    %p182 = scmp.ne.s32.totalorder %s165, %s181
    %p183 = scmp.eq.s32.totalorder %s17, 0
    %p184 = por %p182, %p183
    %p185 = scmp.le.s32.totalorder 1, %s11
    %p186 = scmp.lt.s32.totalorder %s11, 3
    %p187 = pnand %p185, %p186
    %p188 = pneg %p187
    // Predicated region
    $region9: #{tpu_custom_call.1} parent=5 // pred_check
      _
    $region10: #{tpu_custom_call.1} parent=5 // pred_check_branch
      %190 = sbr.rel (%p187) target = $region12
    $region11: #{tpu_custom_call.1} parent=5 // pred_region
      %s191 = ssub.s32 %s11, 1
      // Predicated region
      $region13: #{tpu_custom_call.1} parent=11 // pred_check
        %p192 = pneg %p128
      $region14: #{tpu_custom_call.1} parent=11 // pred_check_branch
        %194 = sbr.rel (%p192) target = $region16
      $region15: #{tpu_custom_call.1} parent=11 // pred_region
        _
      $region16: #{tpu_custom_call.1} parent=11 // pred_fallthru
        _
      // Predicated region
      $region17: #{tpu_custom_call.1} parent=11 // pred_check
        %p195 = pneg %p149
      $region18: #{tpu_custom_call.1} parent=11 // pred_check_branch
        %197 = sbr.rel (%p195) target = $region20
      $region19: #{tpu_custom_call.1} parent=11 // pred_region
        _
      $region20: #{tpu_custom_call.1} parent=11 // pred_fallthru
        _
    $region12: #{tpu_custom_call.1} parent=5 // pred_fallthru
      _
    %p198 = scmp.lt.s32.totalorder %s11, 2
    // Predicated region
    $region21: #{tpu_custom_call.1} parent=5 // pred_check
      %p199 = pneg %p198
    $region22: #{tpu_custom_call.1} parent=5 // pred_check_branch
      %201 = sbr.rel (%p199) target = $region24
    $region23: #{tpu_custom_call.1} parent=5 // pred_region
      // Predicated region
      $region25: #{tpu_custom_call.1} parent=23 // pred_check
        %p202 = pneg %p45
      $region26: #{tpu_custom_call.1} parent=23 // pred_check_branch
        %204 = sbr.rel (%p202) target = $region28
      $region27: #{tpu_custom_call.1} parent=23 // pred_region
        %s205 = smul.u32 16, %s19
        %p206 = scmp.lt.s32.totalorder %s18, 1
        %s207 = scalar_select %p206, %s18, 1
        %p208 = scmp.lt.s32.totalorder %s205, 15
        %s209 = scalar_select %p208, %s205, 15
        %s210 = smul.addr %s209, 2
        %s211 = smul.addr %s207, 32
        %s212 = sadd.s32 %s210, %s211
        %s213 = smul.addr %s212, 8
        %s214 = scalar_lea.vmem %s0, %s213
        %s215 = smul.u32 16, %s19
      $region28: #{tpu_custom_call.1} parent=23 // pred_fallthru
        _
      // Predicated region
      $region29: #{tpu_custom_call.1} parent=23 // pred_check
        %p216 = pneg %p73
      $region30: #{tpu_custom_call.1} parent=23 // pred_check_branch
        %218 = sbr.rel (%p216) target = $region32
      $region31: #{tpu_custom_call.1} parent=23 // pred_region
        %p219 = scmp.lt.s32.totalorder %s18, 1
        %s220 = scalar_select %p219, %s18, 1
        %p221 = scmp.lt.s32.totalorder %s19, 0
        %s222 = scalar_select %p221, %s19, 0
        %s223 = smul.addr %s222, 2
        %s224 = smul.addr %s220, 2
        %s225 = sadd.s32 %s223, %s224
        %s226 = smul.addr %s225, 8
        %s227 = scalar_lea.vmem %s1, %s226
      $region32: #{tpu_custom_call.1} parent=23 // pred_fallthru
        _
      // Predicated region
      $region33: #{tpu_custom_call.1} parent=23 // pred_check
        %p228 = pneg %p101
      $region34: #{tpu_custom_call.1} parent=23 // pred_check_branch
        %230 = sbr.rel (%p228) target = $region36
      $region35: #{tpu_custom_call.1} parent=23 // pred_region
        %p231 = scmp.lt.s32.totalorder %s18, 1
        %s232 = scalar_select %p231, %s18, 1
        %p233 = scmp.lt.s32.totalorder %s19, 0
        %s234 = scalar_select %p233, %s19, 0
        %s235 = smul.addr %s234, 2
        %s236 = smul.addr %s232, 2
        %s237 = sadd.s32 %s235, %s236
        %s238 = smul.addr %s237, 8
        %s239 = scalar_lea.vmem %s2, %s238
      $region36: #{tpu_custom_call.1} parent=23 // pred_fallthru
        _
    $region24: #{tpu_custom_call.1} parent=5 // pred_fallthru
      _
    %p240 = scmp.le.s32.totalorder 1, %s11
    %p241 = scmp.lt.s32.totalorder %s11, 3
    %p242 = pnand %p240, %p241
    %p243 = pneg %p242
    // Predicated region
    $region37: #{tpu_custom_call.1} parent=5 // pred_check
      _
    $region38: #{tpu_custom_call.1} parent=5 // pred_check_branch
      %245 = sbr.rel (%p242) target = $region40
    $region39: #{tpu_custom_call.1} parent=5 // pred_region
      %s246 = ssub.s32 %s11, 1
      %s247 = smul.u32 16, %s21
      %p248 = scmp.lt.s32.totalorder %s20, 1
      %s249 = scalar_select %p248, %s20, 1
      %p250 = scmp.lt.s32.totalorder %s247, 15
      %s251 = scalar_select %p250, %s247, 15
      %s252 = smul.addr %s251, 2
      %s253 = smul.addr %s249, 32
      %s254 = sadd.s32 %s252, %s253
      %s255 = smul.addr %s254, 8
      %s256 = scalar_lea.vmem %s0, %s255
      %p257 = pneg %p51
      %p258 = pneg %p48
      %p259 = scmp.lt.s32.totalorder %s20, 1
      %s260 = scalar_select %p259, %s20, 1
      %p261 = scmp.lt.s32.totalorder %s21, 0
      %s262 = scalar_select %p261, %s21, 0
      %s263 = smul.addr %s262, 2
      %s264 = smul.addr %s260, 2
      %s265 = sadd.s32 %s263, %s264
      %s266 = smul.addr %s265, 8
      %s267 = scalar_lea.vmem %s1, %s266
      %p268 = pneg %p79
      %p269 = pneg %p76
      %p270 = scmp.lt.s32.totalorder %s20, 1
      %s271 = scalar_select %p270, %s20, 1
      %p272 = scmp.lt.s32.totalorder %s21, 0
      %s273 = scalar_select %p272, %s21, 0
      %s274 = smul.addr %s273, 2
      %s275 = smul.addr %s271, 2
      %s276 = sadd.s32 %s274, %s275
      %s277 = smul.addr %s276, 8
      %s278 = scalar_lea.vmem %s2, %s277
      %p279 = pneg %p107
      %p280 = pneg %p104
      %p281 = pneg %p128
      %p282 = pneg %p125
      %p283 = pneg %p149
      %p284 = pneg %p146
      %p285 = pneg %p177
      %p286 = pneg %p174
      %s287 = smul.u32 16, %s21
      %p288 = scmp.lt.s32.totalorder %s20, 1
      %s289 = scalar_select %p288, %s20, 1
      %p290 = scmp.lt.s32.totalorder %s287, 15
      %s291 = scalar_select %p290, %s287, 15
      %s292 = smul.addr %s291, 2
      %s293 = smul.addr %s289, 32
      %s294 = sadd.s32 %s292, %s293
      %s295 = smul.addr %s294, 8
      %s296 = scalar_lea.vmem %s5, %s295
      %s297 = smul.u32 16, %s21
      %p298 = scmp.lt.s32.totalorder %s20, 1
      %s299 = scalar_select %p298, %s20, 1
      %p300 = scmp.lt.s32.totalorder %s297, 15
      %s301 = scalar_select %p300, %s297, 15
      %s302 = smul.addr %s301, 2
      %s303 = smul.addr %s299, 32
      %s304 = sadd.s32 %s302, %s303
      %s305 = smul.addr %s304, 8
      %s306 = scalar_lea.vmem %s0, %s305
      %s307 = smul.u32 16, %s21
      %p308 = scmp.lt.s32.totalorder %s20, 1
      %s309 = scalar_select %p308, %s20, 1
      %p310 = scmp.lt.s32.totalorder %s21, 0
      %s311 = scalar_select %p310, %s21, 0
      %s312 = smul.addr %s311, 2
      %s313 = smul.addr %s309, 2
      %s314 = sadd.s32 %s312, %s313
      %s315 = smul.addr %s314, 8
      %s316 = scalar_lea.vmem %s1, %s315
      %p317 = scmp.lt.s32.totalorder %s20, 1
      %s318 = scalar_select %p317, %s20, 1
      %p319 = scmp.lt.s32.totalorder %s21, 0
      %s320 = scalar_select %p319, %s21, 0
      %s321 = smul.addr %s320, 2
      %s322 = smul.addr %s318, 2
      %s323 = sadd.s32 %s321, %s322
      %s324 = smul.addr %s323, 8
      %s325 = scalar_lea.vmem %s2, %s324
      %s326 = smul.u32 16, %s21
      %p327 = scmp.lt.s32.totalorder %s20, 1
      %s328 = scalar_select %p327, %s20, 1
      %p329 = scmp.lt.s32.totalorder %s326, 15
      %s330 = scalar_select %p329, %s326, 15
      %s331 = smul.addr %s330, 2
      %s332 = smul.addr %s328, 32
      %s333 = sadd.s32 %s331, %s332
      %s334 = smul.addr %s333, 8
      %s335 = scalar_lea.vmem %s5, %s334
      %s336 = smul.u32 16, %s21
      %v338 = vld [vmem:[%s306] sm:$0xff]
      %v339 = vld [vmem:[%s306 + $0x8] sm:$0xff]
      %v340 = vld [vmem:[%s306 + $0x10] sm:$0xff]
      %v341 = vld [vmem:[%s306 + $0x18] sm:$0xff]
      %v342 = vld [vmem:[%s306 + $0x20] sm:$0xff]
      %v343 = vld [vmem:[%s306 + $0x28] sm:$0xff]
      %v344 = vld [vmem:[%s306 + $0x30] sm:$0xff]
      %v345 = vld [vmem:[%s306 + $0x38] sm:$0xff]
      %v346 = vld [vmem:[%s306 + $0x40] sm:$0xff]
      %v347 = vld [vmem:[%s306 + $0x48] sm:$0xff]
      %v348 = vld [vmem:[%s306 + $0x50] sm:$0xff]
      %v349 = vld [vmem:[%s306 + $0x58] sm:$0xff]
      %v350 = vld [vmem:[%s306 + $0x60] sm:$0xff]
      %v351 = vld [vmem:[%s306 + $0x68] sm:$0xff]
      %v352 = vld [vmem:[%s306 + $0x70] sm:$0xff]
      %v353 = vld [vmem:[%s306 + $0x78] sm:$0xff]
      %v354 = vld [vmem:[%s306 + $0x80] sm:$0xff]
      %v355 = vld [vmem:[%s306 + $0x88] sm:$0xff]
      %v356 = vld [vmem:[%s306 + $0x90] sm:$0xff]
      %v357 = vld [vmem:[%s306 + $0x98] sm:$0xff]
      %v358 = vld [vmem:[%s306 + $0xa0] sm:$0xff]
      %v359 = vld [vmem:[%s306 + $0xa8] sm:$0xff]
      %v360 = vld [vmem:[%s306 + $0xb0] sm:$0xff]
      %v361 = vld [vmem:[%s306 + $0xb8] sm:$0xff]
      %v362 = vld [vmem:[%s306 + $0xc0] sm:$0xff]
      %v363 = vld [vmem:[%s306 + $0xc8] sm:$0xff]
      %v364 = vld [vmem:[%s306 + $0xd0] sm:$0xff]
      %v365 = vld [vmem:[%s306 + $0xd8] sm:$0xff]
      %v366 = vld [vmem:[%s306 + $0xe0] sm:$0xff]
      %v367 = vld [vmem:[%s306 + $0xe8] sm:$0xff]
      %v368 = vld [vmem:[%s306 + $0xf0] sm:$0xff]
      %v369 = vld [vmem:[%s306 + $0xf8] sm:$0xff]
      %v370 = vpack.c.bf16 %v339, %v338
      %v371 = vpack.c.bf16 %v341, %v340
      %v372 = vpack.c.bf16 %v343, %v342
      %v373 = vpack.c.bf16 %v345, %v344
      %v374 = vpack.c.bf16 %v347, %v346
      %v375 = vpack.c.bf16 %v349, %v348
      %v376 = vpack.c.bf16 %v351, %v350
      %v377 = vpack.c.bf16 %v353, %v352
      %v378 = vpack.c.bf16 %v355, %v354
      %v379 = vpack.c.bf16 %v357, %v356
      %v380 = vpack.c.bf16 %v359, %v358
      %v381 = vpack.c.bf16 %v361, %v360
      %v382 = vpack.c.bf16 %v363, %v362
      %v383 = vpack.c.bf16 %v365, %v364
      %v384 = vpack.c.bf16 %v367, %v366
      %v385 = vpack.c.bf16 %v369, %v368
      %v402 = vunpack.c.l.b16 %v370
      %v403 = vunpack.c.h.b16 %v370
      %v404 = vunpack.c.l.b16 %v371
      %v405 = vunpack.c.h.b16 %v371
      %v406 = vunpack.c.l.b16 %v372
      %v407 = vunpack.c.h.b16 %v372
      %v408 = vunpack.c.l.b16 %v373
      %v409 = vunpack.c.h.b16 %v373
      %v410 = vunpack.c.l.b16 %v374
      %v411 = vunpack.c.h.b16 %v374
      %v412 = vunpack.c.l.b16 %v375
      %v413 = vunpack.c.h.b16 %v375
      %v414 = vunpack.c.l.b16 %v376
      %v415 = vunpack.c.h.b16 %v376
      %v416 = vunpack.c.l.b16 %v377
      %v417 = vunpack.c.h.b16 %v377
      %v418 = vunpack.c.l.b16 %v378
      %v419 = vunpack.c.h.b16 %v378
      %v420 = vunpack.c.l.b16 %v379
      %v421 = vunpack.c.h.b16 %v379
      %v422 = vunpack.c.l.b16 %v380
      %v423 = vunpack.c.h.b16 %v380
      %v424 = vunpack.c.l.b16 %v381
      %v425 = vunpack.c.h.b16 %v381
      %v426 = vunpack.c.l.b16 %v382
      %v427 = vunpack.c.h.b16 %v382
      %v428 = vunpack.c.l.b16 %v383
      %v429 = vunpack.c.h.b16 %v383
      %v430 = vunpack.c.l.b16 %v384
      %v431 = vunpack.c.h.b16 %v384
      %v432 = vunpack.c.l.b16 %v385
      %v433 = vunpack.c.h.b16 %v385
      %v434 = vpack.c.b16 %v402, %v402
      %v435 = vpack.c.b16 %v403, %v403
      %v436 = vpack.c.b16 %v404, %v404
      %v437 = vpack.c.b16 %v405, %v405
      %v438 = vpack.c.b16 %v406, %v406
      %v439 = vpack.c.b16 %v407, %v407
      %v440 = vpack.c.b16 %v408, %v408
      %v441 = vpack.c.b16 %v409, %v409
      %v442 = vpack.c.b16 %v410, %v410
      %v443 = vpack.c.b16 %v411, %v411
      %v444 = vpack.c.b16 %v412, %v412
      %v445 = vpack.c.b16 %v413, %v413
      %v446 = vpack.c.b16 %v414, %v414
      %v447 = vpack.c.b16 %v415, %v415
      %v448 = vpack.c.b16 %v416, %v416
      %v449 = vpack.c.b16 %v417, %v417
      %v450 = vpack.c.b16 %v418, %v418
      %v451 = vpack.c.b16 %v419, %v419
      %v452 = vpack.c.b16 %v420, %v420
      %v453 = vpack.c.b16 %v421, %v421
      %v454 = vpack.c.b16 %v422, %v422
      %v455 = vpack.c.b16 %v423, %v423
      %v456 = vpack.c.b16 %v424, %v424
      %v457 = vpack.c.b16 %v425, %v425
      %v458 = vpack.c.b16 %v426, %v426
      %v459 = vpack.c.b16 %v427, %v427
      %v460 = vpack.c.b16 %v428, %v428
      %v461 = vpack.c.b16 %v429, %v429
      %v462 = vpack.c.b16 %v430, %v430
      %v463 = vpack.c.b16 %v431, %v431
      %v464 = vpack.c.b16 %v432, %v432
      %v465 = vpack.c.b16 %v433, %v433
      %vm466 = vsmask.f32 256
      %vm467 = vsmask.f32 4368
      %vm468 = vmor %vm466, %vm467
      %v470 = vshrl.u32 %v434, 16
      %v472 = vrot.slane %v470, 7
      %v473 = vshll.u32 %v434, 16
      %v475 = vor.u32 %v472, %v473
      %v476 = vrot.slane %v472, 4
      %v478 = vshrl.u32 %v435, 16
      %v480 = vrot.slane %v478, 7
      %v481 = vshll.u32 %v435, 16
      %v483 = vor.u32 %v480, %v481
      %v484 = vsel %vm468, %v476, %v483
      %v485 = vrot.slane %v480, 4
      %v487 = vshrl.u32 %v436, 16
      %v489 = vrot.slane %v487, 7
      %v490 = vshll.u32 %v436, 16
      %v492 = vor.u32 %v489, %v490
      %v493 = vrot.slane %v489, 4
      %v495 = vshrl.u32 %v437, 16
      %v497 = vrot.slane %v495, 7
      %v498 = vshll.u32 %v437, 16
      %v500 = vor.u32 %v497, %v498
      %v501 = vsel %vm468, %v493, %v500
      %v502 = vrot.slane %v497, 4
      %v504 = vshrl.u32 %v438, 16
      %v506 = vrot.slane %v504, 7
      %v507 = vshll.u32 %v438, 16
      %v509 = vor.u32 %v506, %v507
      %v510 = vrot.slane %v506, 4
      %v512 = vshrl.u32 %v439, 16
      %v514 = vrot.slane %v512, 7
      %v515 = vshll.u32 %v439, 16
      %v517 = vor.u32 %v514, %v515
      %v518 = vsel %vm468, %v510, %v517
      %v519 = vrot.slane %v514, 4
      %v521 = vshrl.u32 %v440, 16
      %v523 = vrot.slane %v521, 7
      %v524 = vshll.u32 %v440, 16
      %v526 = vor.u32 %v523, %v524
      %v527 = vrot.slane %v523, 4
      %v529 = vshrl.u32 %v441, 16
      %v531 = vrot.slane %v529, 7
      %v532 = vshll.u32 %v441, 16
      %v534 = vor.u32 %v531, %v532
      %v535 = vsel %vm468, %v527, %v534
      %v536 = vrot.slane %v531, 4
      %v538 = vshrl.u32 %v442, 16
      %v540 = vrot.slane %v538, 7
      %v541 = vshll.u32 %v442, 16
      %v543 = vor.u32 %v540, %v541
      %v544 = vrot.slane %v540, 4
      %v546 = vshrl.u32 %v443, 16
      %v548 = vrot.slane %v546, 7
      %v549 = vshll.u32 %v443, 16
      %v551 = vor.u32 %v548, %v549
      %v552 = vsel %vm468, %v544, %v551
      %v553 = vrot.slane %v548, 4
      %v555 = vshrl.u32 %v444, 16
      %v557 = vrot.slane %v555, 7
      %v558 = vshll.u32 %v444, 16
      %v560 = vor.u32 %v557, %v558
      %v561 = vrot.slane %v557, 4
      %v563 = vshrl.u32 %v445, 16
      %v565 = vrot.slane %v563, 7
      %v566 = vshll.u32 %v445, 16
      %v568 = vor.u32 %v565, %v566
      %v569 = vsel %vm468, %v561, %v568
      %v570 = vrot.slane %v565, 4
      %v572 = vshrl.u32 %v446, 16
      %v574 = vrot.slane %v572, 7
      %v575 = vshll.u32 %v446, 16
      %v577 = vor.u32 %v574, %v575
      %v578 = vrot.slane %v574, 4
      %v580 = vshrl.u32 %v447, 16
      %v582 = vrot.slane %v580, 7
      %v583 = vshll.u32 %v447, 16
      %v585 = vor.u32 %v582, %v583
      %v586 = vsel %vm468, %v578, %v585
      %v587 = vrot.slane %v582, 4
      %v589 = vshrl.u32 %v448, 16
      %v591 = vrot.slane %v589, 7
      %v592 = vshll.u32 %v448, 16
      %v594 = vor.u32 %v591, %v592
      %v595 = vrot.slane %v591, 4
      %v597 = vshrl.u32 %v449, 16
      %v599 = vrot.slane %v597, 7
      %v600 = vshll.u32 %v449, 16
      %v602 = vor.u32 %v599, %v600
      %v603 = vsel %vm468, %v595, %v602
      %v604 = vrot.slane %v599, 4
      %v606 = vshrl.u32 %v450, 16
      %v608 = vrot.slane %v606, 7
      %v609 = vshll.u32 %v450, 16
      %v611 = vor.u32 %v608, %v609
      %v612 = vrot.slane %v608, 4
      %v614 = vshrl.u32 %v451, 16
      %v616 = vrot.slane %v614, 7
      %v617 = vshll.u32 %v451, 16
      %v619 = vor.u32 %v616, %v617
      %v620 = vsel %vm468, %v612, %v619
      %v621 = vrot.slane %v616, 4
      %v623 = vshrl.u32 %v452, 16
      %v625 = vrot.slane %v623, 7
      %v626 = vshll.u32 %v452, 16
      %v628 = vor.u32 %v625, %v626
      %v629 = vrot.slane %v625, 4
      %v631 = vshrl.u32 %v453, 16
      %v633 = vrot.slane %v631, 7
      %v634 = vshll.u32 %v453, 16
      %v636 = vor.u32 %v633, %v634
      %v637 = vsel %vm468, %v629, %v636
      %v638 = vrot.slane %v633, 4
      %v640 = vshrl.u32 %v454, 16
      %v642 = vrot.slane %v640, 7
      %v643 = vshll.u32 %v454, 16
      %v645 = vor.u32 %v642, %v643
      %v646 = vrot.slane %v642, 4
      %v648 = vshrl.u32 %v455, 16
      %v650 = vrot.slane %v648, 7
      %v651 = vshll.u32 %v455, 16
      %v653 = vor.u32 %v650, %v651
      %v654 = vsel %vm468, %v646, %v653
      %v655 = vrot.slane %v650, 4
      %v657 = vshrl.u32 %v456, 16
      %v659 = vrot.slane %v657, 7
      %v660 = vshll.u32 %v456, 16
      %v662 = vor.u32 %v659, %v660
      %v663 = vrot.slane %v659, 4
      %v665 = vshrl.u32 %v457, 16
      %v667 = vrot.slane %v665, 7
      %v668 = vshll.u32 %v457, 16
      %v670 = vor.u32 %v667, %v668
      %v671 = vsel %vm468, %v663, %v670
      %v672 = vrot.slane %v667, 4
      %v674 = vshrl.u32 %v458, 16
      %v676 = vrot.slane %v674, 7
      %v677 = vshll.u32 %v458, 16
      %v679 = vor.u32 %v676, %v677
      %v680 = vrot.slane %v676, 4
      %v682 = vshrl.u32 %v459, 16
      %v684 = vrot.slane %v682, 7
      %v685 = vshll.u32 %v459, 16
      %v687 = vor.u32 %v684, %v685
      %v688 = vsel %vm468, %v680, %v687
      %v689 = vrot.slane %v684, 4
      %v691 = vshrl.u32 %v460, 16
      %v693 = vrot.slane %v691, 7
      %v694 = vshll.u32 %v460, 16
      %v696 = vor.u32 %v693, %v694
      %v697 = vrot.slane %v693, 4
      %v699 = vshrl.u32 %v461, 16
      %v701 = vrot.slane %v699, 7
      %v702 = vshll.u32 %v461, 16
      %v704 = vor.u32 %v701, %v702
      %v705 = vsel %vm468, %v697, %v704
      %v706 = vrot.slane %v701, 4
      %v708 = vshrl.u32 %v462, 16
      %v710 = vrot.slane %v708, 7
      %v711 = vshll.u32 %v462, 16
      %v713 = vor.u32 %v710, %v711
      %v714 = vrot.slane %v710, 4
      %v716 = vshrl.u32 %v463, 16
      %v718 = vrot.slane %v716, 7
      %v719 = vshll.u32 %v463, 16
      %v721 = vor.u32 %v718, %v719
      %v722 = vsel %vm468, %v714, %v721
      %v723 = vrot.slane %v718, 4
      %v725 = vshrl.u32 %v464, 16
      %v727 = vrot.slane %v725, 7
      %v728 = vshll.u32 %v464, 16
      %v730 = vor.u32 %v727, %v728
      %v731 = vrot.slane %v727, 4
      %v733 = vshrl.u32 %v465, 16
      %v735 = vrot.slane %v733, 7
      %v736 = vshll.u32 %v465, 16
      %v738 = vor.u32 %v735, %v736
      %v739 = vsel %vm468, %v731, %v738
      %v740 = vrot.slane %v735, 4
      %s789 = scalar_lea.vmem [#allocation2], 12
      %vm790 = vcmask 27648
      %vm791 = vsmask.f32 7938
      %vm792 = vmand %vm790, %vm791
      %v793 = vld [vmem:[%s789] sm:$0xf]
      %v794 = vsel %vm792, %v475, %v793
      %795 = vst [vmem:[%s789] sm:$0xf] %v794
      %vm796 = vcmask 27648
      %797 = vst.msk [vmem:[%s789 + $0x4] sm:$0xf] %vm796, %v484
      %vm798 = vcmask 24576
      %vm799 = vmand %vm798, %vm466
      %v800 = vld [vmem:[%s789 + $0x8] sm:$0x1]
      %v801 = vsel %vm799, %v485, %v800
      %802 = vst [vmem:[%s789 + $0x8] sm:$0x1] %v801
      %v803 = vld [vmem:[%s789 + $0xc] sm:$0xf]
      %v804 = vsel %vm792, %v492, %v803
      %805 = vst [vmem:[%s789 + $0xc] sm:$0xf] %v804
      %806 = vst.msk [vmem:[%s789 + $0x10] sm:$0xf] %vm796, %v501
      %v807 = vld [vmem:[%s789 + $0x14] sm:$0x1]
      %v808 = vsel %vm799, %v502, %v807
      %809 = vst [vmem:[%s789 + $0x14] sm:$0x1] %v808
      %v810 = vld [vmem:[%s789 + $0x18] sm:$0xf]
      %v811 = vsel %vm792, %v509, %v810
      %812 = vst [vmem:[%s789 + $0x18] sm:$0xf] %v811
      %813 = vst.msk [vmem:[%s789 + $0x1c] sm:$0xf] %vm796, %v518
      %v814 = vld [vmem:[%s789 + $0x20] sm:$0x1]
      %v815 = vsel %vm799, %v519, %v814
      %816 = vst [vmem:[%s789 + $0x20] sm:$0x1] %v815
      %v817 = vld [vmem:[%s789 + $0x24] sm:$0xf]
      %v818 = vsel %vm792, %v526, %v817
      %819 = vst [vmem:[%s789 + $0x24] sm:$0xf] %v818
      %820 = vst.msk [vmem:[%s789 + $0x28] sm:$0xf] %vm796, %v535
      %v821 = vld [vmem:[%s789 + $0x2c] sm:$0x1]
      %v822 = vsel %vm799, %v536, %v821
      %823 = vst [vmem:[%s789 + $0x2c] sm:$0x1] %v822
      %v824 = vld [vmem:[%s789 + $0x30] sm:$0xf]
      %v825 = vsel %vm792, %v543, %v824
      %826 = vst [vmem:[%s789 + $0x30] sm:$0xf] %v825
      %827 = vst.msk [vmem:[%s789 + $0x34] sm:$0xf] %vm796, %v552
      %v828 = vld [vmem:[%s789 + $0x38] sm:$0x1]
      %v829 = vsel %vm799, %v553, %v828
      %830 = vst [vmem:[%s789 + $0x38] sm:$0x1] %v829
      %v831 = vld [vmem:[%s789 + $0x3c] sm:$0xf]
      %v832 = vsel %vm792, %v560, %v831
      %833 = vst [vmem:[%s789 + $0x3c] sm:$0xf] %v832
      %834 = vst.msk [vmem:[%s789 + $0x40] sm:$0xf] %vm796, %v569
      %v835 = vld [vmem:[%s789 + $0x44] sm:$0x1]
      %v836 = vsel %vm799, %v570, %v835
      %837 = vst [vmem:[%s789 + $0x44] sm:$0x1] %v836
      %v838 = vld [vmem:[%s789 + $0x48] sm:$0xf]
      %v839 = vsel %vm792, %v577, %v838
      %840 = vst [vmem:[%s789 + $0x48] sm:$0xf] %v839
      %841 = vst.msk [vmem:[%s789 + $0x4c] sm:$0xf] %vm796, %v586
      %v842 = vld [vmem:[%s789 + $0x50] sm:$0x1]
      %v843 = vsel %vm799, %v587, %v842
      %844 = vst [vmem:[%s789 + $0x50] sm:$0x1] %v843
      %v845 = vld [vmem:[%s789 + $0x54] sm:$0xf]
      %v846 = vsel %vm792, %v594, %v845
      %847 = vst [vmem:[%s789 + $0x54] sm:$0xf] %v846
      %848 = vst.msk [vmem:[%s789 + $0x58] sm:$0xf] %vm796, %v603
      %v849 = vld [vmem:[%s789 + $0x5c] sm:$0x1]
      %v850 = vsel %vm799, %v604, %v849
      %851 = vst [vmem:[%s789 + $0x5c] sm:$0x1] %v850
      %v852 = vld [vmem:[%s789 + $0x60] sm:$0xf]
      %v853 = vsel %vm792, %v611, %v852
      %854 = vst [vmem:[%s789 + $0x60] sm:$0xf] %v853
      %855 = vst.msk [vmem:[%s789 + $0x64] sm:$0xf] %vm796, %v620
      %v856 = vld [vmem:[%s789 + $0x68] sm:$0x1]
      %v857 = vsel %vm799, %v621, %v856
      %858 = vst [vmem:[%s789 + $0x68] sm:$0x1] %v857
      %v859 = vld [vmem:[%s789 + $0x6c] sm:$0xf]
      %v860 = vsel %vm792, %v628, %v859
      %861 = vst [vmem:[%s789 + $0x6c] sm:$0xf] %v860
      %862 = vst.msk [vmem:[%s789 + $0x70] sm:$0xf] %vm796, %v637
      %v863 = vld [vmem:[%s789 + $0x74] sm:$0x1]
      %v864 = vsel %vm799, %v638, %v863
      %865 = vst [vmem:[%s789 + $0x74] sm:$0x1] %v864
      %v866 = vld [vmem:[%s789 + $0x78] sm:$0xf]
      %v867 = vsel %vm792, %v645, %v866
      %868 = vst [vmem:[%s789 + $0x78] sm:$0xf] %v867
      %869 = vst.msk [vmem:[%s789 + $0x7c] sm:$0xf] %vm796, %v654
      %v870 = vld [vmem:[%s789 + $0x80] sm:$0x1]
      %v871 = vsel %vm799, %v655, %v870
      %872 = vst [vmem:[%s789 + $0x80] sm:$0x1] %v871
      %v873 = vld [vmem:[%s789 + $0x84] sm:$0xf]
      %v874 = vsel %vm792, %v662, %v873
      %875 = vst [vmem:[%s789 + $0x84] sm:$0xf] %v874
      %876 = vst.msk [vmem:[%s789 + $0x88] sm:$0xf] %vm796, %v671
      %v877 = vld [vmem:[%s789 + $0x8c] sm:$0x1]
      %v878 = vsel %vm799, %v672, %v877
      %879 = vst [vmem:[%s789 + $0x8c] sm:$0x1] %v878
      %v880 = vld [vmem:[%s789 + $0x90] sm:$0xf]
      %v881 = vsel %vm792, %v679, %v880
      %882 = vst [vmem:[%s789 + $0x90] sm:$0xf] %v881
      %883 = vst.msk [vmem:[%s789 + $0x94] sm:$0xf] %vm796, %v688
      %v884 = vld [vmem:[%s789 + $0x98] sm:$0x1]
      %v885 = vsel %vm799, %v689, %v884
      %886 = vst [vmem:[%s789 + $0x98] sm:$0x1] %v885
      %v887 = vld [vmem:[%s789 + $0x9c] sm:$0xf]
      %v888 = vsel %vm792, %v696, %v887
      %889 = vst [vmem:[%s789 + $0x9c] sm:$0xf] %v888
      %890 = vst.msk [vmem:[%s789 + $0xa0] sm:$0xf] %vm796, %v705
      %v891 = vld [vmem:[%s789 + $0xa4] sm:$0x1]
      %v892 = vsel %vm799, %v706, %v891
      %893 = vst [vmem:[%s789 + $0xa4] sm:$0x1] %v892
      %v894 = vld [vmem:[%s789 + $0xa8] sm:$0xf]
      %v895 = vsel %vm792, %v713, %v894
      %896 = vst [vmem:[%s789 + $0xa8] sm:$0xf] %v895
      %897 = vst.msk [vmem:[%s789 + $0xac] sm:$0xf] %vm796, %v722
      %v898 = vld [vmem:[%s789 + $0xb0] sm:$0x1]
      %v899 = vsel %vm799, %v723, %v898
      %900 = vst [vmem:[%s789 + $0xb0] sm:$0x1] %v899
      %v901 = vld [vmem:[%s789 + $0xb4] sm:$0xf]
      %v902 = vsel %vm792, %v730, %v901
      %903 = vst [vmem:[%s789 + $0xb4] sm:$0xf] %v902
      %904 = vst.msk [vmem:[%s789 + $0xb8] sm:$0xf] %vm796, %v739
      %v905 = vld [vmem:[%s789 + $0xbc] sm:$0x1]
      %v906 = vsel %vm799, %v740, %v905
      %907 = vst [vmem:[%s789 + $0xbc] sm:$0x1] %v906
      %v908 = vld [vmem:[%s316] sm:$0xff]
      %v909 = vld [vmem:[%s316 + $0x8] sm:$0xff]
      %v910 = vpack.c.bf16 %v909, %v908
      %v912 = vunpack.c.l.b16 %v910
      %v913 = vunpack.c.h.b16 %v910
      %v914 = vpack.c.b16 %v912, %v912
      %v915 = vpack.c.b16 %v913, %v913
      %v917 = vshrl.u32 %v914, 16
      %v919 = vrot.slane %v917, 7
      %v920 = vshll.u32 %v914, 16
      %v922 = vor.u32 %v919, %v920
      %v923 = vrot.slane %v919, 4
      %v925 = vshrl.u32 %v915, 16
      %v927 = vrot.slane %v925, 7
      %v928 = vshll.u32 %v915, 16
      %v930 = vor.u32 %v927, %v928
      %v931 = vsel %vm468, %v923, %v930
      %v932 = vrot.slane %v927, 4
      %v936 = vld [vmem:[#allocation2] sm:$0xf]
      %v937 = vsel %vm792, %v922, %v936
      %938 = vst [vmem:[#allocation2] sm:$0xf] %v937
      %939 = vst.msk [vmem:[#allocation2 + $0x4] sm:$0xf] %vm796, %v931
      %v940 = vld [vmem:[#allocation2 + $0x8] sm:$0x1]
      %v941 = vsel %vm799, %v932, %v940
      %942 = vst [vmem:[#allocation2 + $0x8] sm:$0x1] %v941
      %v943 = vld [vmem:[%s325] sm:$0xff]
      %v944 = vld [vmem:[%s325 + $0x8] sm:$0xff]
      %v945 = vpack.c.bf16 %v944, %v943
      %v947 = vunpack.c.l.b16 %v945
      %v948 = vunpack.c.h.b16 %v945
      %v949 = vpack.c.b16 %v947, %v947
      %v950 = vpack.c.b16 %v948, %v948
      %v952 = vshrl.u32 %v949, 16
      %v954 = vrot.slane %v952, 7
      %v955 = vshll.u32 %v949, 16
      %v957 = vor.u32 %v954, %v955
      %v958 = vrot.slane %v954, 4
      %v960 = vshrl.u32 %v950, 16
      %v962 = vrot.slane %v960, 7
      %v963 = vshll.u32 %v950, 16
      %v965 = vor.u32 %v962, %v963
      %v966 = vsel %vm468, %v958, %v965
      %v967 = vrot.slane %v962, 4
      %s971 = scalar_lea.vmem [#allocation2], 204
      %v972 = vld [vmem:[%s971] sm:$0xf]
      %v973 = vsel %vm792, %v957, %v972
      %974 = vst [vmem:[%s971] sm:$0xf] %v973
      %975 = vst.msk [vmem:[%s971 + $0x4] sm:$0xf] %vm796, %v966
      %v976 = vld [vmem:[%s971 + $0x8] sm:$0x1]
      %v977 = vsel %vm799, %v967, %v976
      %978 = vst [vmem:[%s971 + $0x8] sm:$0x1] %v977
      %v979 = vld [vmem:[#allocation2] sm:$0x1]
      %v980 = vsel %vm799, 0, %v979
      %981 = vst [vmem:[#allocation2] sm:$0x1] %v980
      %v982 = vld [vmem:[#allocation2 + $0xc] sm:$0x1]
      %v983 = vsel %vm799, 0, %v982
      %984 = vst [vmem:[#allocation2 + $0xc] sm:$0x1] %v983
      %v985 = vld [vmem:[#allocation2 + $0x18] sm:$0x1]
      %v986 = vsel %vm799, 0, %v985
      %987 = vst [vmem:[#allocation2 + $0x18] sm:$0x1] %v986
      %v988 = vld [vmem:[#allocation2 + $0x24] sm:$0x1]
      %v989 = vsel %vm799, 0, %v988
      %990 = vst [vmem:[#allocation2 + $0x24] sm:$0x1] %v989
      %v991 = vld [vmem:[#allocation2 + $0x30] sm:$0x1]
      %v992 = vsel %vm799, 0, %v991
      %993 = vst [vmem:[#allocation2 + $0x30] sm:$0x1] %v992
      %v994 = vld [vmem:[#allocation2 + $0x3c] sm:$0x1]
      %v995 = vsel %vm799, 0, %v994
      %996 = vst [vmem:[#allocation2 + $0x3c] sm:$0x1] %v995
      %v997 = vld [vmem:[#allocation2 + $0x48] sm:$0x1]
      %v998 = vsel %vm799, 0, %v997
      %999 = vst [vmem:[#allocation2 + $0x48] sm:$0x1] %v998
      %v1000 = vld [vmem:[#allocation2 + $0x54] sm:$0x1]
      %v1001 = vsel %vm799, 0, %v1000
      %1002 = vst [vmem:[#allocation2 + $0x54] sm:$0x1] %v1001
      %v1003 = vld [vmem:[#allocation2 + $0x60] sm:$0x1]
      %v1004 = vsel %vm799, 0, %v1003
      %1005 = vst [vmem:[#allocation2 + $0x60] sm:$0x1] %v1004
      %v1006 = vld [vmem:[#allocation2 + $0x6c] sm:$0x1]
      %v1007 = vsel %vm799, 0, %v1006
      %1008 = vst [vmem:[#allocation2 + $0x6c] sm:$0x1] %v1007
      %v1009 = vld [vmem:[#allocation2 + $0x78] sm:$0x1]
      %v1010 = vsel %vm799, 0, %v1009
      %1011 = vst [vmem:[#allocation2 + $0x78] sm:$0x1] %v1010
      %v1012 = vld [vmem:[#allocation2 + $0x84] sm:$0x1]
      %v1013 = vsel %vm799, 0, %v1012
      %1014 = vst [vmem:[#allocation2 + $0x84] sm:$0x1] %v1013
      %v1015 = vld [vmem:[#allocation2 + $0x90] sm:$0x1]
      %v1016 = vsel %vm799, 0, %v1015
      %1017 = vst [vmem:[#allocation2 + $0x90] sm:$0x1] %v1016
      %v1018 = vld [vmem:[#allocation2 + $0x9c] sm:$0x1]
      %v1019 = vsel %vm799, 0, %v1018
      %1020 = vst [vmem:[#allocation2 + $0x9c] sm:$0x1] %v1019
      %v1021 = vld [vmem:[#allocation2 + $0xa8] sm:$0x1]
      %v1022 = vsel %vm799, 0, %v1021
      %1023 = vst [vmem:[#allocation2 + $0xa8] sm:$0x1] %v1022
      %v1024 = vld [vmem:[#allocation2 + $0xb4] sm:$0x1]
      %v1025 = vsel %vm799, 0, %v1024
      %1026 = vst [vmem:[#allocation2 + $0xb4] sm:$0x1] %v1025
      %v1027 = vld [vmem:[#allocation2 + $0xc0] sm:$0x1]
      %v1028 = vsel %vm799, 0, %v1027
      %1029 = vst [vmem:[#allocation2 + $0xc0] sm:$0x1] %v1028
      %v1030 = vld [vmem:[#allocation2 + $0xcc] sm:$0x1]
      %v1031 = vsel %vm799, 0, %v1030
      %1032 = vst [vmem:[#allocation2 + $0xcc] sm:$0x1] %v1031
      %vm1033 = vmand %vm798, %vm791
      %v1034 = vld [vmem:[#allocation2 + $0x8] sm:$0x1]
      %v1035 = vsel %vm1033, 0, %v1034
      %1036 = vst [vmem:[#allocation2 + $0x8] sm:$0x1] %v1035
      %v1037 = vld [vmem:[#allocation2 + $0x14] sm:$0x1]
      %v1038 = vsel %vm1033, 0, %v1037
      %1039 = vst [vmem:[#allocation2 + $0x14] sm:$0x1] %v1038
      %v1040 = vld [vmem:[#allocation2 + $0x20] sm:$0x1]
      %v1041 = vsel %vm1033, 0, %v1040
      %1042 = vst [vmem:[#allocation2 + $0x20] sm:$0x1] %v1041
      %v1043 = vld [vmem:[#allocation2 + $0x2c] sm:$0x1]
      %v1044 = vsel %vm1033, 0, %v1043
      %1045 = vst [vmem:[#allocation2 + $0x2c] sm:$0x1] %v1044
      %v1046 = vld [vmem:[#allocation2 + $0x38] sm:$0x1]
      %v1047 = vsel %vm1033, 0, %v1046
      %1048 = vst [vmem:[#allocation2 + $0x38] sm:$0x1] %v1047
      %v1049 = vld [vmem:[#allocation2 + $0x44] sm:$0x1]
      %v1050 = vsel %vm1033, 0, %v1049
      %1051 = vst [vmem:[#allocation2 + $0x44] sm:$0x1] %v1050
      %v1052 = vld [vmem:[#allocation2 + $0x50] sm:$0x1]
      %v1053 = vsel %vm1033, 0, %v1052
      %1054 = vst [vmem:[#allocation2 + $0x50] sm:$0x1] %v1053
      %v1055 = vld [vmem:[#allocation2 + $0x5c] sm:$0x1]
      %v1056 = vsel %vm1033, 0, %v1055
      %1057 = vst [vmem:[#allocation2 + $0x5c] sm:$0x1] %v1056
      %v1058 = vld [vmem:[#allocation2 + $0x68] sm:$0x1]
      %v1059 = vsel %vm1033, 0, %v1058
      %1060 = vst [vmem:[#allocation2 + $0x68] sm:$0x1] %v1059
      %v1061 = vld [vmem:[#allocation2 + $0x74] sm:$0x1]
      %v1062 = vsel %vm1033, 0, %v1061
      %1063 = vst [vmem:[#allocation2 + $0x74] sm:$0x1] %v1062
      %v1064 = vld [vmem:[#allocation2 + $0x80] sm:$0x1]
      %v1065 = vsel %vm1033, 0, %v1064
      %1066 = vst [vmem:[#allocation2 + $0x80] sm:$0x1] %v1065
      %v1067 = vld [vmem:[#allocation2 + $0x8c] sm:$0x1]
      %v1068 = vsel %vm1033, 0, %v1067
      %1069 = vst [vmem:[#allocation2 + $0x8c] sm:$0x1] %v1068
      %v1070 = vld [vmem:[#allocation2 + $0x98] sm:$0x1]
      %v1071 = vsel %vm1033, 0, %v1070
      %1072 = vst [vmem:[#allocation2 + $0x98] sm:$0x1] %v1071
      %v1073 = vld [vmem:[#allocation2 + $0xa4] sm:$0x1]
      %v1074 = vsel %vm1033, 0, %v1073
      %1075 = vst [vmem:[#allocation2 + $0xa4] sm:$0x1] %v1074
      %v1076 = vld [vmem:[#allocation2 + $0xb0] sm:$0x1]
      %v1077 = vsel %vm1033, 0, %v1076
      %1078 = vst [vmem:[#allocation2 + $0xb0] sm:$0x1] %v1077
      %v1079 = vld [vmem:[#allocation2 + $0xbc] sm:$0x1]
      %v1080 = vsel %vm1033, 0, %v1079
      %1081 = vst [vmem:[#allocation2 + $0xbc] sm:$0x1] %v1080
      %v1082 = vld [vmem:[#allocation2 + $0xc8] sm:$0x1]
      %v1083 = vsel %vm1033, 0, %v1082
      %1084 = vst [vmem:[#allocation2 + $0xc8] sm:$0x1] %v1083
      %v1085 = vld [vmem:[#allocation2 + $0xd4] sm:$0x1]
      %v1086 = vsel %vm1033, 0, %v1085
      %1087 = vst [vmem:[#allocation2 + $0xd4] sm:$0x1] %v1086
      %v1088 = vld [vmem:[#allocation2] sm:$0xf]
      %v1089 = vld [vmem:[#allocation2 + $0x4] sm:$0xf]
      %v1090 = vld [vmem:[#allocation2 + $0xc] sm:$0xf]
      %v1091 = vld [vmem:[#allocation2 + $0x10] sm:$0xf]
      %v1092 = vld [vmem:[#allocation2 + $0x18] sm:$0xf]
      %v1093 = vld [vmem:[#allocation2 + $0x1c] sm:$0xf]
      %v1094 = vld [vmem:[#allocation2 + $0x24] sm:$0xf]
      %v1095 = vld [vmem:[#allocation2 + $0x28] sm:$0xf]
      %v1096 = vld [vmem:[#allocation2 + $0x30] sm:$0xf]
      %v1097 = vld [vmem:[#allocation2 + $0x34] sm:$0xf]
      %v1098 = vld [vmem:[#allocation2 + $0x3c] sm:$0xf]
      %v1099 = vld [vmem:[#allocation2 + $0x40] sm:$0xf]
      %v1100 = vld [vmem:[#allocation2 + $0x48] sm:$0xf]
      %v1101 = vld [vmem:[#allocation2 + $0x4c] sm:$0xf]
      %v1102 = vld [vmem:[#allocation2 + $0x54] sm:$0xf]
      %v1103 = vld [vmem:[#allocation2 + $0x58] sm:$0xf]
      %v1104 = vld [vmem:[#allocation2 + $0x60] sm:$0xf]
      %v1105 = vld [vmem:[#allocation2 + $0x64] sm:$0xf]
      %v1106 = vld [vmem:[#allocation2 + $0x6c] sm:$0xf]
      %v1107 = vld [vmem:[#allocation2 + $0x70] sm:$0xf]
      %v1108 = vld [vmem:[#allocation2 + $0x78] sm:$0xf]
      %v1109 = vld [vmem:[#allocation2 + $0x7c] sm:$0xf]
      %v1110 = vld [vmem:[#allocation2 + $0x84] sm:$0xf]
      %v1111 = vld [vmem:[#allocation2 + $0x88] sm:$0xf]
      %v1112 = vld [vmem:[#allocation2 + $0x90] sm:$0xf]
      %v1113 = vld [vmem:[#allocation2 + $0x94] sm:$0xf]
      %v1114 = vld [vmem:[#allocation2 + $0x9c] sm:$0xf]
      %v1115 = vld [vmem:[#allocation2 + $0xa0] sm:$0xf]
      %v1116 = vld [vmem:[#allocation2 + $0xa8] sm:$0xf]
      %v1117 = vld [vmem:[#allocation2 + $0xac] sm:$0xf]
      %v1118 = vld [vmem:[#allocation2 + $0xb4] sm:$0xf]
      %v1119 = vld [vmem:[#allocation2 + $0xb8] sm:$0xf]
      %v1120 = vld [vmem:[%s3] sm:$0x3]
      %v1121 = vld [vmem:[#allocation2 + $0x8] sm:$0x1]
      %v1122 = vld [vmem:[#allocation2 + $0x14] sm:$0x1]
      %v1123 = vld [vmem:[#allocation2 + $0x20] sm:$0x1]
      %v1124 = vld [vmem:[#allocation2 + $0x2c] sm:$0x1]
      %v1125 = vld [vmem:[#allocation2 + $0x38] sm:$0x1]
      %v1126 = vld [vmem:[#allocation2 + $0x44] sm:$0x1]
      %v1127 = vld [vmem:[#allocation2 + $0x50] sm:$0x1]
      %v1128 = vld [vmem:[#allocation2 + $0x5c] sm:$0x1]
      %v1129 = vld [vmem:[#allocation2 + $0x68] sm:$0x1]
      %v1130 = vld [vmem:[#allocation2 + $0x74] sm:$0x1]
      %v1131 = vld [vmem:[#allocation2 + $0x80] sm:$0x1]
      %v1132 = vld [vmem:[#allocation2 + $0x8c] sm:$0x1]
      %v1133 = vld [vmem:[#allocation2 + $0x98] sm:$0x1]
      %v1134 = vld [vmem:[#allocation2 + $0xa4] sm:$0x1]
      %v1135 = vld [vmem:[#allocation2 + $0xb0] sm:$0x1]
      %v1136 = vld [vmem:[#allocation2 + $0xbc] sm:$0x1]
      %vm1137 = vsmask.f32 3328
      %vm1138 = vsmask.f32 7440
      %vm1139 = vmor %vm1137, %vm1138
      %v1141 = vshrl.u32 %v1088, 16
      %v1143 = vrot.slane %v1141, 4
      %v1144 = vshll.u32 %v1088, 16
      %v1146 = vrot.slane %v1144, 5
      %v1147 = vor.u32 %v1143, %v1146
      %v1148 = vrot.slane %v1147, 4
      %v1150 = vshll.u32 %v1089, 16
      %v1152 = vrot.slane %v1150, 5
      %v1153 = vsel %vm1139, %v1148, %v1152
      %v1154 = vshrl.u32 %v1089, 16
      %v1156 = vrot.slane %v1154, 4
      %v1157 = vor.u32 %v1156, %v1152
      %v1158 = vrot.slane %v1157, 4
      %v1160 = vshll.u32 %v1121, 16
      %v1162 = vrot.slane %v1160, 5
      %v1163 = vsel %vm1139, %v1158, %v1162
      %v1165 = vshrl.u32 %v1090, 16
      %v1167 = vrot.slane %v1165, 4
      %v1168 = vshll.u32 %v1090, 16
      %v1170 = vrot.slane %v1168, 5
      %v1171 = vor.u32 %v1167, %v1170
      %v1172 = vrot.slane %v1171, 4
      %v1174 = vshll.u32 %v1091, 16
      %v1176 = vrot.slane %v1174, 5
      %v1177 = vsel %vm1139, %v1172, %v1176
      %v1178 = vshrl.u32 %v1091, 16
      %v1180 = vrot.slane %v1178, 4
      %v1181 = vor.u32 %v1180, %v1176
      %v1182 = vrot.slane %v1181, 4
      %v1184 = vshll.u32 %v1122, 16
      %v1186 = vrot.slane %v1184, 5
      %v1187 = vsel %vm1139, %v1182, %v1186
      %v1189 = vshrl.u32 %v1092, 16
      %v1191 = vrot.slane %v1189, 4
      %v1192 = vshll.u32 %v1092, 16
      %v1194 = vrot.slane %v1192, 5
      %v1195 = vor.u32 %v1191, %v1194
      %v1196 = vrot.slane %v1195, 4
      %v1198 = vshll.u32 %v1093, 16
      %v1200 = vrot.slane %v1198, 5
      %v1201 = vsel %vm1139, %v1196, %v1200
      %v1202 = vshrl.u32 %v1093, 16
      %v1204 = vrot.slane %v1202, 4
      %v1205 = vor.u32 %v1204, %v1200
      %v1206 = vrot.slane %v1205, 4
      %v1208 = vshll.u32 %v1123, 16
      %v1210 = vrot.slane %v1208, 5
      %v1211 = vsel %vm1139, %v1206, %v1210
      %v1213 = vshrl.u32 %v1094, 16
      %v1215 = vrot.slane %v1213, 4
      %v1216 = vshll.u32 %v1094, 16
      %v1218 = vrot.slane %v1216, 5
      %v1219 = vor.u32 %v1215, %v1218
      %v1220 = vrot.slane %v1219, 4
      %v1222 = vshll.u32 %v1095, 16
      %v1224 = vrot.slane %v1222, 5
      %v1225 = vsel %vm1139, %v1220, %v1224
      %v1226 = vshrl.u32 %v1095, 16
      %v1228 = vrot.slane %v1226, 4
      %v1229 = vor.u32 %v1228, %v1224
      %v1230 = vrot.slane %v1229, 4
      %v1232 = vshll.u32 %v1124, 16
      %v1234 = vrot.slane %v1232, 5
      %v1235 = vsel %vm1139, %v1230, %v1234
      %v1237 = vshrl.u32 %v1096, 16
      %v1239 = vrot.slane %v1237, 4
      %v1240 = vshll.u32 %v1096, 16
      %v1242 = vrot.slane %v1240, 5
      %v1243 = vor.u32 %v1239, %v1242
      %v1244 = vrot.slane %v1243, 4
      %v1246 = vshll.u32 %v1097, 16
      %v1248 = vrot.slane %v1246, 5
      %v1249 = vsel %vm1139, %v1244, %v1248
      %v1250 = vshrl.u32 %v1097, 16
      %v1252 = vrot.slane %v1250, 4
      %v1253 = vor.u32 %v1252, %v1248
      %v1254 = vrot.slane %v1253, 4
      %v1256 = vshll.u32 %v1125, 16
      %v1258 = vrot.slane %v1256, 5
      %v1259 = vsel %vm1139, %v1254, %v1258
      %v1261 = vshrl.u32 %v1098, 16
      %v1263 = vrot.slane %v1261, 4
      %v1264 = vshll.u32 %v1098, 16
      %v1266 = vrot.slane %v1264, 5
      %v1267 = vor.u32 %v1263, %v1266
      %v1268 = vrot.slane %v1267, 4
      %v1270 = vshll.u32 %v1099, 16
      %v1272 = vrot.slane %v1270, 5
      %v1273 = vsel %vm1139, %v1268, %v1272
      %v1274 = vshrl.u32 %v1099, 16
      %v1276 = vrot.slane %v1274, 4
      %v1277 = vor.u32 %v1276, %v1272
      %v1278 = vrot.slane %v1277, 4
      %v1280 = vshll.u32 %v1126, 16
      %v1282 = vrot.slane %v1280, 5
      %v1283 = vsel %vm1139, %v1278, %v1282
      %v1285 = vshrl.u32 %v1100, 16
      %v1287 = vrot.slane %v1285, 4
      %v1288 = vshll.u32 %v1100, 16
      %v1290 = vrot.slane %v1288, 5
      %v1291 = vor.u32 %v1287, %v1290
      %v1292 = vrot.slane %v1291, 4
      %v1294 = vshll.u32 %v1101, 16
      %v1296 = vrot.slane %v1294, 5
      %v1297 = vsel %vm1139, %v1292, %v1296
      %v1298 = vshrl.u32 %v1101, 16
      %v1300 = vrot.slane %v1298, 4
      %v1301 = vor.u32 %v1300, %v1296
      %v1302 = vrot.slane %v1301, 4
      %v1304 = vshll.u32 %v1127, 16
      %v1306 = vrot.slane %v1304, 5
      %v1307 = vsel %vm1139, %v1302, %v1306
      %v1309 = vshrl.u32 %v1102, 16
      %v1311 = vrot.slane %v1309, 4
      %v1312 = vshll.u32 %v1102, 16
      %v1314 = vrot.slane %v1312, 5
      %v1315 = vor.u32 %v1311, %v1314
      %v1316 = vrot.slane %v1315, 4
      %v1318 = vshll.u32 %v1103, 16
      %v1320 = vrot.slane %v1318, 5
      %v1321 = vsel %vm1139, %v1316, %v1320
      %v1322 = vshrl.u32 %v1103, 16
      %v1324 = vrot.slane %v1322, 4
      %v1325 = vor.u32 %v1324, %v1320
      %v1326 = vrot.slane %v1325, 4
      %v1328 = vshll.u32 %v1128, 16
      %v1330 = vrot.slane %v1328, 5
      %v1331 = vsel %vm1139, %v1326, %v1330
      %v1333 = vshrl.u32 %v1104, 16
      %v1335 = vrot.slane %v1333, 4
      %v1336 = vshll.u32 %v1104, 16
      %v1338 = vrot.slane %v1336, 5
      %v1339 = vor.u32 %v1335, %v1338
      %v1340 = vrot.slane %v1339, 4
      %v1342 = vshll.u32 %v1105, 16
      %v1344 = vrot.slane %v1342, 5
      %v1345 = vsel %vm1139, %v1340, %v1344
      %v1346 = vshrl.u32 %v1105, 16
      %v1348 = vrot.slane %v1346, 4
      %v1349 = vor.u32 %v1348, %v1344
      %v1350 = vrot.slane %v1349, 4
      %v1352 = vshll.u32 %v1129, 16
      %v1354 = vrot.slane %v1352, 5
      %v1355 = vsel %vm1139, %v1350, %v1354
      %v1357 = vshrl.u32 %v1106, 16
      %v1359 = vrot.slane %v1357, 4
      %v1360 = vshll.u32 %v1106, 16
      %v1362 = vrot.slane %v1360, 5
      %v1363 = vor.u32 %v1359, %v1362
      %v1364 = vrot.slane %v1363, 4
      %v1366 = vshll.u32 %v1107, 16
      %v1368 = vrot.slane %v1366, 5
      %v1369 = vsel %vm1139, %v1364, %v1368
      %v1370 = vshrl.u32 %v1107, 16
      %v1372 = vrot.slane %v1370, 4
      %v1373 = vor.u32 %v1372, %v1368
      %v1374 = vrot.slane %v1373, 4
      %v1376 = vshll.u32 %v1130, 16
      %v1378 = vrot.slane %v1376, 5
      %v1379 = vsel %vm1139, %v1374, %v1378
      %v1381 = vshrl.u32 %v1108, 16
      %v1383 = vrot.slane %v1381, 4
      %v1384 = vshll.u32 %v1108, 16
      %v1386 = vrot.slane %v1384, 5
      %v1387 = vor.u32 %v1383, %v1386
      %v1388 = vrot.slane %v1387, 4
      %v1390 = vshll.u32 %v1109, 16
      %v1392 = vrot.slane %v1390, 5
      %v1393 = vsel %vm1139, %v1388, %v1392
      %v1394 = vshrl.u32 %v1109, 16
      %v1396 = vrot.slane %v1394, 4
      %v1397 = vor.u32 %v1396, %v1392
      %v1398 = vrot.slane %v1397, 4
      %v1400 = vshll.u32 %v1131, 16
      %v1402 = vrot.slane %v1400, 5
      %v1403 = vsel %vm1139, %v1398, %v1402
      %v1405 = vshrl.u32 %v1110, 16
      %v1407 = vrot.slane %v1405, 4
      %v1408 = vshll.u32 %v1110, 16
      %v1410 = vrot.slane %v1408, 5
      %v1411 = vor.u32 %v1407, %v1410
      %v1412 = vrot.slane %v1411, 4
      %v1414 = vshll.u32 %v1111, 16
      %v1416 = vrot.slane %v1414, 5
      %v1417 = vsel %vm1139, %v1412, %v1416
      %v1418 = vshrl.u32 %v1111, 16
      %v1420 = vrot.slane %v1418, 4
      %v1421 = vor.u32 %v1420, %v1416
      %v1422 = vrot.slane %v1421, 4
      %v1424 = vshll.u32 %v1132, 16
      %v1426 = vrot.slane %v1424, 5
      %v1427 = vsel %vm1139, %v1422, %v1426
      %v1429 = vshrl.u32 %v1112, 16
      %v1431 = vrot.slane %v1429, 4
      %v1432 = vshll.u32 %v1112, 16
      %v1434 = vrot.slane %v1432, 5
      %v1435 = vor.u32 %v1431, %v1434
      %v1436 = vrot.slane %v1435, 4
      %v1438 = vshll.u32 %v1113, 16
      %v1440 = vrot.slane %v1438, 5
      %v1441 = vsel %vm1139, %v1436, %v1440
      %v1442 = vshrl.u32 %v1113, 16
      %v1444 = vrot.slane %v1442, 4
      %v1445 = vor.u32 %v1444, %v1440
      %v1446 = vrot.slane %v1445, 4
      %v1448 = vshll.u32 %v1133, 16
      %v1450 = vrot.slane %v1448, 5
      %v1451 = vsel %vm1139, %v1446, %v1450
      %v1453 = vshrl.u32 %v1114, 16
      %v1455 = vrot.slane %v1453, 4
      %v1456 = vshll.u32 %v1114, 16
      %v1458 = vrot.slane %v1456, 5
      %v1459 = vor.u32 %v1455, %v1458
      %v1460 = vrot.slane %v1459, 4
      %v1462 = vshll.u32 %v1115, 16
      %v1464 = vrot.slane %v1462, 5
      %v1465 = vsel %vm1139, %v1460, %v1464
      %v1466 = vshrl.u32 %v1115, 16
      %v1468 = vrot.slane %v1466, 4
      %v1469 = vor.u32 %v1468, %v1464
      %v1470 = vrot.slane %v1469, 4
      %v1472 = vshll.u32 %v1134, 16
      %v1474 = vrot.slane %v1472, 5
      %v1475 = vsel %vm1139, %v1470, %v1474
      %v1477 = vshrl.u32 %v1116, 16
      %v1479 = vrot.slane %v1477, 4
      %v1480 = vshll.u32 %v1116, 16
      %v1482 = vrot.slane %v1480, 5
      %v1483 = vor.u32 %v1479, %v1482
      %v1484 = vrot.slane %v1483, 4
      %v1486 = vshll.u32 %v1117, 16
      %v1488 = vrot.slane %v1486, 5
      %v1489 = vsel %vm1139, %v1484, %v1488
      %v1490 = vshrl.u32 %v1117, 16
      %v1492 = vrot.slane %v1490, 4
      %v1493 = vor.u32 %v1492, %v1488
      %v1494 = vrot.slane %v1493, 4
      %v1496 = vshll.u32 %v1135, 16
      %v1498 = vrot.slane %v1496, 5
      %v1499 = vsel %vm1139, %v1494, %v1498
      %v1501 = vshrl.u32 %v1118, 16
      %v1503 = vrot.slane %v1501, 4
      %v1504 = vshll.u32 %v1118, 16
      %v1506 = vrot.slane %v1504, 5
      %v1507 = vor.u32 %v1503, %v1506
      %v1508 = vrot.slane %v1507, 4
      %v1510 = vshll.u32 %v1119, 16
      %v1512 = vrot.slane %v1510, 5
      %v1513 = vsel %vm1139, %v1508, %v1512
      %v1514 = vshrl.u32 %v1119, 16
      %v1516 = vrot.slane %v1514, 4
      %v1517 = vor.u32 %v1516, %v1512
      %v1518 = vrot.slane %v1517, 4
      %v1520 = vshll.u32 %v1136, 16
      %v1522 = vrot.slane %v1520, 5
      %v1523 = vsel %vm1139, %v1518, %v1522
      %s1524 = scalar_lea.vmem %s3, 2
      %v1525 = vld [vmem:[%s1524] sm:$0x3]
      %v1526 = vunpack.c.l.b16 %v1153
      %v1527 = vunpack.c.l.b16 %v1163
      %v1528 = vunpack.c.l.b16 %v1177
      %v1529 = vunpack.c.l.b16 %v1187
      %v1530 = vunpack.c.l.b16 %v1201
      %v1531 = vunpack.c.l.b16 %v1211
      %v1532 = vunpack.c.l.b16 %v1225
      %v1533 = vunpack.c.l.b16 %v1235
      %v1534 = vunpack.c.l.b16 %v1249
      %v1535 = vunpack.c.l.b16 %v1259
      %v1536 = vunpack.c.l.b16 %v1273
      %v1537 = vunpack.c.l.b16 %v1283
      %v1538 = vunpack.c.l.b16 %v1297
      %v1539 = vunpack.c.l.b16 %v1307
      %v1540 = vunpack.c.l.b16 %v1321
      %v1541 = vunpack.c.l.b16 %v1331
      %v1542 = vunpack.c.l.b16 %v1345
      %v1543 = vunpack.c.l.b16 %v1355
      %v1544 = vunpack.c.l.b16 %v1369
      %v1545 = vunpack.c.l.b16 %v1379
      %v1546 = vunpack.c.l.b16 %v1393
      %v1547 = vunpack.c.l.b16 %v1403
      %v1548 = vunpack.c.l.b16 %v1417
      %v1549 = vunpack.c.l.b16 %v1427
      %v1550 = vunpack.c.l.b16 %v1441
      %v1551 = vunpack.c.l.b16 %v1451
      %v1552 = vunpack.c.l.b16 %v1465
      %v1553 = vunpack.c.l.b16 %v1475
      %v1554 = vunpack.c.l.b16 %v1489
      %v1555 = vunpack.c.l.b16 %v1499
      %v1556 = vunpack.c.l.b16 %v1513
      %v1557 = vunpack.c.l.b16 %v1523
      %v1558 = vpack.c.b16 %v1527, %v1526
      %v1559 = vpack.c.b16 %v1529, %v1528
      %v1560 = vpack.c.b16 %v1531, %v1530
      %v1561 = vpack.c.b16 %v1533, %v1532
      %v1562 = vpack.c.b16 %v1535, %v1534
      %v1563 = vpack.c.b16 %v1537, %v1536
      %v1564 = vpack.c.b16 %v1539, %v1538
      %v1565 = vpack.c.b16 %v1541, %v1540
      %v1566 = vpack.c.b16 %v1543, %v1542
      %v1567 = vpack.c.b16 %v1545, %v1544
      %v1568 = vpack.c.b16 %v1547, %v1546
      %v1569 = vpack.c.b16 %v1549, %v1548
      %v1570 = vpack.c.b16 %v1551, %v1550
      %v1571 = vpack.c.b16 %v1553, %v1552
      %v1572 = vpack.c.b16 %v1555, %v1554
      %v1573 = vpack.c.b16 %v1557, %v1556
      %vm1574 = vcmask 31744
      %v1576 = vsel %vm1574, %v1558, 0
      %v1579 = vsel %vm1574, %v1559, 0
      %v1582 = vsel %vm1574, %v1560, 0
      %v1585 = vsel %vm1574, %v1561, 0
      %v1588 = vsel %vm1574, %v1562, 0
      %v1591 = vsel %vm1574, %v1563, 0
      %v1594 = vsel %vm1574, %v1564, 0
      %v1597 = vsel %vm1574, %v1565, 0
      %v1600 = vsel %vm1574, %v1566, 0
      %v1603 = vsel %vm1574, %v1567, 0
      %v1606 = vsel %vm1574, %v1568, 0
      %v1609 = vsel %vm1574, %v1569, 0
      %v1612 = vsel %vm1574, %v1570, 0
      %v1615 = vsel %vm1574, %v1571, 0
      %v1618 = vsel %vm1574, %v1572, 0
      %v1621 = vsel %vm1574, %v1573, 0
      %vm1623 = vcmask 1041408
      %v1625 = vsel %vm1623, %v1525, 0
      %1627 = vmatprep.subr.bf16.mxu0 0
      %1628 = vmatpush1.bf16.msra.mxu0 %v1625
      %1629 = vmatprep.subr.bf16.mxu0 0
      %1630 = vmatpush1.bf16.msra.mxu0 0
      %1631 = vmatprep.subr.bf16.mxu0 0
      %1632 = vmatpush1.bf16.msra.mxu0 0
      %1633 = vmatprep.subr.bf16.mxu0 0
      %1634 = vmatpush1.bf16.msra.mxu0 0
      %1635 = vmatprep.subr.bf16.mxu0 0
      %1636 = vmatpush1.bf16.msra.mxu0 0
      %1637 = vmatprep.subr.bf16.mxu0 0
      %1638 = vmatpush1.bf16.msra.mxu0 0
      %1639 = vmatprep.subr.bf16.mxu0 0
      %1640 = vmatpush1.bf16.msra.mxu0 0
      %1641 = vmatprep.subr.bf16.mxu0 0
      %1642 = vmatpush1.bf16.msra.mxu0 0
      %1643 = vmatprep.subr.bf16.mxu0 0
      %1644 = vmatpush1.bf16.msra.mxu0 0
      %1645 = vmatprep.subr.bf16.mxu0 0
      %1646 = vmatpush1.bf16.msra.mxu0 0
      %1647 = vmatprep.subr.bf16.mxu0 0
      %1648 = vmatpush1.bf16.msra.mxu0 0
      %1649 = vmatprep.subr.bf16.mxu0 0
      %1650 = vmatpush1.bf16.msra.mxu0 0
      %1651 = vmatprep.subr.bf16.mxu0 0
      %1652 = vmatpush1.bf16.msra.mxu0 0
      %1653 = vmatprep.subr.bf16.mxu0 0
      %1654 = vmatpush1.bf16.msra.mxu0 0
      %1655 = vmatprep.subr.bf16.mxu0 0
      %1656 = vmatpush1.bf16.msra.mxu0 0
      %1657 = vmatprep.subr.bf16.mxu0 0
      %1658 = vmatpush1.bf16.msra.mxu0 0
      %1659 = vmatprep.mubr.bf16.mxu0 0
      %1660 = vmatmul.mubr.bf16.gmra.mrb[0].mxu0 %v1576
      %v1661 = vpop.f32.mrb[0].mxu0
      %v1662 = vadd.f32 0.0, %v1661
      %v1663 = vpop.f32.mrb[0].mxu0
      %v1664 = vpop.f32.mrb[0].mxu0
      %v1665 = vadd.f32 0.0, %v1664
      %v1666 = vpop.f32.mrb[0].mxu0
      %1667 = vmatprep.mubr.bf16.mxu0 0
      %1668 = vmatmul.mubr.bf16.gmra.mrb[0].mxu0 %v1579
      %v1669 = vpop.f32.mrb[0].mxu0
      %v1670 = vadd.f32 0.0, %v1669
      %v1671 = vpop.f32.mrb[0].mxu0
      %v1672 = vpop.f32.mrb[0].mxu0
      %v1673 = vadd.f32 0.0, %v1672
      %v1674 = vpop.f32.mrb[0].mxu0
      %1675 = vmatprep.mubr.bf16.mxu0 0
      %1676 = vmatmul.mubr.bf16.gmra.mrb[0].mxu0 %v1582
      %v1677 = vpop.f32.mrb[0].mxu0
      %v1678 = vadd.f32 0.0, %v1677
      %v1679 = vpop.f32.mrb[0].mxu0
      %v1680 = vpop.f32.mrb[0].mxu0
      %v1681 = vadd.f32 0.0, %v1680
      %v1682 = vpop.f32.mrb[0].mxu0
      %1683 = vmatprep.mubr.bf16.mxu0 0
      %1684 = vmatmul.mubr.bf16.gmra.mrb[0].mxu0 %v1585
      %v1685 = vpop.f32.mrb[0].mxu0
      %v1686 = vadd.f32 0.0, %v1685
      %v1687 = vpop.f32.mrb[0].mxu0
      %v1688 = vpop.f32.mrb[0].mxu0
      %v1689 = vadd.f32 0.0, %v1688
      %v1690 = vpop.f32.mrb[0].mxu0
      %1691 = vmatprep.mubr.bf16.mxu0 0
      %1692 = vmatmul.mubr.bf16.gmra.mrb[0].mxu0 %v1588
      %v1693 = vpop.f32.mrb[0].mxu0
      %v1694 = vadd.f32 0.0, %v1693
      %v1695 = vpop.f32.mrb[0].mxu0
      %v1696 = vpop.f32.mrb[0].mxu0
      %v1697 = vadd.f32 0.0, %v1696
      %v1698 = vpop.f32.mrb[0].mxu0
      %1699 = vmatprep.mubr.bf16.mxu0 0
      %1700 = vmatmul.mubr.bf16.gmra.mrb[0].mxu0 %v1591
      %v1701 = vpop.f32.mrb[0].mxu0
      %v1702 = vadd.f32 0.0, %v1701
      %v1703 = vpop.f32.mrb[0].mxu0
      %v1704 = vpop.f32.mrb[0].mxu0
      %v1705 = vadd.f32 0.0, %v1704
      %v1706 = vpop.f32.mrb[0].mxu0
      %1707 = vmatprep.mubr.bf16.mxu0 0
      %1708 = vmatmul.mubr.bf16.gmra.mrb[0].mxu0 %v1594
      %v1709 = vpop.f32.mrb[0].mxu0
      %v1710 = vadd.f32 0.0, %v1709
      %v1711 = vpop.f32.mrb[0].mxu0
      %v1712 = vpop.f32.mrb[0].mxu0
      %v1713 = vadd.f32 0.0, %v1712
      %v1714 = vpop.f32.mrb[0].mxu0
      %1715 = vmatprep.mubr.bf16.mxu0 0
      %1716 = vmatmul.mubr.bf16.gmra.mrb[0].mxu0 %v1597
      %v1717 = vpop.f32.mrb[0].mxu0
      %v1718 = vadd.f32 0.0, %v1717
      %v1719 = vpop.f32.mrb[0].mxu0
      %v1720 = vpop.f32.mrb[0].mxu0
      %v1721 = vadd.f32 0.0, %v1720
      %v1722 = vpop.f32.mrb[0].mxu0
      %1723 = vmatprep.mubr.bf16.mxu0 0
      %1724 = vmatmul.mubr.bf16.gmra.mrb[0].mxu0 %v1600
      %v1725 = vpop.f32.mrb[0].mxu0
      %v1726 = vadd.f32 0.0, %v1725
      %v1727 = vpop.f32.mrb[0].mxu0
      %v1728 = vpop.f32.mrb[0].mxu0
      %v1729 = vadd.f32 0.0, %v1728
      %v1730 = vpop.f32.mrb[0].mxu0
      %1731 = vmatprep.mubr.bf16.mxu0 0
      %1732 = vmatmul.mubr.bf16.gmra.mrb[0].mxu0 %v1603
      %v1733 = vpop.f32.mrb[0].mxu0
      %v1734 = vadd.f32 0.0, %v1733
      %v1735 = vpop.f32.mrb[0].mxu0
      %v1736 = vpop.f32.mrb[0].mxu0
      %v1737 = vadd.f32 0.0, %v1736
      %v1738 = vpop.f32.mrb[0].mxu0
      %1739 = vmatprep.mubr.bf16.mxu0 0
      %1740 = vmatmul.mubr.bf16.gmra.mrb[0].mxu0 %v1606
      %v1741 = vpop.f32.mrb[0].mxu0
      %v1742 = vadd.f32 0.0, %v1741
      %v1743 = vpop.f32.mrb[0].mxu0
      %v1744 = vpop.f32.mrb[0].mxu0
      %v1745 = vadd.f32 0.0, %v1744
      %v1746 = vpop.f32.mrb[0].mxu0
      %1747 = vmatprep.mubr.bf16.mxu0 0
      %1748 = vmatmul.mubr.bf16.gmra.mrb[0].mxu0 %v1609
      %v1749 = vpop.f32.mrb[0].mxu0
      %v1750 = vadd.f32 0.0, %v1749
      %v1751 = vpop.f32.mrb[0].mxu0
      %v1752 = vpop.f32.mrb[0].mxu0
      %v1753 = vadd.f32 0.0, %v1752
      %v1754 = vpop.f32.mrb[0].mxu0
      %1755 = vmatprep.mubr.bf16.mxu0 0
      %1756 = vmatmul.mubr.bf16.gmra.mrb[0].mxu0 %v1612
      %v1757 = vpop.f32.mrb[0].mxu0
      %v1758 = vadd.f32 0.0, %v1757
      %v1759 = vpop.f32.mrb[0].mxu0
      %v1760 = vpop.f32.mrb[0].mxu0
      %v1761 = vadd.f32 0.0, %v1760
      %v1762 = vpop.f32.mrb[0].mxu0
      %1763 = vmatprep.mubr.bf16.mxu0 0
      %1764 = vmatmul.mubr.bf16.gmra.mrb[0].mxu0 %v1615
      %v1765 = vpop.f32.mrb[0].mxu0
      %v1766 = vadd.f32 0.0, %v1765
      %v1767 = vpop.f32.mrb[0].mxu0
      %v1768 = vpop.f32.mrb[0].mxu0
      %v1769 = vadd.f32 0.0, %v1768
      %v1770 = vpop.f32.mrb[0].mxu0
      %1771 = vmatprep.mubr.bf16.mxu0 0
      %1772 = vmatmul.mubr.bf16.gmra.mrb[0].mxu0 %v1618
      %v1773 = vpop.f32.mrb[0].mxu0
      %v1774 = vadd.f32 0.0, %v1773
      %v1775 = vpop.f32.mrb[0].mxu0
      %v1776 = vpop.f32.mrb[0].mxu0
      %v1777 = vadd.f32 0.0, %v1776
      %v1778 = vpop.f32.mrb[0].mxu0
      %1779 = vmatprep.mubr.bf16.mxu0 0
      %1780 = vmatmul.mubr.bf16.gmra.mrb[0].mxu0 %v1621
      %v1781 = vpop.f32.mrb[0].mxu0
      %v1782 = vadd.f32 0.0, %v1781
      %v1783 = vpop.f32.mrb[0].mxu0
      %v1784 = vpop.f32.mrb[0].mxu0
      %v1785 = vadd.f32 0.0, %v1784
      %v1786 = vpop.f32.mrb[0].mxu0
      %1787 = vdwg.mxu0
      %v1820 = vunpack.c.l.b16 %v1088
      %v1821 = vunpack.c.l.b16 %v1089
      %v1822 = vunpack.c.l.b16 %v1090
      %v1823 = vunpack.c.l.b16 %v1091
      %v1824 = vunpack.c.l.b16 %v1092
      %v1825 = vunpack.c.l.b16 %v1093
      %v1826 = vunpack.c.l.b16 %v1094
      %v1827 = vunpack.c.l.b16 %v1095
      %v1828 = vunpack.c.l.b16 %v1096
      %v1829 = vunpack.c.l.b16 %v1097
      %v1830 = vunpack.c.l.b16 %v1098
      %v1831 = vunpack.c.l.b16 %v1099
      %v1832 = vunpack.c.l.b16 %v1100
      %v1833 = vunpack.c.l.b16 %v1101
      %v1834 = vunpack.c.l.b16 %v1102
      %v1835 = vunpack.c.l.b16 %v1103
      %v1836 = vunpack.c.l.b16 %v1104
      %v1837 = vunpack.c.l.b16 %v1105
      %v1838 = vunpack.c.l.b16 %v1106
      %v1839 = vunpack.c.l.b16 %v1107
      %v1840 = vunpack.c.l.b16 %v1108
      %v1841 = vunpack.c.l.b16 %v1109
      %v1842 = vunpack.c.l.b16 %v1110
      %v1843 = vunpack.c.l.b16 %v1111
      %v1844 = vunpack.c.l.b16 %v1112
      %v1845 = vunpack.c.l.b16 %v1113
      %v1846 = vunpack.c.l.b16 %v1114
      %v1847 = vunpack.c.l.b16 %v1115
      %v1848 = vunpack.c.l.b16 %v1116
      %v1849 = vunpack.c.l.b16 %v1117
      %v1850 = vunpack.c.l.b16 %v1118
      %v1851 = vunpack.c.l.b16 %v1119
      %v1852 = vpack.c.b16 %v1821, %v1820
      %v1853 = vpack.c.b16 %v1823, %v1822
      %v1854 = vpack.c.b16 %v1825, %v1824
      %v1855 = vpack.c.b16 %v1827, %v1826
      %v1856 = vpack.c.b16 %v1829, %v1828
      %v1857 = vpack.c.b16 %v1831, %v1830
      %v1858 = vpack.c.b16 %v1833, %v1832
      %v1859 = vpack.c.b16 %v1835, %v1834
      %v1860 = vpack.c.b16 %v1837, %v1836
      %v1861 = vpack.c.b16 %v1839, %v1838
      %v1862 = vpack.c.b16 %v1841, %v1840
      %v1863 = vpack.c.b16 %v1843, %v1842
      %v1864 = vpack.c.b16 %v1845, %v1844
      %v1865 = vpack.c.b16 %v1847, %v1846
      %v1866 = vpack.c.b16 %v1849, %v1848
      %v1867 = vpack.c.b16 %v1851, %v1850
      %v1869 = vsel %vm1574, %v1852, 0
      %v1872 = vsel %vm1574, %v1853, 0
      %v1875 = vsel %vm1574, %v1854, 0
      %v1878 = vsel %vm1574, %v1855, 0
      %v1881 = vsel %vm1574, %v1856, 0
      %v1884 = vsel %vm1574, %v1857, 0
      %v1887 = vsel %vm1574, %v1858, 0
      %v1890 = vsel %vm1574, %v1859, 0
      %v1893 = vsel %vm1574, %v1860, 0
      %v1896 = vsel %vm1574, %v1861, 0
      %v1899 = vsel %vm1574, %v1862, 0
      %v1902 = vsel %vm1574, %v1863, 0
      %v1905 = vsel %vm1574, %v1864, 0
      %v1908 = vsel %vm1574, %v1865, 0
      %v1911 = vsel %vm1574, %v1866, 0
      %v1914 = vsel %vm1574, %v1867, 0
      %v1917 = vsel %vm1623, %v1120, 0
      %1919 = vmatprep.subr.bf16.mxu0 0
      %1920 = vmatpush1.bf16.msra.mxu0 %v1917
      %1921 = vmatprep.subr.bf16.mxu0 0
      %1922 = vmatpush1.bf16.msra.mxu0 0
      %1923 = vmatprep.subr.bf16.mxu0 0
      %1924 = vmatpush1.bf16.msra.mxu0 0
      %1925 = vmatprep.subr.bf16.mxu0 0
      %1926 = vmatpush1.bf16.msra.mxu0 0
      %1927 = vmatprep.subr.bf16.mxu0 0
      %1928 = vmatpush1.bf16.msra.mxu0 0
      %1929 = vmatprep.subr.bf16.mxu0 0
      %1930 = vmatpush1.bf16.msra.mxu0 0
      %1931 = vmatprep.subr.bf16.mxu0 0
      %1932 = vmatpush1.bf16.msra.mxu0 0
      %1933 = vmatprep.subr.bf16.mxu0 0
      %1934 = vmatpush1.bf16.msra.mxu0 0
      %1935 = vmatprep.subr.bf16.mxu0 0
      %1936 = vmatpush1.bf16.msra.mxu0 0
      %1937 = vmatprep.subr.bf16.mxu0 0
      %1938 = vmatpush1.bf16.msra.mxu0 0
      %1939 = vmatprep.subr.bf16.mxu0 0
      %1940 = vmatpush1.bf16.msra.mxu0 0
      %1941 = vmatprep.subr.bf16.mxu0 0
      %1942 = vmatpush1.bf16.msra.mxu0 0
      %1943 = vmatprep.subr.bf16.mxu0 0
      %1944 = vmatpush1.bf16.msra.mxu0 0
      %1945 = vmatprep.subr.bf16.mxu0 0
      %1946 = vmatpush1.bf16.msra.mxu0 0
      %1947 = vmatprep.subr.bf16.mxu0 0
      %1948 = vmatpush1.bf16.msra.mxu0 0
      %1949 = vmatprep.subr.bf16.mxu0 0
      %1950 = vmatpush1.bf16.msra.mxu0 0
      %1951 = vmatprep.mubr.bf16.mxu0 0
      %1952 = vmatmul.mubr.bf16.gmra.mrb[0].mxu0 %v1869
      %v1953 = vpop.f32.mrb[0].mxu0
      %v1954 = vadd.f32 %v1662, %v1953
      %v1955 = vpop.f32.mrb[0].mxu0
      %v1956 = vpop.f32.mrb[0].mxu0
      %v1957 = vadd.f32 %v1665, %v1956
      %v1958 = vpop.f32.mrb[0].mxu0
      %1959 = vmatprep.mubr.bf16.mxu0 0
      %1960 = vmatmul.mubr.bf16.gmra.mrb[0].mxu0 %v1872
      %v1961 = vpop.f32.mrb[0].mxu0
      %v1962 = vadd.f32 %v1670, %v1961
      %v1963 = vpop.f32.mrb[0].mxu0
      %v1964 = vpop.f32.mrb[0].mxu0
      %v1965 = vadd.f32 %v1673, %v1964
      %v1966 = vpop.f32.mrb[0].mxu0
      %1967 = vmatprep.mubr.bf16.mxu0 0
      %1968 = vmatmul.mubr.bf16.gmra.mrb[0].mxu0 %v1875
      %v1969 = vpop.f32.mrb[0].mxu0
      %v1970 = vadd.f32 %v1678, %v1969
      %v1971 = vpop.f32.mrb[0].mxu0
      %v1972 = vpop.f32.mrb[0].mxu0
      %v1973 = vadd.f32 %v1681, %v1972
      %v1974 = vpop.f32.mrb[0].mxu0
      %1975 = vmatprep.mubr.bf16.mxu0 0
      %1976 = vmatmul.mubr.bf16.gmra.mrb[0].mxu0 %v1878
      %v1977 = vpop.f32.mrb[0].mxu0
      %v1978 = vadd.f32 %v1686, %v1977
      %v1979 = vpop.f32.mrb[0].mxu0
      %v1980 = vpop.f32.mrb[0].mxu0
      %v1981 = vadd.f32 %v1689, %v1980
      %v1982 = vpop.f32.mrb[0].mxu0
      %1983 = vmatprep.mubr.bf16.mxu0 0
      %1984 = vmatmul.mubr.bf16.gmra.mrb[0].mxu0 %v1881
      %v1985 = vpop.f32.mrb[0].mxu0
      %v1986 = vadd.f32 %v1694, %v1985
      %v1987 = vpop.f32.mrb[0].mxu0
      %v1988 = vpop.f32.mrb[0].mxu0
      %v1989 = vadd.f32 %v1697, %v1988
      %v1990 = vpop.f32.mrb[0].mxu0
      %1991 = vmatprep.mubr.bf16.mxu0 0
      %1992 = vmatmul.mubr.bf16.gmra.mrb[0].mxu0 %v1884
      %v1993 = vpop.f32.mrb[0].mxu0
      %v1994 = vadd.f32 %v1702, %v1993
      %v1995 = vpop.f32.mrb[0].mxu0
      %v1996 = vpop.f32.mrb[0].mxu0
      %v1997 = vadd.f32 %v1705, %v1996
      %v1998 = vpop.f32.mrb[0].mxu0
      %1999 = vmatprep.mubr.bf16.mxu0 0
      %2000 = vmatmul.mubr.bf16.gmra.mrb[0].mxu0 %v1887
      %v2001 = vpop.f32.mrb[0].mxu0
      %v2002 = vadd.f32 %v1710, %v2001
      %v2003 = vpop.f32.mrb[0].mxu0
      %v2004 = vpop.f32.mrb[0].mxu0
      %v2005 = vadd.f32 %v1713, %v2004
      %v2006 = vpop.f32.mrb[0].mxu0
      %2007 = vmatprep.mubr.bf16.mxu0 0
      %2008 = vmatmul.mubr.bf16.gmra.mrb[0].mxu0 %v1890
      %v2009 = vpop.f32.mrb[0].mxu0
      %v2010 = vadd.f32 %v1718, %v2009
      %v2011 = vpop.f32.mrb[0].mxu0
      %v2012 = vpop.f32.mrb[0].mxu0
      %v2013 = vadd.f32 %v1721, %v2012
      %v2014 = vpop.f32.mrb[0].mxu0
      %2015 = vmatprep.mubr.bf16.mxu0 0
      %2016 = vmatmul.mubr.bf16.gmra.mrb[0].mxu0 %v1893
      %v2017 = vpop.f32.mrb[0].mxu0
      %v2018 = vadd.f32 %v1726, %v2017
      %v2019 = vpop.f32.mrb[0].mxu0
      %v2020 = vpop.f32.mrb[0].mxu0
      %v2021 = vadd.f32 %v1729, %v2020
      %v2022 = vpop.f32.mrb[0].mxu0
      %2023 = vmatprep.mubr.bf16.mxu0 0
      %2024 = vmatmul.mubr.bf16.gmra.mrb[0].mxu0 %v1896
      %v2025 = vpop.f32.mrb[0].mxu0
      %v2026 = vadd.f32 %v1734, %v2025
      %v2027 = vpop.f32.mrb[0].mxu0
      %v2028 = vpop.f32.mrb[0].mxu0
      %v2029 = vadd.f32 %v1737, %v2028
      %v2030 = vpop.f32.mrb[0].mxu0
      %2031 = vmatprep.mubr.bf16.mxu0 0
      %2032 = vmatmul.mubr.bf16.gmra.mrb[0].mxu0 %v1899
      %v2033 = vpop.f32.mrb[0].mxu0
      %v2034 = vadd.f32 %v1742, %v2033
      %v2035 = vpop.f32.mrb[0].mxu0
      %v2036 = vpop.f32.mrb[0].mxu0
      %v2037 = vadd.f32 %v1745, %v2036
      %v2038 = vpop.f32.mrb[0].mxu0
      %2039 = vmatprep.mubr.bf16.mxu0 0
      %2040 = vmatmul.mubr.bf16.gmra.mrb[0].mxu0 %v1902
      %v2041 = vpop.f32.mrb[0].mxu0
      %v2042 = vadd.f32 %v1750, %v2041
      %v2043 = vpop.f32.mrb[0].mxu0
      %v2044 = vpop.f32.mrb[0].mxu0
      %v2045 = vadd.f32 %v1753, %v2044
      %v2046 = vpop.f32.mrb[0].mxu0
      %2047 = vmatprep.mubr.bf16.mxu0 0
      %2048 = vmatmul.mubr.bf16.gmra.mrb[0].mxu0 %v1905
      %v2049 = vpop.f32.mrb[0].mxu0
      %v2050 = vadd.f32 %v1758, %v2049
      %v2051 = vpop.f32.mrb[0].mxu0
      %v2052 = vpop.f32.mrb[0].mxu0
      %v2053 = vadd.f32 %v1761, %v2052
      %v2054 = vpop.f32.mrb[0].mxu0
      %2055 = vmatprep.mubr.bf16.mxu0 0
      %2056 = vmatmul.mubr.bf16.gmra.mrb[0].mxu0 %v1908
      %v2057 = vpop.f32.mrb[0].mxu0
      %v2058 = vadd.f32 %v1766, %v2057
      %v2059 = vpop.f32.mrb[0].mxu0
      %v2060 = vpop.f32.mrb[0].mxu0
      %v2061 = vadd.f32 %v1769, %v2060
      %v2062 = vpop.f32.mrb[0].mxu0
      %2063 = vmatprep.mubr.bf16.mxu0 0
      %2064 = vmatmul.mubr.bf16.gmra.mrb[0].mxu0 %v1911
      %v2065 = vpop.f32.mrb[0].mxu0
      %v2066 = vadd.f32 %v1774, %v2065
      %v2067 = vpop.f32.mrb[0].mxu0
      %v2068 = vpop.f32.mrb[0].mxu0
      %v2069 = vadd.f32 %v1777, %v2068
      %v2070 = vpop.f32.mrb[0].mxu0
      %2071 = vmatprep.mubr.bf16.mxu0 0
      %2072 = vmatmul.mubr.bf16.gmra.mrb[0].mxu0 %v1914
      %v2073 = vpop.f32.mrb[0].mxu0
      %v2074 = vadd.f32 %v1782, %v2073
      %v2075 = vpop.f32.mrb[0].mxu0
      %v2076 = vpop.f32.mrb[0].mxu0
      %v2077 = vadd.f32 %v1785, %v2076
      %v2078 = vpop.f32.mrb[0].mxu0
      %2079 = vdwg.mxu0
      %v2080 = vld [vmem:[#allocation2] sm:$0xe]
      %v2081 = vld [vmem:[#allocation2 + $0xc] sm:$0xe]
      %v2082 = vld [vmem:[#allocation2 + $0x18] sm:$0xe]
      %v2083 = vld [vmem:[#allocation2 + $0x24] sm:$0xe]
      %v2084 = vld [vmem:[#allocation2 + $0x30] sm:$0xe]
      %v2085 = vld [vmem:[#allocation2 + $0x3c] sm:$0xe]
      %v2086 = vld [vmem:[#allocation2 + $0x48] sm:$0xe]
      %v2087 = vld [vmem:[#allocation2 + $0x54] sm:$0xe]
      %v2088 = vld [vmem:[#allocation2 + $0x60] sm:$0xe]
      %v2089 = vld [vmem:[#allocation2 + $0x6c] sm:$0xe]
      %v2090 = vld [vmem:[#allocation2 + $0x78] sm:$0xe]
      %v2091 = vld [vmem:[#allocation2 + $0x84] sm:$0xe]
      %v2092 = vld [vmem:[#allocation2 + $0x90] sm:$0xe]
      %v2093 = vld [vmem:[#allocation2 + $0x9c] sm:$0xe]
      %v2094 = vld [vmem:[#allocation2 + $0xa8] sm:$0xe]
      %v2095 = vld [vmem:[#allocation2 + $0xb4] sm:$0xe]
      %vm2128 = vcmask 1042432
      %vm2129 = vcmask 1046532
      %vm2130 = vmor %vm2128, %vm2129
      %v2131 = vrot.slane %v2080, 5
      %v2132 = vrot.slane %v2131, 4
      %v2133 = vrot.slane %v1089, 5
      %v2134 = vsel %vm2130, %v2132, %v2133
      %v2135 = vrot.slane %v2133, 4
      %v2136 = vrot.slane %v1121, 5
      %v2137 = vsel %vm2130, %v2135, %v2136
      %v2138 = vrot.slane %v2081, 5
      %v2139 = vrot.slane %v2138, 4
      %v2140 = vrot.slane %v1091, 5
      %v2141 = vsel %vm2130, %v2139, %v2140
      %v2142 = vrot.slane %v2140, 4
      %v2143 = vrot.slane %v1122, 5
      %v2144 = vsel %vm2130, %v2142, %v2143
      %v2145 = vrot.slane %v2082, 5
      %v2146 = vrot.slane %v2145, 4
      %v2147 = vrot.slane %v1093, 5
      %v2148 = vsel %vm2130, %v2146, %v2147
      %v2149 = vrot.slane %v2147, 4
      %v2150 = vrot.slane %v1123, 5
      %v2151 = vsel %vm2130, %v2149, %v2150
      %v2152 = vrot.slane %v2083, 5
      %v2153 = vrot.slane %v2152, 4
      %v2154 = vrot.slane %v1095, 5
      %v2155 = vsel %vm2130, %v2153, %v2154
      %v2156 = vrot.slane %v2154, 4
      %v2157 = vrot.slane %v1124, 5
      %v2158 = vsel %vm2130, %v2156, %v2157
      %v2159 = vrot.slane %v2084, 5
      %v2160 = vrot.slane %v2159, 4
      %v2161 = vrot.slane %v1097, 5
      %v2162 = vsel %vm2130, %v2160, %v2161
      %v2163 = vrot.slane %v2161, 4
      %v2164 = vrot.slane %v1125, 5
      %v2165 = vsel %vm2130, %v2163, %v2164
      %v2166 = vrot.slane %v2085, 5
      %v2167 = vrot.slane %v2166, 4
      %v2168 = vrot.slane %v1099, 5
      %v2169 = vsel %vm2130, %v2167, %v2168
      %v2170 = vrot.slane %v2168, 4
      %v2171 = vrot.slane %v1126, 5
      %v2172 = vsel %vm2130, %v2170, %v2171
      %v2173 = vrot.slane %v2086, 5
      %v2174 = vrot.slane %v2173, 4
      %v2175 = vrot.slane %v1101, 5
      %v2176 = vsel %vm2130, %v2174, %v2175
      %v2177 = vrot.slane %v2175, 4
      %v2178 = vrot.slane %v1127, 5
      %v2179 = vsel %vm2130, %v2177, %v2178
      %v2180 = vrot.slane %v2087, 5
      %v2181 = vrot.slane %v2180, 4
      %v2182 = vrot.slane %v1103, 5
      %v2183 = vsel %vm2130, %v2181, %v2182
      %v2184 = vrot.slane %v2182, 4
      %v2185 = vrot.slane %v1128, 5
      %v2186 = vsel %vm2130, %v2184, %v2185
      %v2187 = vrot.slane %v2088, 5
      %v2188 = vrot.slane %v2187, 4
      %v2189 = vrot.slane %v1105, 5
      %v2190 = vsel %vm2130, %v2188, %v2189
      %v2191 = vrot.slane %v2189, 4
      %v2192 = vrot.slane %v1129, 5
      %v2193 = vsel %vm2130, %v2191, %v2192
      %v2194 = vrot.slane %v2089, 5
      %v2195 = vrot.slane %v2194, 4
      %v2196 = vrot.slane %v1107, 5
      %v2197 = vsel %vm2130, %v2195, %v2196
      %v2198 = vrot.slane %v2196, 4
      %v2199 = vrot.slane %v1130, 5
      %v2200 = vsel %vm2130, %v2198, %v2199
      %v2201 = vrot.slane %v2090, 5
      %v2202 = vrot.slane %v2201, 4
      %v2203 = vrot.slane %v1109, 5
      %v2204 = vsel %vm2130, %v2202, %v2203
      %v2205 = vrot.slane %v2203, 4
      %v2206 = vrot.slane %v1131, 5
      %v2207 = vsel %vm2130, %v2205, %v2206
      %v2208 = vrot.slane %v2091, 5
      %v2209 = vrot.slane %v2208, 4
      %v2210 = vrot.slane %v1111, 5
      %v2211 = vsel %vm2130, %v2209, %v2210
      %v2212 = vrot.slane %v2210, 4
      %v2213 = vrot.slane %v1132, 5
      %v2214 = vsel %vm2130, %v2212, %v2213
      %v2215 = vrot.slane %v2092, 5
      %v2216 = vrot.slane %v2215, 4
      %v2217 = vrot.slane %v1113, 5
      %v2218 = vsel %vm2130, %v2216, %v2217
      %v2219 = vrot.slane %v2217, 4
      %v2220 = vrot.slane %v1133, 5
      %v2221 = vsel %vm2130, %v2219, %v2220
      %v2222 = vrot.slane %v2093, 5
      %v2223 = vrot.slane %v2222, 4
      %v2224 = vrot.slane %v1115, 5
      %v2225 = vsel %vm2130, %v2223, %v2224
      %v2226 = vrot.slane %v2224, 4
      %v2227 = vrot.slane %v1134, 5
      %v2228 = vsel %vm2130, %v2226, %v2227
      %v2229 = vrot.slane %v2094, 5
      %v2230 = vrot.slane %v2229, 4
      %v2231 = vrot.slane %v1117, 5
      %v2232 = vsel %vm2130, %v2230, %v2231
      %v2233 = vrot.slane %v2231, 4
      %v2234 = vrot.slane %v1135, 5
      %v2235 = vsel %vm2130, %v2233, %v2234
      %v2236 = vrot.slane %v2095, 5
      %v2237 = vrot.slane %v2236, 4
      %v2238 = vrot.slane %v1119, 5
      %v2239 = vsel %vm2130, %v2237, %v2238
      %v2240 = vrot.slane %v2238, 4
      %v2241 = vrot.slane %v1136, 5
      %v2242 = vsel %vm2130, %v2240, %v2241
      %s2243 = scalar_lea.vmem %s3, 4
      %v2244 = vld [vmem:[%s2243] sm:$0x3]
      %v2245 = vunpack.c.l.b16 %v2134
      %v2246 = vunpack.c.l.b16 %v2137
      %v2247 = vunpack.c.l.b16 %v2141
      %v2248 = vunpack.c.l.b16 %v2144
      %v2249 = vunpack.c.l.b16 %v2148
      %v2250 = vunpack.c.l.b16 %v2151
      %v2251 = vunpack.c.l.b16 %v2155
      %v2252 = vunpack.c.l.b16 %v2158
      %v2253 = vunpack.c.l.b16 %v2162
      %v2254 = vunpack.c.l.b16 %v2165
      %v2255 = vunpack.c.l.b16 %v2169
      %v2256 = vunpack.c.l.b16 %v2172
      %v2257 = vunpack.c.l.b16 %v2176
      %v2258 = vunpack.c.l.b16 %v2179
      %v2259 = vunpack.c.l.b16 %v2183
      %v2260 = vunpack.c.l.b16 %v2186
      %v2261 = vunpack.c.l.b16 %v2190
      %v2262 = vunpack.c.l.b16 %v2193
      %v2263 = vunpack.c.l.b16 %v2197
      %v2264 = vunpack.c.l.b16 %v2200
      %v2265 = vunpack.c.l.b16 %v2204
      %v2266 = vunpack.c.l.b16 %v2207
      %v2267 = vunpack.c.l.b16 %v2211
      %v2268 = vunpack.c.l.b16 %v2214
      %v2269 = vunpack.c.l.b16 %v2218
      %v2270 = vunpack.c.l.b16 %v2221
      %v2271 = vunpack.c.l.b16 %v2225
      %v2272 = vunpack.c.l.b16 %v2228
      %v2273 = vunpack.c.l.b16 %v2232
      %v2274 = vunpack.c.l.b16 %v2235
      %v2275 = vunpack.c.l.b16 %v2239
      %v2276 = vunpack.c.l.b16 %v2242
      %v2277 = vpack.c.b16 %v2246, %v2245
      %v2278 = vpack.c.b16 %v2248, %v2247
      %v2279 = vpack.c.b16 %v2250, %v2249
      %v2280 = vpack.c.b16 %v2252, %v2251
      %v2281 = vpack.c.b16 %v2254, %v2253
      %v2282 = vpack.c.b16 %v2256, %v2255
      %v2283 = vpack.c.b16 %v2258, %v2257
      %v2284 = vpack.c.b16 %v2260, %v2259
      %v2285 = vpack.c.b16 %v2262, %v2261
      %v2286 = vpack.c.b16 %v2264, %v2263
      %v2287 = vpack.c.b16 %v2266, %v2265
      %v2288 = vpack.c.b16 %v2268, %v2267
      %v2289 = vpack.c.b16 %v2270, %v2269
      %v2290 = vpack.c.b16 %v2272, %v2271
      %v2291 = vpack.c.b16 %v2274, %v2273
      %v2292 = vpack.c.b16 %v2276, %v2275
      %v2294 = vsel %vm1574, %v2277, 0
      %v2297 = vsel %vm1574, %v2278, 0
      %v2300 = vsel %vm1574, %v2279, 0
      %v2303 = vsel %vm1574, %v2280, 0
      %v2306 = vsel %vm1574, %v2281, 0
      %v2309 = vsel %vm1574, %v2282, 0
      %v2312 = vsel %vm1574, %v2283, 0
      %v2315 = vsel %vm1574, %v2284, 0
      %v2318 = vsel %vm1574, %v2285, 0
      %v2321 = vsel %vm1574, %v2286, 0
      %v2324 = vsel %vm1574, %v2287, 0
      %v2327 = vsel %vm1574, %v2288, 0
      %v2330 = vsel %vm1574, %v2289, 0
      %v2333 = vsel %vm1574, %v2290, 0
      %v2336 = vsel %vm1574, %v2291, 0
      %v2339 = vsel %vm1574, %v2292, 0
      %v2342 = vsel %vm1623, %v2244, 0
      %2344 = vmatprep.subr.bf16.mxu0 0
      %2345 = vmatpush1.bf16.msra.mxu0 %v2342
      %2346 = vmatprep.subr.bf16.mxu0 0
      %2347 = vmatpush1.bf16.msra.mxu0 0
      %2348 = vmatprep.subr.bf16.mxu0 0
      %2349 = vmatpush1.bf16.msra.mxu0 0
      %2350 = vmatprep.subr.bf16.mxu0 0
      %2351 = vmatpush1.bf16.msra.mxu0 0
      %2352 = vmatprep.subr.bf16.mxu0 0
      %2353 = vmatpush1.bf16.msra.mxu0 0
      %2354 = vmatprep.subr.bf16.mxu0 0
      %2355 = vmatpush1.bf16.msra.mxu0 0
      %2356 = vmatprep.subr.bf16.mxu0 0
      %2357 = vmatpush1.bf16.msra.mxu0 0
      %2358 = vmatprep.subr.bf16.mxu0 0
      %2359 = vmatpush1.bf16.msra.mxu0 0
      %2360 = vmatprep.subr.bf16.mxu0 0
      %2361 = vmatpush1.bf16.msra.mxu0 0
      %2362 = vmatprep.subr.bf16.mxu0 0
      %2363 = vmatpush1.bf16.msra.mxu0 0
      %2364 = vmatprep.subr.bf16.mxu0 0
      %2365 = vmatpush1.bf16.msra.mxu0 0
      %2366 = vmatprep.subr.bf16.mxu0 0
      %2367 = vmatpush1.bf16.msra.mxu0 0
      %2368 = vmatprep.subr.bf16.mxu0 0
      %2369 = vmatpush1.bf16.msra.mxu0 0
      %2370 = vmatprep.subr.bf16.mxu0 0
      %2371 = vmatpush1.bf16.msra.mxu0 0
      %2372 = vmatprep.subr.bf16.mxu0 0
      %2373 = vmatpush1.bf16.msra.mxu0 0
      %2374 = vmatprep.subr.bf16.mxu0 0
      %2375 = vmatpush1.bf16.msra.mxu0 0
      %2376 = vmatprep.mubr.bf16.mxu0 0
      %2377 = vmatmul.mubr.bf16.gmra.mrb[0].mxu0 %v2294
      %v2378 = vpop.f32.mrb[0].mxu0
      %v2379 = vadd.f32 0.0, %v2378
      %v2380 = vpop.f32.mrb[0].mxu0
      %v2381 = vpop.f32.mrb[0].mxu0
      %v2382 = vadd.f32 0.0, %v2381
      %v2383 = vpop.f32.mrb[0].mxu0
      %2384 = vmatprep.mubr.bf16.mxu0 0
      %2385 = vmatmul.mubr.bf16.gmra.mrb[0].mxu0 %v2297
      %v2386 = vpop.f32.mrb[0].mxu0
      %v2387 = vadd.f32 0.0, %v2386
      %v2388 = vpop.f32.mrb[0].mxu0
      %v2389 = vpop.f32.mrb[0].mxu0
      %v2390 = vadd.f32 0.0, %v2389
      %v2391 = vpop.f32.mrb[0].mxu0
      %2392 = vmatprep.mubr.bf16.mxu0 0
      %2393 = vmatmul.mubr.bf16.gmra.mrb[0].mxu0 %v2300
      %v2394 = vpop.f32.mrb[0].mxu0
      %v2395 = vadd.f32 0.0, %v2394
      %v2396 = vpop.f32.mrb[0].mxu0
      %v2397 = vpop.f32.mrb[0].mxu0
      %v2398 = vadd.f32 0.0, %v2397
      %v2399 = vpop.f32.mrb[0].mxu0
      %2400 = vmatprep.mubr.bf16.mxu0 0
      %2401 = vmatmul.mubr.bf16.gmra.mrb[0].mxu0 %v2303
      %v2402 = vpop.f32.mrb[0].mxu0
      %v2403 = vadd.f32 0.0, %v2402
      %v2404 = vpop.f32.mrb[0].mxu0
      %v2405 = vpop.f32.mrb[0].mxu0
      %v2406 = vadd.f32 0.0, %v2405
      %v2407 = vpop.f32.mrb[0].mxu0
      %2408 = vmatprep.mubr.bf16.mxu0 0
      %2409 = vmatmul.mubr.bf16.gmra.mrb[0].mxu0 %v2306
      %v2410 = vpop.f32.mrb[0].mxu0
      %v2411 = vadd.f32 0.0, %v2410
      %v2412 = vpop.f32.mrb[0].mxu0
      %v2413 = vpop.f32.mrb[0].mxu0
      %v2414 = vadd.f32 0.0, %v2413
      %v2415 = vpop.f32.mrb[0].mxu0
      %2416 = vmatprep.mubr.bf16.mxu0 0
      %2417 = vmatmul.mubr.bf16.gmra.mrb[0].mxu0 %v2309
      %v2418 = vpop.f32.mrb[0].mxu0
      %v2419 = vadd.f32 0.0, %v2418
      %v2420 = vpop.f32.mrb[0].mxu0
      %v2421 = vpop.f32.mrb[0].mxu0
      %v2422 = vadd.f32 0.0, %v2421
      %v2423 = vpop.f32.mrb[0].mxu0
      %2424 = vmatprep.mubr.bf16.mxu0 0
      %2425 = vmatmul.mubr.bf16.gmra.mrb[0].mxu0 %v2312
      %v2426 = vpop.f32.mrb[0].mxu0
      %v2427 = vadd.f32 0.0, %v2426
      %v2428 = vpop.f32.mrb[0].mxu0
      %v2429 = vpop.f32.mrb[0].mxu0
      %v2430 = vadd.f32 0.0, %v2429
      %v2431 = vpop.f32.mrb[0].mxu0
      %2432 = vmatprep.mubr.bf16.mxu0 0
      %2433 = vmatmul.mubr.bf16.gmra.mrb[0].mxu0 %v2315
      %v2434 = vpop.f32.mrb[0].mxu0
      %v2435 = vadd.f32 0.0, %v2434
      %v2436 = vpop.f32.mrb[0].mxu0
      %v2437 = vpop.f32.mrb[0].mxu0
      %v2438 = vadd.f32 0.0, %v2437
      %v2439 = vpop.f32.mrb[0].mxu0
      %2440 = vmatprep.mubr.bf16.mxu0 0
      %2441 = vmatmul.mubr.bf16.gmra.mrb[0].mxu0 %v2318
      %v2442 = vpop.f32.mrb[0].mxu0
      %v2443 = vadd.f32 0.0, %v2442
      %v2444 = vpop.f32.mrb[0].mxu0
      %v2445 = vpop.f32.mrb[0].mxu0
      %v2446 = vadd.f32 0.0, %v2445
      %v2447 = vpop.f32.mrb[0].mxu0
      %2448 = vmatprep.mubr.bf16.mxu0 0
      %2449 = vmatmul.mubr.bf16.gmra.mrb[0].mxu0 %v2321
      %v2450 = vpop.f32.mrb[0].mxu0
      %v2451 = vadd.f32 0.0, %v2450
      %v2452 = vpop.f32.mrb[0].mxu0
      %v2453 = vpop.f32.mrb[0].mxu0
      %v2454 = vadd.f32 0.0, %v2453
      %v2455 = vpop.f32.mrb[0].mxu0
      %2456 = vmatprep.mubr.bf16.mxu0 0
      %2457 = vmatmul.mubr.bf16.gmra.mrb[0].mxu0 %v2324
      %v2458 = vpop.f32.mrb[0].mxu0
      %v2459 = vadd.f32 0.0, %v2458
      %v2460 = vpop.f32.mrb[0].mxu0
      %v2461 = vpop.f32.mrb[0].mxu0
      %v2462 = vadd.f32 0.0, %v2461
      %v2463 = vpop.f32.mrb[0].mxu0
      %2464 = vmatprep.mubr.bf16.mxu0 0
      %2465 = vmatmul.mubr.bf16.gmra.mrb[0].mxu0 %v2327
      %v2466 = vpop.f32.mrb[0].mxu0
      %v2467 = vadd.f32 0.0, %v2466
      %v2468 = vpop.f32.mrb[0].mxu0
      %v2469 = vpop.f32.mrb[0].mxu0
      %v2470 = vadd.f32 0.0, %v2469
      %v2471 = vpop.f32.mrb[0].mxu0
      %2472 = vmatprep.mubr.bf16.mxu0 0
      %2473 = vmatmul.mubr.bf16.gmra.mrb[0].mxu0 %v2330
      %v2474 = vpop.f32.mrb[0].mxu0
      %v2475 = vadd.f32 0.0, %v2474
      %v2476 = vpop.f32.mrb[0].mxu0
      %v2477 = vpop.f32.mrb[0].mxu0
      %v2478 = vadd.f32 0.0, %v2477
      %v2479 = vpop.f32.mrb[0].mxu0
      %2480 = vmatprep.mubr.bf16.mxu0 0
      %2481 = vmatmul.mubr.bf16.gmra.mrb[0].mxu0 %v2333
      %v2482 = vpop.f32.mrb[0].mxu0
      %v2483 = vadd.f32 0.0, %v2482
      %v2484 = vpop.f32.mrb[0].mxu0
      %v2485 = vpop.f32.mrb[0].mxu0
      %v2486 = vadd.f32 0.0, %v2485
      %v2487 = vpop.f32.mrb[0].mxu0
      %2488 = vmatprep.mubr.bf16.mxu0 0
      %2489 = vmatmul.mubr.bf16.gmra.mrb[0].mxu0 %v2336
      %v2490 = vpop.f32.mrb[0].mxu0
      %v2491 = vadd.f32 0.0, %v2490
      %v2492 = vpop.f32.mrb[0].mxu0
      %v2493 = vpop.f32.mrb[0].mxu0
      %v2494 = vadd.f32 0.0, %v2493
      %v2495 = vpop.f32.mrb[0].mxu0
      %2496 = vmatprep.mubr.bf16.mxu0 0
      %2497 = vmatmul.mubr.bf16.gmra.mrb[0].mxu0 %v2339
      %v2498 = vpop.f32.mrb[0].mxu0
      %v2499 = vadd.f32 0.0, %v2498
      %v2500 = vpop.f32.mrb[0].mxu0
      %v2501 = vpop.f32.mrb[0].mxu0
      %v2502 = vadd.f32 0.0, %v2501
      %v2503 = vpop.f32.mrb[0].mxu0
      %2504 = vdwg.mxu0
      %v2505 = vadd.f32 %v1954, %v2379
      %v2506 = vadd.f32 %v1957, %v2382
      %v2507 = vadd.f32 %v1962, %v2387
      %v2508 = vadd.f32 %v1965, %v2390
      %v2509 = vadd.f32 %v1970, %v2395
      %v2510 = vadd.f32 %v1973, %v2398
      %v2511 = vadd.f32 %v1978, %v2403
      %v2512 = vadd.f32 %v1981, %v2406
      %v2513 = vadd.f32 %v1986, %v2411
      %v2514 = vadd.f32 %v1989, %v2414
      %v2515 = vadd.f32 %v1994, %v2419
      %v2516 = vadd.f32 %v1997, %v2422
      %v2517 = vadd.f32 %v2002, %v2427
      %v2518 = vadd.f32 %v2005, %v2430
      %v2519 = vadd.f32 %v2010, %v2435
      %v2520 = vadd.f32 %v2013, %v2438
      %v2521 = vadd.f32 %v2018, %v2443
      %v2522 = vadd.f32 %v2021, %v2446
      %v2523 = vadd.f32 %v2026, %v2451
      %v2524 = vadd.f32 %v2029, %v2454
      %v2525 = vadd.f32 %v2034, %v2459
      %v2526 = vadd.f32 %v2037, %v2462
      %v2527 = vadd.f32 %v2042, %v2467
      %v2528 = vadd.f32 %v2045, %v2470
      %v2529 = vadd.f32 %v2050, %v2475
      %v2530 = vadd.f32 %v2053, %v2478
      %v2531 = vadd.f32 %v2058, %v2483
      %v2532 = vadd.f32 %v2061, %v2486
      %v2533 = vadd.f32 %v2066, %v2491
      %v2534 = vadd.f32 %v2069, %v2494
      %v2535 = vadd.f32 %v2074, %v2499
      %v2536 = vadd.f32 %v2077, %v2502
      %v2537 = vld [vmem:[%s789] sm:$0xf]
      %v2538 = vld [vmem:[%s789 + $0x4] sm:$0xf]
      %v2539 = vld [vmem:[%s789 + $0xc] sm:$0xf]
      %v2540 = vld [vmem:[%s789 + $0x10] sm:$0xf]
      %v2541 = vld [vmem:[%s789 + $0x18] sm:$0xf]
      %v2542 = vld [vmem:[%s789 + $0x1c] sm:$0xf]
      %v2543 = vld [vmem:[%s789 + $0x24] sm:$0xf]
      %v2544 = vld [vmem:[%s789 + $0x28] sm:$0xf]
      %v2545 = vld [vmem:[%s789 + $0x30] sm:$0xf]
      %v2546 = vld [vmem:[%s789 + $0x34] sm:$0xf]
      %v2547 = vld [vmem:[%s789 + $0x3c] sm:$0xf]
      %v2548 = vld [vmem:[%s789 + $0x40] sm:$0xf]
      %v2549 = vld [vmem:[%s789 + $0x48] sm:$0xf]
      %v2550 = vld [vmem:[%s789 + $0x4c] sm:$0xf]
      %v2551 = vld [vmem:[%s789 + $0x54] sm:$0xf]
      %v2552 = vld [vmem:[%s789 + $0x58] sm:$0xf]
      %v2553 = vld [vmem:[%s789 + $0x60] sm:$0xf]
      %v2554 = vld [vmem:[%s789 + $0x64] sm:$0xf]
      %v2555 = vld [vmem:[%s789 + $0x6c] sm:$0xf]
      %v2556 = vld [vmem:[%s789 + $0x70] sm:$0xf]
      %v2557 = vld [vmem:[%s789 + $0x78] sm:$0xf]
      %v2558 = vld [vmem:[%s789 + $0x7c] sm:$0xf]
      %v2559 = vld [vmem:[%s789 + $0x84] sm:$0xf]
      %v2560 = vld [vmem:[%s789 + $0x88] sm:$0xf]
      %v2561 = vld [vmem:[%s789 + $0x90] sm:$0xf]
      %v2562 = vld [vmem:[%s789 + $0x94] sm:$0xf]
      %v2563 = vld [vmem:[%s789 + $0x9c] sm:$0xf]
      %v2564 = vld [vmem:[%s789 + $0xa0] sm:$0xf]
      %v2565 = vld [vmem:[%s789 + $0xa8] sm:$0xf]
      %v2566 = vld [vmem:[%s789 + $0xac] sm:$0xf]
      %v2567 = vld [vmem:[%s789 + $0xb4] sm:$0xf]
      %v2568 = vld [vmem:[%s789 + $0xb8] sm:$0xf]
      %s2569 = scalar_lea.vmem %s3, 6
      %v2570 = vld [vmem:[%s2569] sm:$0x3]
      %v2603 = vunpack.c.l.b16 %v2537
      %v2604 = vunpack.c.l.b16 %v2538
      %v2605 = vunpack.c.l.b16 %v2539
      %v2606 = vunpack.c.l.b16 %v2540
      %v2607 = vunpack.c.l.b16 %v2541
      %v2608 = vunpack.c.l.b16 %v2542
      %v2609 = vunpack.c.l.b16 %v2543
      %v2610 = vunpack.c.l.b16 %v2544
      %v2611 = vunpack.c.l.b16 %v2545
      %v2612 = vunpack.c.l.b16 %v2546
      %v2613 = vunpack.c.l.b16 %v2547
      %v2614 = vunpack.c.l.b16 %v2548
      %v2615 = vunpack.c.l.b16 %v2549
      %v2616 = vunpack.c.l.b16 %v2550
      %v2617 = vunpack.c.l.b16 %v2551
      %v2618 = vunpack.c.l.b16 %v2552
      %v2619 = vunpack.c.l.b16 %v2553
      %v2620 = vunpack.c.l.b16 %v2554
      %v2621 = vunpack.c.l.b16 %v2555
      %v2622 = vunpack.c.l.b16 %v2556
      %v2623 = vunpack.c.l.b16 %v2557
      %v2624 = vunpack.c.l.b16 %v2558
      %v2625 = vunpack.c.l.b16 %v2559
      %v2626 = vunpack.c.l.b16 %v2560
      %v2627 = vunpack.c.l.b16 %v2561
      %v2628 = vunpack.c.l.b16 %v2562
      %v2629 = vunpack.c.l.b16 %v2563
      %v2630 = vunpack.c.l.b16 %v2564
      %v2631 = vunpack.c.l.b16 %v2565
      %v2632 = vunpack.c.l.b16 %v2566
      %v2633 = vunpack.c.l.b16 %v2567
      %v2634 = vunpack.c.l.b16 %v2568
      %v2635 = vpack.c.b16 %v2604, %v2603
      %v2636 = vpack.c.b16 %v2606, %v2605
      %v2637 = vpack.c.b16 %v2608, %v2607
      %v2638 = vpack.c.b16 %v2610, %v2609
      %v2639 = vpack.c.b16 %v2612, %v2611
      %v2640 = vpack.c.b16 %v2614, %v2613
      %v2641 = vpack.c.b16 %v2616, %v2615
      %v2642 = vpack.c.b16 %v2618, %v2617
      %v2643 = vpack.c.b16 %v2620, %v2619
      %v2644 = vpack.c.b16 %v2622, %v2621
      %v2645 = vpack.c.b16 %v2624, %v2623
      %v2646 = vpack.c.b16 %v2626, %v2625
      %v2647 = vpack.c.b16 %v2628, %v2627
      %v2648 = vpack.c.b16 %v2630, %v2629
      %v2649 = vpack.c.b16 %v2632, %v2631
      %v2650 = vpack.c.b16 %v2634, %v2633
      %v2652 = vsel %vm1574, %v2635, 0
      %v2655 = vsel %vm1574, %v2636, 0
      %v2658 = vsel %vm1574, %v2637, 0
      %v2661 = vsel %vm1574, %v2638, 0
      %v2664 = vsel %vm1574, %v2639, 0
      %v2667 = vsel %vm1574, %v2640, 0
      %v2670 = vsel %vm1574, %v2641, 0
      %v2673 = vsel %vm1574, %v2642, 0
      %v2676 = vsel %vm1574, %v2643, 0
      %v2679 = vsel %vm1574, %v2644, 0
      %v2682 = vsel %vm1574, %v2645, 0
      %v2685 = vsel %vm1574, %v2646, 0
      %v2688 = vsel %vm1574, %v2647, 0
      %v2691 = vsel %vm1574, %v2648, 0
      %v2694 = vsel %vm1574, %v2649, 0
      %v2697 = vsel %vm1574, %v2650, 0
      %v2700 = vsel %vm1623, %v2570, 0
      %2702 = vmatprep.subr.bf16.mxu0 0
      %2703 = vmatpush1.bf16.msra.mxu0 %v2700
      %2704 = vmatprep.subr.bf16.mxu0 0
      %2705 = vmatpush1.bf16.msra.mxu0 0
      %2706 = vmatprep.subr.bf16.mxu0 0
      %2707 = vmatpush1.bf16.msra.mxu0 0
      %2708 = vmatprep.subr.bf16.mxu0 0
      %2709 = vmatpush1.bf16.msra.mxu0 0
      %2710 = vmatprep.subr.bf16.mxu0 0
      %2711 = vmatpush1.bf16.msra.mxu0 0
      %2712 = vmatprep.subr.bf16.mxu0 0
      %2713 = vmatpush1.bf16.msra.mxu0 0
      %2714 = vmatprep.subr.bf16.mxu0 0
      %2715 = vmatpush1.bf16.msra.mxu0 0
      %2716 = vmatprep.subr.bf16.mxu0 0
      %2717 = vmatpush1.bf16.msra.mxu0 0
      %2718 = vmatprep.subr.bf16.mxu0 0
      %2719 = vmatpush1.bf16.msra.mxu0 0
      %2720 = vmatprep.subr.bf16.mxu0 0
      %2721 = vmatpush1.bf16.msra.mxu0 0
      %2722 = vmatprep.subr.bf16.mxu0 0
      %2723 = vmatpush1.bf16.msra.mxu0 0
      %2724 = vmatprep.subr.bf16.mxu0 0
      %2725 = vmatpush1.bf16.msra.mxu0 0
      %2726 = vmatprep.subr.bf16.mxu0 0
      %2727 = vmatpush1.bf16.msra.mxu0 0
      %2728 = vmatprep.subr.bf16.mxu0 0
      %2729 = vmatpush1.bf16.msra.mxu0 0
      %2730 = vmatprep.subr.bf16.mxu0 0
      %2731 = vmatpush1.bf16.msra.mxu0 0
      %2732 = vmatprep.subr.bf16.mxu0 0
      %2733 = vmatpush1.bf16.msra.mxu0 0
      %2734 = vmatprep.mubr.bf16.mxu0 0
      %2735 = vmatmul.mubr.bf16.gmra.mrb[0].mxu0 %v2652
      %v2736 = vpop.f32.mrb[0].mxu0
      %v2737 = vadd.f32 0.0, %v2736
      %v2738 = vpop.f32.mrb[0].mxu0
      %v2739 = vpop.f32.mrb[0].mxu0
      %v2740 = vadd.f32 0.0, %v2739
      %v2741 = vpop.f32.mrb[0].mxu0
      %2742 = vmatprep.mubr.bf16.mxu0 0
      %2743 = vmatmul.mubr.bf16.gmra.mrb[0].mxu0 %v2655
      %v2744 = vpop.f32.mrb[0].mxu0
      %v2745 = vadd.f32 0.0, %v2744
      %v2746 = vpop.f32.mrb[0].mxu0
      %v2747 = vpop.f32.mrb[0].mxu0
      %v2748 = vadd.f32 0.0, %v2747
      %v2749 = vpop.f32.mrb[0].mxu0
      %2750 = vmatprep.mubr.bf16.mxu0 0
      %2751 = vmatmul.mubr.bf16.gmra.mrb[0].mxu0 %v2658
      %v2752 = vpop.f32.mrb[0].mxu0
      %v2753 = vadd.f32 0.0, %v2752
      %v2754 = vpop.f32.mrb[0].mxu0
      %v2755 = vpop.f32.mrb[0].mxu0
      %v2756 = vadd.f32 0.0, %v2755
      %v2757 = vpop.f32.mrb[0].mxu0
      %2758 = vmatprep.mubr.bf16.mxu0 0
      %2759 = vmatmul.mubr.bf16.gmra.mrb[0].mxu0 %v2661
      %v2760 = vpop.f32.mrb[0].mxu0
      %v2761 = vadd.f32 0.0, %v2760
      %v2762 = vpop.f32.mrb[0].mxu0
      %v2763 = vpop.f32.mrb[0].mxu0
      %v2764 = vadd.f32 0.0, %v2763
      %v2765 = vpop.f32.mrb[0].mxu0
      %2766 = vmatprep.mubr.bf16.mxu0 0
      %2767 = vmatmul.mubr.bf16.gmra.mrb[0].mxu0 %v2664
      %v2768 = vpop.f32.mrb[0].mxu0
      %v2769 = vadd.f32 0.0, %v2768
      %v2770 = vpop.f32.mrb[0].mxu0
      %v2771 = vpop.f32.mrb[0].mxu0
      %v2772 = vadd.f32 0.0, %v2771
      %v2773 = vpop.f32.mrb[0].mxu0
      %2774 = vmatprep.mubr.bf16.mxu0 0
      %2775 = vmatmul.mubr.bf16.gmra.mrb[0].mxu0 %v2667
      %v2776 = vpop.f32.mrb[0].mxu0
      %v2777 = vadd.f32 0.0, %v2776
      %v2778 = vpop.f32.mrb[0].mxu0
      %v2779 = vpop.f32.mrb[0].mxu0
      %v2780 = vadd.f32 0.0, %v2779
      %v2781 = vpop.f32.mrb[0].mxu0
      %2782 = vmatprep.mubr.bf16.mxu0 0
      %2783 = vmatmul.mubr.bf16.gmra.mrb[0].mxu0 %v2670
      %v2784 = vpop.f32.mrb[0].mxu0
      %v2785 = vadd.f32 0.0, %v2784
      %v2786 = vpop.f32.mrb[0].mxu0
      %v2787 = vpop.f32.mrb[0].mxu0
      %v2788 = vadd.f32 0.0, %v2787
      %v2789 = vpop.f32.mrb[0].mxu0
      %2790 = vmatprep.mubr.bf16.mxu0 0
      %2791 = vmatmul.mubr.bf16.gmra.mrb[0].mxu0 %v2673
      %v2792 = vpop.f32.mrb[0].mxu0
      %v2793 = vadd.f32 0.0, %v2792
      %v2794 = vpop.f32.mrb[0].mxu0
      %v2795 = vpop.f32.mrb[0].mxu0
      %v2796 = vadd.f32 0.0, %v2795
      %v2797 = vpop.f32.mrb[0].mxu0
      %2798 = vmatprep.mubr.bf16.mxu0 0
      %2799 = vmatmul.mubr.bf16.gmra.mrb[0].mxu0 %v2676
      %v2800 = vpop.f32.mrb[0].mxu0
      %v2801 = vadd.f32 0.0, %v2800
      %v2802 = vpop.f32.mrb[0].mxu0
      %v2803 = vpop.f32.mrb[0].mxu0
      %v2804 = vadd.f32 0.0, %v2803
      %v2805 = vpop.f32.mrb[0].mxu0
      %2806 = vmatprep.mubr.bf16.mxu0 0
      %2807 = vmatmul.mubr.bf16.gmra.mrb[0].mxu0 %v2679
      %v2808 = vpop.f32.mrb[0].mxu0
      %v2809 = vadd.f32 0.0, %v2808
      %v2810 = vpop.f32.mrb[0].mxu0
      %v2811 = vpop.f32.mrb[0].mxu0
      %v2812 = vadd.f32 0.0, %v2811
      %v2813 = vpop.f32.mrb[0].mxu0
      %2814 = vmatprep.mubr.bf16.mxu0 0
      %2815 = vmatmul.mubr.bf16.gmra.mrb[0].mxu0 %v2682
      %v2816 = vpop.f32.mrb[0].mxu0
      %v2817 = vadd.f32 0.0, %v2816
      %v2818 = vpop.f32.mrb[0].mxu0
      %v2819 = vpop.f32.mrb[0].mxu0
      %v2820 = vadd.f32 0.0, %v2819
      %v2821 = vpop.f32.mrb[0].mxu0
      %2822 = vmatprep.mubr.bf16.mxu0 0
      %2823 = vmatmul.mubr.bf16.gmra.mrb[0].mxu0 %v2685
      %v2824 = vpop.f32.mrb[0].mxu0
      %v2825 = vadd.f32 0.0, %v2824
      %v2826 = vpop.f32.mrb[0].mxu0
      %v2827 = vpop.f32.mrb[0].mxu0
      %v2828 = vadd.f32 0.0, %v2827
      %v2829 = vpop.f32.mrb[0].mxu0
      %2830 = vmatprep.mubr.bf16.mxu0 0
      %2831 = vmatmul.mubr.bf16.gmra.mrb[0].mxu0 %v2688
      %v2832 = vpop.f32.mrb[0].mxu0
      %v2833 = vadd.f32 0.0, %v2832
      %v2834 = vpop.f32.mrb[0].mxu0
      %v2835 = vpop.f32.mrb[0].mxu0
      %v2836 = vadd.f32 0.0, %v2835
      %v2837 = vpop.f32.mrb[0].mxu0
      %2838 = vmatprep.mubr.bf16.mxu0 0
      %2839 = vmatmul.mubr.bf16.gmra.mrb[0].mxu0 %v2691
      %v2840 = vpop.f32.mrb[0].mxu0
      %v2841 = vadd.f32 0.0, %v2840
      %v2842 = vpop.f32.mrb[0].mxu0
      %v2843 = vpop.f32.mrb[0].mxu0
      %v2844 = vadd.f32 0.0, %v2843
      %v2845 = vpop.f32.mrb[0].mxu0
      %2846 = vmatprep.mubr.bf16.mxu0 0
      %2847 = vmatmul.mubr.bf16.gmra.mrb[0].mxu0 %v2694
      %v2848 = vpop.f32.mrb[0].mxu0
      %v2849 = vadd.f32 0.0, %v2848
      %v2850 = vpop.f32.mrb[0].mxu0
      %v2851 = vpop.f32.mrb[0].mxu0
      %v2852 = vadd.f32 0.0, %v2851
      %v2853 = vpop.f32.mrb[0].mxu0
      %2854 = vmatprep.mubr.bf16.mxu0 0
      %2855 = vmatmul.mubr.bf16.gmra.mrb[0].mxu0 %v2697
      %v2856 = vpop.f32.mrb[0].mxu0
      %v2857 = vadd.f32 0.0, %v2856
      %v2858 = vpop.f32.mrb[0].mxu0
      %v2859 = vpop.f32.mrb[0].mxu0
      %v2860 = vadd.f32 0.0, %v2859
      %v2861 = vpop.f32.mrb[0].mxu0
      %2862 = vdwg.mxu0
      %v2863 = vadd.f32 %v2505, %v2737
      %v2864 = vadd.f32 %v2506, %v2740
      %v2865 = vadd.f32 %v2507, %v2745
      %v2866 = vadd.f32 %v2508, %v2748
      %v2867 = vadd.f32 %v2509, %v2753
      %v2868 = vadd.f32 %v2510, %v2756
      %v2869 = vadd.f32 %v2511, %v2761
      %v2870 = vadd.f32 %v2512, %v2764
      %v2871 = vadd.f32 %v2513, %v2769
      %v2872 = vadd.f32 %v2514, %v2772
      %v2873 = vadd.f32 %v2515, %v2777
      %v2874 = vadd.f32 %v2516, %v2780
      %v2875 = vadd.f32 %v2517, %v2785
      %v2876 = vadd.f32 %v2518, %v2788
      %v2877 = vadd.f32 %v2519, %v2793
      %v2878 = vadd.f32 %v2520, %v2796
      %v2879 = vadd.f32 %v2521, %v2801
      %v2880 = vadd.f32 %v2522, %v2804
      %v2881 = vadd.f32 %v2523, %v2809
      %v2882 = vadd.f32 %v2524, %v2812
      %v2883 = vadd.f32 %v2525, %v2817
      %v2884 = vadd.f32 %v2526, %v2820
      %v2885 = vadd.f32 %v2527, %v2825
      %v2886 = vadd.f32 %v2528, %v2828
      %v2887 = vadd.f32 %v2529, %v2833
      %v2888 = vadd.f32 %v2530, %v2836
      %v2889 = vadd.f32 %v2531, %v2841
      %v2890 = vadd.f32 %v2532, %v2844
      %v2891 = vadd.f32 %v2533, %v2849
      %v2892 = vadd.f32 %v2534, %v2852
      %v2893 = vadd.f32 %v2535, %v2857
      %v2894 = vadd.f32 %v2536, %v2860
      %v2895 = vld [vmem:[%s789] sm:$0xf]
      %v2896 = vld [vmem:[%s789 + $0x4] sm:$0xf]
      %v2897 = vld [vmem:[%s789 + $0x8] sm:$0x1]
      %v2898 = vld [vmem:[%s789 + $0xc] sm:$0xf]
      %v2899 = vld [vmem:[%s789 + $0x10] sm:$0xf]
      %v2900 = vld [vmem:[%s789 + $0x14] sm:$0x1]
      %v2901 = vld [vmem:[%s789 + $0x18] sm:$0xf]
      %v2902 = vld [vmem:[%s789 + $0x1c] sm:$0xf]
      %v2903 = vld [vmem:[%s789 + $0x20] sm:$0x1]
      %v2904 = vld [vmem:[%s789 + $0x24] sm:$0xf]
      %v2905 = vld [vmem:[%s789 + $0x28] sm:$0xf]
      %v2906 = vld [vmem:[%s789 + $0x2c] sm:$0x1]
      %v2907 = vld [vmem:[%s789 + $0x30] sm:$0xf]
      %v2908 = vld [vmem:[%s789 + $0x34] sm:$0xf]
      %v2909 = vld [vmem:[%s789 + $0x38] sm:$0x1]
      %v2910 = vld [vmem:[%s789 + $0x3c] sm:$0xf]
      %v2911 = vld [vmem:[%s789 + $0x40] sm:$0xf]
      %v2912 = vld [vmem:[%s789 + $0x44] sm:$0x1]
      %v2913 = vld [vmem:[%s789 + $0x48] sm:$0xf]
      %v2914 = vld [vmem:[%s789 + $0x4c] sm:$0xf]
      %v2915 = vld [vmem:[%s789 + $0x50] sm:$0x1]
      %v2916 = vld [vmem:[%s789 + $0x54] sm:$0xf]
      %v2917 = vld [vmem:[%s789 + $0x58] sm:$0xf]
      %v2918 = vld [vmem:[%s789 + $0x5c] sm:$0x1]
      %v2919 = vld [vmem:[%s789 + $0x60] sm:$0xf]
      %v2920 = vld [vmem:[%s789 + $0x64] sm:$0xf]
      %v2921 = vld [vmem:[%s789 + $0x68] sm:$0x1]
      %v2922 = vld [vmem:[%s789 + $0x6c] sm:$0xf]
      %v2923 = vld [vmem:[%s789 + $0x70] sm:$0xf]
      %v2924 = vld [vmem:[%s789 + $0x74] sm:$0x1]
      %v2925 = vld [vmem:[%s789 + $0x78] sm:$0xf]
      %v2926 = vld [vmem:[%s789 + $0x7c] sm:$0xf]
      %v2927 = vld [vmem:[%s789 + $0x80] sm:$0x1]
      %v2928 = vld [vmem:[%s789 + $0x84] sm:$0xf]
      %v2929 = vld [vmem:[%s789 + $0x88] sm:$0xf]
      %v2930 = vld [vmem:[%s789 + $0x8c] sm:$0x1]
      %v2931 = vld [vmem:[%s789 + $0x90] sm:$0xf]
      %v2932 = vld [vmem:[%s789 + $0x94] sm:$0xf]
      %v2933 = vld [vmem:[%s789 + $0x98] sm:$0x1]
      %v2934 = vld [vmem:[%s789 + $0x9c] sm:$0xf]
      %v2935 = vld [vmem:[%s789 + $0xa0] sm:$0xf]
      %v2936 = vld [vmem:[%s789 + $0xa4] sm:$0x1]
      %v2937 = vld [vmem:[%s789 + $0xa8] sm:$0xf]
      %v2938 = vld [vmem:[%s789 + $0xac] sm:$0xf]
      %v2939 = vld [vmem:[%s789 + $0xb0] sm:$0x1]
      %v2940 = vld [vmem:[%s789 + $0xb4] sm:$0xf]
      %v2941 = vld [vmem:[%s789 + $0xb8] sm:$0xf]
      %v2942 = vld [vmem:[%s789 + $0xbc] sm:$0x1]
      %v2944 = vshrl.u32 %v2895, 16
      %v2946 = vrot.slane %v2944, 4
      %v2947 = vshll.u32 %v2895, 16
      %v2949 = vrot.slane %v2947, 5
      %v2950 = vor.u32 %v2946, %v2949
      %v2951 = vrot.slane %v2950, 4
      %v2953 = vshll.u32 %v2896, 16
      %v2955 = vrot.slane %v2953, 5
      %v2956 = vsel %vm1139, %v2951, %v2955
      %v2957 = vshrl.u32 %v2896, 16
      %v2959 = vrot.slane %v2957, 4
      %v2960 = vor.u32 %v2959, %v2955
      %v2961 = vrot.slane %v2960, 4
      %v2963 = vshll.u32 %v2897, 16
      %v2965 = vrot.slane %v2963, 5
      %v2966 = vsel %vm1139, %v2961, %v2965
      %v2968 = vshrl.u32 %v2898, 16
      %v2970 = vrot.slane %v2968, 4
      %v2971 = vshll.u32 %v2898, 16
      %v2973 = vrot.slane %v2971, 5
      %v2974 = vor.u32 %v2970, %v2973
      %v2975 = vrot.slane %v2974, 4
      %v2977 = vshll.u32 %v2899, 16
      %v2979 = vrot.slane %v2977, 5
      %v2980 = vsel %vm1139, %v2975, %v2979
      %v2981 = vshrl.u32 %v2899, 16
      %v2983 = vrot.slane %v2981, 4
      %v2984 = vor.u32 %v2983, %v2979
      %v2985 = vrot.slane %v2984, 4
      %v2987 = vshll.u32 %v2900, 16
      %v2989 = vrot.slane %v2987, 5
      %v2990 = vsel %vm1139, %v2985, %v2989
      %v2992 = vshrl.u32 %v2901, 16
      %v2994 = vrot.slane %v2992, 4
      %v2995 = vshll.u32 %v2901, 16
      %v2997 = vrot.slane %v2995, 5
      %v2998 = vor.u32 %v2994, %v2997
      %v2999 = vrot.slane %v2998, 4
      %v3001 = vshll.u32 %v2902, 16
      %v3003 = vrot.slane %v3001, 5
      %v3004 = vsel %vm1139, %v2999, %v3003
      %v3005 = vshrl.u32 %v2902, 16
      %v3007 = vrot.slane %v3005, 4
      %v3008 = vor.u32 %v3007, %v3003
      %v3009 = vrot.slane %v3008, 4
      %v3011 = vshll.u32 %v2903, 16
      %v3013 = vrot.slane %v3011, 5
      %v3014 = vsel %vm1139, %v3009, %v3013
      %v3016 = vshrl.u32 %v2904, 16
      %v3018 = vrot.slane %v3016, 4
      %v3019 = vshll.u32 %v2904, 16
      %v3021 = vrot.slane %v3019, 5
      %v3022 = vor.u32 %v3018, %v3021
      %v3023 = vrot.slane %v3022, 4
      %v3025 = vshll.u32 %v2905, 16
      %v3027 = vrot.slane %v3025, 5
      %v3028 = vsel %vm1139, %v3023, %v3027
      %v3029 = vshrl.u32 %v2905, 16
      %v3031 = vrot.slane %v3029, 4
      %v3032 = vor.u32 %v3031, %v3027
      %v3033 = vrot.slane %v3032, 4
      %v3035 = vshll.u32 %v2906, 16
      %v3037 = vrot.slane %v3035, 5
      %v3038 = vsel %vm1139, %v3033, %v3037
      %v3040 = vshrl.u32 %v2907, 16
      %v3042 = vrot.slane %v3040, 4
      %v3043 = vshll.u32 %v2907, 16
      %v3045 = vrot.slane %v3043, 5
      %v3046 = vor.u32 %v3042, %v3045
      %v3047 = vrot.slane %v3046, 4
      %v3049 = vshll.u32 %v2908, 16
      %v3051 = vrot.slane %v3049, 5
      %v3052 = vsel %vm1139, %v3047, %v3051
      %v3053 = vshrl.u32 %v2908, 16
      %v3055 = vrot.slane %v3053, 4
      %v3056 = vor.u32 %v3055, %v3051
      %v3057 = vrot.slane %v3056, 4
      %v3059 = vshll.u32 %v2909, 16
      %v3061 = vrot.slane %v3059, 5
      %v3062 = vsel %vm1139, %v3057, %v3061
      %v3064 = vshrl.u32 %v2910, 16
      %v3066 = vrot.slane %v3064, 4
      %v3067 = vshll.u32 %v2910, 16
      %v3069 = vrot.slane %v3067, 5
      %v3070 = vor.u32 %v3066, %v3069
      %v3071 = vrot.slane %v3070, 4
      %v3073 = vshll.u32 %v2911, 16
      %v3075 = vrot.slane %v3073, 5
      %v3076 = vsel %vm1139, %v3071, %v3075
      %v3077 = vshrl.u32 %v2911, 16
      %v3079 = vrot.slane %v3077, 4
      %v3080 = vor.u32 %v3079, %v3075
      %v3081 = vrot.slane %v3080, 4
      %v3083 = vshll.u32 %v2912, 16
      %v3085 = vrot.slane %v3083, 5
      %v3086 = vsel %vm1139, %v3081, %v3085
      %v3088 = vshrl.u32 %v2913, 16
      %v3090 = vrot.slane %v3088, 4
      %v3091 = vshll.u32 %v2913, 16
      %v3093 = vrot.slane %v3091, 5
      %v3094 = vor.u32 %v3090, %v3093
      %v3095 = vrot.slane %v3094, 4
      %v3097 = vshll.u32 %v2914, 16
      %v3099 = vrot.slane %v3097, 5
      %v3100 = vsel %vm1139, %v3095, %v3099
      %v3101 = vshrl.u32 %v2914, 16
      %v3103 = vrot.slane %v3101, 4
      %v3104 = vor.u32 %v3103, %v3099
      %v3105 = vrot.slane %v3104, 4
      %v3107 = vshll.u32 %v2915, 16
      %v3109 = vrot.slane %v3107, 5
      %v3110 = vsel %vm1139, %v3105, %v3109
      %v3112 = vshrl.u32 %v2916, 16
      %v3114 = vrot.slane %v3112, 4
      %v3115 = vshll.u32 %v2916, 16
      %v3117 = vrot.slane %v3115, 5
      %v3118 = vor.u32 %v3114, %v3117
      %v3119 = vrot.slane %v3118, 4
      %v3121 = vshll.u32 %v2917, 16
      %v3123 = vrot.slane %v3121, 5
      %v3124 = vsel %vm1139, %v3119, %v3123
      %v3125 = vshrl.u32 %v2917, 16
      %v3127 = vrot.slane %v3125, 4
      %v3128 = vor.u32 %v3127, %v3123
      %v3129 = vrot.slane %v3128, 4
      %v3131 = vshll.u32 %v2918, 16
      %v3133 = vrot.slane %v3131, 5
      %v3134 = vsel %vm1139, %v3129, %v3133
      %v3136 = vshrl.u32 %v2919, 16
      %v3138 = vrot.slane %v3136, 4
      %v3139 = vshll.u32 %v2919, 16
      %v3141 = vrot.slane %v3139, 5
      %v3142 = vor.u32 %v3138, %v3141
      %v3143 = vrot.slane %v3142, 4
      %v3145 = vshll.u32 %v2920, 16
      %v3147 = vrot.slane %v3145, 5
      %v3148 = vsel %vm1139, %v3143, %v3147
      %v3149 = vshrl.u32 %v2920, 16
      %v3151 = vrot.slane %v3149, 4
      %v3152 = vor.u32 %v3151, %v3147
      %v3153 = vrot.slane %v3152, 4
      %v3155 = vshll.u32 %v2921, 16
      %v3157 = vrot.slane %v3155, 5
      %v3158 = vsel %vm1139, %v3153, %v3157
      %v3160 = vshrl.u32 %v2922, 16
      %v3162 = vrot.slane %v3160, 4
      %v3163 = vshll.u32 %v2922, 16
      %v3165 = vrot.slane %v3163, 5
      %v3166 = vor.u32 %v3162, %v3165
      %v3167 = vrot.slane %v3166, 4
      %v3169 = vshll.u32 %v2923, 16
      %v3171 = vrot.slane %v3169, 5
      %v3172 = vsel %vm1139, %v3167, %v3171
      %v3173 = vshrl.u32 %v2923, 16
      %v3175 = vrot.slane %v3173, 4
      %v3176 = vor.u32 %v3175, %v3171
      %v3177 = vrot.slane %v3176, 4
      %v3179 = vshll.u32 %v2924, 16
      %v3181 = vrot.slane %v3179, 5
      %v3182 = vsel %vm1139, %v3177, %v3181
      %v3184 = vshrl.u32 %v2925, 16
      %v3186 = vrot.slane %v3184, 4
      %v3187 = vshll.u32 %v2925, 16
      %v3189 = vrot.slane %v3187, 5
      %v3190 = vor.u32 %v3186, %v3189
      %v3191 = vrot.slane %v3190, 4
      %v3193 = vshll.u32 %v2926, 16
      %v3195 = vrot.slane %v3193, 5
      %v3196 = vsel %vm1139, %v3191, %v3195
      %v3197 = vshrl.u32 %v2926, 16
      %v3199 = vrot.slane %v3197, 4
      %v3200 = vor.u32 %v3199, %v3195
      %v3201 = vrot.slane %v3200, 4
      %v3203 = vshll.u32 %v2927, 16
      %v3205 = vrot.slane %v3203, 5
      %v3206 = vsel %vm1139, %v3201, %v3205
      %v3208 = vshrl.u32 %v2928, 16
      %v3210 = vrot.slane %v3208, 4
      %v3211 = vshll.u32 %v2928, 16
      %v3213 = vrot.slane %v3211, 5
      %v3214 = vor.u32 %v3210, %v3213
      %v3215 = vrot.slane %v3214, 4
      %v3217 = vshll.u32 %v2929, 16
      %v3219 = vrot.slane %v3217, 5
      %v3220 = vsel %vm1139, %v3215, %v3219
      %v3221 = vshrl.u32 %v2929, 16
      %v3223 = vrot.slane %v3221, 4
      %v3224 = vor.u32 %v3223, %v3219
      %v3225 = vrot.slane %v3224, 4
      %v3227 = vshll.u32 %v2930, 16
      %v3229 = vrot.slane %v3227, 5
      %v3230 = vsel %vm1139, %v3225, %v3229
      %v3232 = vshrl.u32 %v2931, 16
      %v3234 = vrot.slane %v3232, 4
      %v3235 = vshll.u32 %v2931, 16
      %v3237 = vrot.slane %v3235, 5
      %v3238 = vor.u32 %v3234, %v3237
      %v3239 = vrot.slane %v3238, 4
      %v3241 = vshll.u32 %v2932, 16
      %v3243 = vrot.slane %v3241, 5
      %v3244 = vsel %vm1139, %v3239, %v3243
      %v3245 = vshrl.u32 %v2932, 16
      %v3247 = vrot.slane %v3245, 4
      %v3248 = vor.u32 %v3247, %v3243
      %v3249 = vrot.slane %v3248, 4
      %v3251 = vshll.u32 %v2933, 16
      %v3253 = vrot.slane %v3251, 5
      %v3254 = vsel %vm1139, %v3249, %v3253
      %v3256 = vshrl.u32 %v2934, 16
      %v3258 = vrot.slane %v3256, 4
      %v3259 = vshll.u32 %v2934, 16
      %v3261 = vrot.slane %v3259, 5
      %v3262 = vor.u32 %v3258, %v3261
      %v3263 = vrot.slane %v3262, 4
      %v3265 = vshll.u32 %v2935, 16
      %v3267 = vrot.slane %v3265, 5
      %v3268 = vsel %vm1139, %v3263, %v3267
      %v3269 = vshrl.u32 %v2935, 16
      %v3271 = vrot.slane %v3269, 4
      %v3272 = vor.u32 %v3271, %v3267
      %v3273 = vrot.slane %v3272, 4
      %v3275 = vshll.u32 %v2936, 16
      %v3277 = vrot.slane %v3275, 5
      %v3278 = vsel %vm1139, %v3273, %v3277
      %v3280 = vshrl.u32 %v2937, 16
      %v3282 = vrot.slane %v3280, 4
      %v3283 = vshll.u32 %v2937, 16
      %v3285 = vrot.slane %v3283, 5
      %v3286 = vor.u32 %v3282, %v3285
      %v3287 = vrot.slane %v3286, 4
      %v3289 = vshll.u32 %v2938, 16
      %v3291 = vrot.slane %v3289, 5
      %v3292 = vsel %vm1139, %v3287, %v3291
      %v3293 = vshrl.u32 %v2938, 16
      %v3295 = vrot.slane %v3293, 4
      %v3296 = vor.u32 %v3295, %v3291
      %v3297 = vrot.slane %v3296, 4
      %v3299 = vshll.u32 %v2939, 16
      %v3301 = vrot.slane %v3299, 5
      %v3302 = vsel %vm1139, %v3297, %v3301
      %v3304 = vshrl.u32 %v2940, 16
      %v3306 = vrot.slane %v3304, 4
      %v3307 = vshll.u32 %v2940, 16
      %v3309 = vrot.slane %v3307, 5
      %v3310 = vor.u32 %v3306, %v3309
      %v3311 = vrot.slane %v3310, 4
      %v3313 = vshll.u32 %v2941, 16
      %v3315 = vrot.slane %v3313, 5
      %v3316 = vsel %vm1139, %v3311, %v3315
      %v3317 = vshrl.u32 %v2941, 16
      %v3319 = vrot.slane %v3317, 4
      %v3320 = vor.u32 %v3319, %v3315
      %v3321 = vrot.slane %v3320, 4
      %v3323 = vshll.u32 %v2942, 16
      %v3325 = vrot.slane %v3323, 5
      %v3326 = vsel %vm1139, %v3321, %v3325
      %s3327 = scalar_lea.vmem %s3, 8
      %v3328 = vld [vmem:[%s3327] sm:$0x3]
      %v3329 = vunpack.c.l.b16 %v2956
      %v3330 = vunpack.c.l.b16 %v2966
      %v3331 = vunpack.c.l.b16 %v2980
      %v3332 = vunpack.c.l.b16 %v2990
      %v3333 = vunpack.c.l.b16 %v3004
      %v3334 = vunpack.c.l.b16 %v3014
      %v3335 = vunpack.c.l.b16 %v3028
      %v3336 = vunpack.c.l.b16 %v3038
      %v3337 = vunpack.c.l.b16 %v3052
      %v3338 = vunpack.c.l.b16 %v3062
      %v3339 = vunpack.c.l.b16 %v3076
      %v3340 = vunpack.c.l.b16 %v3086
      %v3341 = vunpack.c.l.b16 %v3100
      %v3342 = vunpack.c.l.b16 %v3110
      %v3343 = vunpack.c.l.b16 %v3124
      %v3344 = vunpack.c.l.b16 %v3134
      %v3345 = vunpack.c.l.b16 %v3148
      %v3346 = vunpack.c.l.b16 %v3158
      %v3347 = vunpack.c.l.b16 %v3172
      %v3348 = vunpack.c.l.b16 %v3182
      %v3349 = vunpack.c.l.b16 %v3196
      %v3350 = vunpack.c.l.b16 %v3206
      %v3351 = vunpack.c.l.b16 %v3220
      %v3352 = vunpack.c.l.b16 %v3230
      %v3353 = vunpack.c.l.b16 %v3244
      %v3354 = vunpack.c.l.b16 %v3254
      %v3355 = vunpack.c.l.b16 %v3268
      %v3356 = vunpack.c.l.b16 %v3278
      %v3357 = vunpack.c.l.b16 %v3292
      %v3358 = vunpack.c.l.b16 %v3302
      %v3359 = vunpack.c.l.b16 %v3316
      %v3360 = vunpack.c.l.b16 %v3326
      %v3361 = vpack.c.b16 %v3330, %v3329
      %v3362 = vpack.c.b16 %v3332, %v3331
      %v3363 = vpack.c.b16 %v3334, %v3333
      %v3364 = vpack.c.b16 %v3336, %v3335
      %v3365 = vpack.c.b16 %v3338, %v3337
      %v3366 = vpack.c.b16 %v3340, %v3339
      %v3367 = vpack.c.b16 %v3342, %v3341
      %v3368 = vpack.c.b16 %v3344, %v3343
      %v3369 = vpack.c.b16 %v3346, %v3345
      %v3370 = vpack.c.b16 %v3348, %v3347
      %v3371 = vpack.c.b16 %v3350, %v3349
      %v3372 = vpack.c.b16 %v3352, %v3351
      %v3373 = vpack.c.b16 %v3354, %v3353
      %v3374 = vpack.c.b16 %v3356, %v3355
      %v3375 = vpack.c.b16 %v3358, %v3357
      %v3376 = vpack.c.b16 %v3360, %v3359
      %v3378 = vsel %vm1574, %v3361, 0
      %v3381 = vsel %vm1574, %v3362, 0
      %v3384 = vsel %vm1574, %v3363, 0
      %v3387 = vsel %vm1574, %v3364, 0
      %v3390 = vsel %vm1574, %v3365, 0
      %v3393 = vsel %vm1574, %v3366, 0
      %v3396 = vsel %vm1574, %v3367, 0
      %v3399 = vsel %vm1574, %v3368, 0
      %v3402 = vsel %vm1574, %v3369, 0
      %v3405 = vsel %vm1574, %v3370, 0
      %v3408 = vsel %vm1574, %v3371, 0
      %v3411 = vsel %vm1574, %v3372, 0
      %v3414 = vsel %vm1574, %v3373, 0
      %v3417 = vsel %vm1574, %v3374, 0
      %v3420 = vsel %vm1574, %v3375, 0
      %v3423 = vsel %vm1574, %v3376, 0
      %v3426 = vsel %vm1623, %v3328, 0
      %3428 = vmatprep.subr.bf16.mxu0 0
      %3429 = vmatpush1.bf16.msra.mxu0 %v3426
      %3430 = vmatprep.subr.bf16.mxu0 0
      %3431 = vmatpush1.bf16.msra.mxu0 0
      %3432 = vmatprep.subr.bf16.mxu0 0
      %3433 = vmatpush1.bf16.msra.mxu0 0
      %3434 = vmatprep.subr.bf16.mxu0 0
      %3435 = vmatpush1.bf16.msra.mxu0 0
      %3436 = vmatprep.subr.bf16.mxu0 0
      %3437 = vmatpush1.bf16.msra.mxu0 0
      %3438 = vmatprep.subr.bf16.mxu0 0
      %3439 = vmatpush1.bf16.msra.mxu0 0
      %3440 = vmatprep.subr.bf16.mxu0 0
      %3441 = vmatpush1.bf16.msra.mxu0 0
      %3442 = vmatprep.subr.bf16.mxu0 0
      %3443 = vmatpush1.bf16.msra.mxu0 0
      %3444 = vmatprep.subr.bf16.mxu0 0
      %3445 = vmatpush1.bf16.msra.mxu0 0
      %3446 = vmatprep.subr.bf16.mxu0 0
      %3447 = vmatpush1.bf16.msra.mxu0 0
      %3448 = vmatprep.subr.bf16.mxu0 0
      %3449 = vmatpush1.bf16.msra.mxu0 0
      %3450 = vmatprep.subr.bf16.mxu0 0
      %3451 = vmatpush1.bf16.msra.mxu0 0
      %3452 = vmatprep.subr.bf16.mxu0 0
      %3453 = vmatpush1.bf16.msra.mxu0 0
      %3454 = vmatprep.subr.bf16.mxu0 0
      %3455 = vmatpush1.bf16.msra.mxu0 0
      %3456 = vmatprep.subr.bf16.mxu0 0
      %3457 = vmatpush1.bf16.msra.mxu0 0
      %3458 = vmatprep.subr.bf16.mxu0 0
      %3459 = vmatpush1.bf16.msra.mxu0 0
      %3460 = vmatprep.mubr.bf16.mxu0 0
      %3461 = vmatmul.mubr.bf16.gmra.mrb[0].mxu0 %v3378
      %v3462 = vpop.f32.mrb[0].mxu0
      %v3463 = vadd.f32 0.0, %v3462
      %v3464 = vpop.f32.mrb[0].mxu0
      %v3465 = vpop.f32.mrb[0].mxu0
      %v3466 = vadd.f32 0.0, %v3465
      %v3467 = vpop.f32.mrb[0].mxu0
      %3468 = vmatprep.mubr.bf16.mxu0 0
      %3469 = vmatmul.mubr.bf16.gmra.mrb[0].mxu0 %v3381
      %v3470 = vpop.f32.mrb[0].mxu0
      %v3471 = vadd.f32 0.0, %v3470
      %v3472 = vpop.f32.mrb[0].mxu0
      %v3473 = vpop.f32.mrb[0].mxu0
      %v3474 = vadd.f32 0.0, %v3473
      %v3475 = vpop.f32.mrb[0].mxu0
      %3476 = vmatprep.mubr.bf16.mxu0 0
      %3477 = vmatmul.mubr.bf16.gmra.mrb[0].mxu0 %v3384
      %v3478 = vpop.f32.mrb[0].mxu0
      %v3479 = vadd.f32 0.0, %v3478
      %v3480 = vpop.f32.mrb[0].mxu0
      %v3481 = vpop.f32.mrb[0].mxu0
      %v3482 = vadd.f32 0.0, %v3481
      %v3483 = vpop.f32.mrb[0].mxu0
      %3484 = vmatprep.mubr.bf16.mxu0 0
      %3485 = vmatmul.mubr.bf16.gmra.mrb[0].mxu0 %v3387
      %v3486 = vpop.f32.mrb[0].mxu0
      %v3487 = vadd.f32 0.0, %v3486
      %v3488 = vpop.f32.mrb[0].mxu0
      %v3489 = vpop.f32.mrb[0].mxu0
      %v3490 = vadd.f32 0.0, %v3489
      %v3491 = vpop.f32.mrb[0].mxu0
      %3492 = vmatprep.mubr.bf16.mxu0 0
      %3493 = vmatmul.mubr.bf16.gmra.mrb[0].mxu0 %v3390
      %v3494 = vpop.f32.mrb[0].mxu0
      %v3495 = vadd.f32 0.0, %v3494
      %v3496 = vpop.f32.mrb[0].mxu0
      %v3497 = vpop.f32.mrb[0].mxu0
      %v3498 = vadd.f32 0.0, %v3497
      %v3499 = vpop.f32.mrb[0].mxu0
      %3500 = vmatprep.mubr.bf16.mxu0 0
      %3501 = vmatmul.mubr.bf16.gmra.mrb[0].mxu0 %v3393
      %v3502 = vpop.f32.mrb[0].mxu0
      %v3503 = vadd.f32 0.0, %v3502
      %v3504 = vpop.f32.mrb[0].mxu0
      %v3505 = vpop.f32.mrb[0].mxu0
      %v3506 = vadd.f32 0.0, %v3505
      %v3507 = vpop.f32.mrb[0].mxu0
      %3508 = vmatprep.mubr.bf16.mxu0 0
      %3509 = vmatmul.mubr.bf16.gmra.mrb[0].mxu0 %v3396
      %v3510 = vpop.f32.mrb[0].mxu0
      %v3511 = vadd.f32 0.0, %v3510
      %v3512 = vpop.f32.mrb[0].mxu0
      %v3513 = vpop.f32.mrb[0].mxu0
      %v3514 = vadd.f32 0.0, %v3513
      %v3515 = vpop.f32.mrb[0].mxu0
      %3516 = vmatprep.mubr.bf16.mxu0 0
      %3517 = vmatmul.mubr.bf16.gmra.mrb[0].mxu0 %v3399
      %v3518 = vpop.f32.mrb[0].mxu0
      %v3519 = vadd.f32 0.0, %v3518
      %v3520 = vpop.f32.mrb[0].mxu0
      %v3521 = vpop.f32.mrb[0].mxu0
      %v3522 = vadd.f32 0.0, %v3521
      %v3523 = vpop.f32.mrb[0].mxu0
      %3524 = vmatprep.mubr.bf16.mxu0 0
      %3525 = vmatmul.mubr.bf16.gmra.mrb[0].mxu0 %v3402
      %v3526 = vpop.f32.mrb[0].mxu0
      %v3527 = vadd.f32 0.0, %v3526
      %v3528 = vpop.f32.mrb[0].mxu0
      %v3529 = vpop.f32.mrb[0].mxu0
      %v3530 = vadd.f32 0.0, %v3529
      %v3531 = vpop.f32.mrb[0].mxu0
      %3532 = vmatprep.mubr.bf16.mxu0 0
      %3533 = vmatmul.mubr.bf16.gmra.mrb[0].mxu0 %v3405
      %v3534 = vpop.f32.mrb[0].mxu0
      %v3535 = vadd.f32 0.0, %v3534
      %v3536 = vpop.f32.mrb[0].mxu0
      %v3537 = vpop.f32.mrb[0].mxu0
      %v3538 = vadd.f32 0.0, %v3537
      %v3539 = vpop.f32.mrb[0].mxu0
      %3540 = vmatprep.mubr.bf16.mxu0 0
      %3541 = vmatmul.mubr.bf16.gmra.mrb[0].mxu0 %v3408
      %v3542 = vpop.f32.mrb[0].mxu0
      %v3543 = vadd.f32 0.0, %v3542
      %v3544 = vpop.f32.mrb[0].mxu0
      %v3545 = vpop.f32.mrb[0].mxu0
      %v3546 = vadd.f32 0.0, %v3545
      %v3547 = vpop.f32.mrb[0].mxu0
      %3548 = vmatprep.mubr.bf16.mxu0 0
      %3549 = vmatmul.mubr.bf16.gmra.mrb[0].mxu0 %v3411
      %v3550 = vpop.f32.mrb[0].mxu0
      %v3551 = vadd.f32 0.0, %v3550
      %v3552 = vpop.f32.mrb[0].mxu0
      %v3553 = vpop.f32.mrb[0].mxu0
      %v3554 = vadd.f32 0.0, %v3553
      %v3555 = vpop.f32.mrb[0].mxu0
      %3556 = vmatprep.mubr.bf16.mxu0 0
      %3557 = vmatmul.mubr.bf16.gmra.mrb[0].mxu0 %v3414
      %v3558 = vpop.f32.mrb[0].mxu0
      %v3559 = vadd.f32 0.0, %v3558
      %v3560 = vpop.f32.mrb[0].mxu0
      %v3561 = vpop.f32.mrb[0].mxu0
      %v3562 = vadd.f32 0.0, %v3561
      %v3563 = vpop.f32.mrb[0].mxu0
      %3564 = vmatprep.mubr.bf16.mxu0 0
      %3565 = vmatmul.mubr.bf16.gmra.mrb[0].mxu0 %v3417
      %v3566 = vpop.f32.mrb[0].mxu0
      %v3567 = vadd.f32 0.0, %v3566
      %v3568 = vpop.f32.mrb[0].mxu0
      %v3569 = vpop.f32.mrb[0].mxu0
      %v3570 = vadd.f32 0.0, %v3569
      %v3571 = vpop.f32.mrb[0].mxu0
      %3572 = vmatprep.mubr.bf16.mxu0 0
      %3573 = vmatmul.mubr.bf16.gmra.mrb[0].mxu0 %v3420
      %v3574 = vpop.f32.mrb[0].mxu0
      %v3575 = vadd.f32 0.0, %v3574
      %v3576 = vpop.f32.mrb[0].mxu0
      %v3577 = vpop.f32.mrb[0].mxu0
      %v3578 = vadd.f32 0.0, %v3577
      %v3579 = vpop.f32.mrb[0].mxu0
      %3580 = vmatprep.mubr.bf16.mxu0 0
      %3581 = vmatmul.mubr.bf16.gmra.mrb[0].mxu0 %v3423
      %v3582 = vpop.f32.mrb[0].mxu0
      %v3583 = vadd.f32 0.0, %v3582
      %v3584 = vpop.f32.mrb[0].mxu0
      %v3585 = vpop.f32.mrb[0].mxu0
      %v3586 = vadd.f32 0.0, %v3585
      %v3587 = vpop.f32.mrb[0].mxu0
      %3588 = vdwg.mxu0
      %v3589 = vadd.f32 %v2863, %v3463
      %v3590 = vadd.f32 %v2864, %v3466
      %v3591 = vadd.f32 %v2865, %v3471
      %v3592 = vadd.f32 %v2866, %v3474
      %v3593 = vadd.f32 %v2867, %v3479
      %v3594 = vadd.f32 %v2868, %v3482
      %v3595 = vadd.f32 %v2869, %v3487
      %v3596 = vadd.f32 %v2870, %v3490
      %v3597 = vadd.f32 %v2871, %v3495
      %v3598 = vadd.f32 %v2872, %v3498
      %v3599 = vadd.f32 %v2873, %v3503
      %v3600 = vadd.f32 %v2874, %v3506
      %v3601 = vadd.f32 %v2875, %v3511
      %v3602 = vadd.f32 %v2876, %v3514
      %v3603 = vadd.f32 %v2877, %v3519
      %v3604 = vadd.f32 %v2878, %v3522
      %v3605 = vadd.f32 %v2879, %v3527
      %v3606 = vadd.f32 %v2880, %v3530
      %v3607 = vadd.f32 %v2881, %v3535
      %v3608 = vadd.f32 %v2882, %v3538
      %v3609 = vadd.f32 %v2883, %v3543
      %v3610 = vadd.f32 %v2884, %v3546
      %v3611 = vadd.f32 %v2885, %v3551
      %v3612 = vadd.f32 %v2886, %v3554
      %v3613 = vadd.f32 %v2887, %v3559
      %v3614 = vadd.f32 %v2888, %v3562
      %v3615 = vadd.f32 %v2889, %v3567
      %v3616 = vadd.f32 %v2890, %v3570
      %v3617 = vadd.f32 %v2891, %v3575
      %v3618 = vadd.f32 %v2892, %v3578
      %v3619 = vadd.f32 %v2893, %v3583
      %v3620 = vadd.f32 %v2894, %v3586
      %v3621 = vld [vmem:[%s789] sm:$0xe]
      %v3622 = vld [vmem:[%s789 + $0xc] sm:$0xe]
      %v3623 = vld [vmem:[%s789 + $0x18] sm:$0xe]
      %v3624 = vld [vmem:[%s789 + $0x24] sm:$0xe]
      %v3625 = vld [vmem:[%s789 + $0x30] sm:$0xe]
      %v3626 = vld [vmem:[%s789 + $0x3c] sm:$0xe]
      %v3627 = vld [vmem:[%s789 + $0x48] sm:$0xe]
      %v3628 = vld [vmem:[%s789 + $0x54] sm:$0xe]
      %v3629 = vld [vmem:[%s789 + $0x60] sm:$0xe]
      %v3630 = vld [vmem:[%s789 + $0x6c] sm:$0xe]
      %v3631 = vld [vmem:[%s789 + $0x78] sm:$0xe]
      %v3632 = vld [vmem:[%s789 + $0x84] sm:$0xe]
      %v3633 = vld [vmem:[%s789 + $0x90] sm:$0xe]
      %v3634 = vld [vmem:[%s789 + $0x9c] sm:$0xe]
      %v3635 = vld [vmem:[%s789 + $0xa8] sm:$0xe]
      %v3636 = vld [vmem:[%s789 + $0xb4] sm:$0xe]
      %v3685 = vrot.slane %v3621, 5
      %v3686 = vrot.slane %v3685, 4
      %v3687 = vrot.slane %v2896, 5
      %v3688 = vsel %vm2130, %v3686, %v3687
      %v3689 = vrot.slane %v3687, 4
      %v3690 = vrot.slane %v2897, 5
      %v3691 = vsel %vm2130, %v3689, %v3690
      %v3692 = vrot.slane %v3622, 5
      %v3693 = vrot.slane %v3692, 4
      %v3694 = vrot.slane %v2899, 5
      %v3695 = vsel %vm2130, %v3693, %v3694
      %v3696 = vrot.slane %v3694, 4
      %v3697 = vrot.slane %v2900, 5
      %v3698 = vsel %vm2130, %v3696, %v3697
      %v3699 = vrot.slane %v3623, 5
      %v3700 = vrot.slane %v3699, 4
      %v3701 = vrot.slane %v2902, 5
      %v3702 = vsel %vm2130, %v3700, %v3701
      %v3703 = vrot.slane %v3701, 4
      %v3704 = vrot.slane %v2903, 5
      %v3705 = vsel %vm2130, %v3703, %v3704
      %v3706 = vrot.slane %v3624, 5
      %v3707 = vrot.slane %v3706, 4
      %v3708 = vrot.slane %v2905, 5
      %v3709 = vsel %vm2130, %v3707, %v3708
      %v3710 = vrot.slane %v3708, 4
      %v3711 = vrot.slane %v2906, 5
      %v3712 = vsel %vm2130, %v3710, %v3711
      %v3713 = vrot.slane %v3625, 5
      %v3714 = vrot.slane %v3713, 4
      %v3715 = vrot.slane %v2908, 5
      %v3716 = vsel %vm2130, %v3714, %v3715
      %v3717 = vrot.slane %v3715, 4
      %v3718 = vrot.slane %v2909, 5
      %v3719 = vsel %vm2130, %v3717, %v3718
      %v3720 = vrot.slane %v3626, 5
      %v3721 = vrot.slane %v3720, 4
      %v3722 = vrot.slane %v2911, 5
      %v3723 = vsel %vm2130, %v3721, %v3722
      %v3724 = vrot.slane %v3722, 4
      %v3725 = vrot.slane %v2912, 5
      %v3726 = vsel %vm2130, %v3724, %v3725
      %v3727 = vrot.slane %v3627, 5
      %v3728 = vrot.slane %v3727, 4
      %v3729 = vrot.slane %v2914, 5
      %v3730 = vsel %vm2130, %v3728, %v3729
      %v3731 = vrot.slane %v3729, 4
      %v3732 = vrot.slane %v2915, 5
      %v3733 = vsel %vm2130, %v3731, %v3732
      %v3734 = vrot.slane %v3628, 5
      %v3735 = vrot.slane %v3734, 4
      %v3736 = vrot.slane %v2917, 5
      %v3737 = vsel %vm2130, %v3735, %v3736
      %v3738 = vrot.slane %v3736, 4
      %v3739 = vrot.slane %v2918, 5
      %v3740 = vsel %vm2130, %v3738, %v3739
      %v3741 = vrot.slane %v3629, 5
      %v3742 = vrot.slane %v3741, 4
      %v3743 = vrot.slane %v2920, 5
      %v3744 = vsel %vm2130, %v3742, %v3743
      %v3745 = vrot.slane %v3743, 4
      %v3746 = vrot.slane %v2921, 5
      %v3747 = vsel %vm2130, %v3745, %v3746
      %v3748 = vrot.slane %v3630, 5
      %v3749 = vrot.slane %v3748, 4
      %v3750 = vrot.slane %v2923, 5
      %v3751 = vsel %vm2130, %v3749, %v3750
      %v3752 = vrot.slane %v3750, 4
      %v3753 = vrot.slane %v2924, 5
      %v3754 = vsel %vm2130, %v3752, %v3753
      %v3755 = vrot.slane %v3631, 5
      %v3756 = vrot.slane %v3755, 4
      %v3757 = vrot.slane %v2926, 5
      %v3758 = vsel %vm2130, %v3756, %v3757
      %v3759 = vrot.slane %v3757, 4
      %v3760 = vrot.slane %v2927, 5
      %v3761 = vsel %vm2130, %v3759, %v3760
      %v3762 = vrot.slane %v3632, 5
      %v3763 = vrot.slane %v3762, 4
      %v3764 = vrot.slane %v2929, 5
      %v3765 = vsel %vm2130, %v3763, %v3764
      %v3766 = vrot.slane %v3764, 4
      %v3767 = vrot.slane %v2930, 5
      %v3768 = vsel %vm2130, %v3766, %v3767
      %v3769 = vrot.slane %v3633, 5
      %v3770 = vrot.slane %v3769, 4
      %v3771 = vrot.slane %v2932, 5
      %v3772 = vsel %vm2130, %v3770, %v3771
      %v3773 = vrot.slane %v3771, 4
      %v3774 = vrot.slane %v2933, 5
      %v3775 = vsel %vm2130, %v3773, %v3774
      %v3776 = vrot.slane %v3634, 5
      %v3777 = vrot.slane %v3776, 4
      %v3778 = vrot.slane %v2935, 5
      %v3779 = vsel %vm2130, %v3777, %v3778
      %v3780 = vrot.slane %v3778, 4
      %v3781 = vrot.slane %v2936, 5
      %v3782 = vsel %vm2130, %v3780, %v3781
      %v3783 = vrot.slane %v3635, 5
      %v3784 = vrot.slane %v3783, 4
      %v3785 = vrot.slane %v2938, 5
      %v3786 = vsel %vm2130, %v3784, %v3785
      %v3787 = vrot.slane %v3785, 4
      %v3788 = vrot.slane %v2939, 5
      %v3789 = vsel %vm2130, %v3787, %v3788
      %v3790 = vrot.slane %v3636, 5
      %v3791 = vrot.slane %v3790, 4
      %v3792 = vrot.slane %v2941, 5
      %v3793 = vsel %vm2130, %v3791, %v3792
      %v3794 = vrot.slane %v3792, 4
      %v3795 = vrot.slane %v2942, 5
      %v3796 = vsel %vm2130, %v3794, %v3795
      %s3797 = scalar_lea.vmem %s3, 10
      %v3798 = vld [vmem:[%s3797] sm:$0x3]
      %v3799 = vunpack.c.l.b16 %v3688
      %v3800 = vunpack.c.l.b16 %v3691
      %v3801 = vunpack.c.l.b16 %v3695
      %v3802 = vunpack.c.l.b16 %v3698
      %v3803 = vunpack.c.l.b16 %v3702
      %v3804 = vunpack.c.l.b16 %v3705
      %v3805 = vunpack.c.l.b16 %v3709
      %v3806 = vunpack.c.l.b16 %v3712
      %v3807 = vunpack.c.l.b16 %v3716
      %v3808 = vunpack.c.l.b16 %v3719
      %v3809 = vunpack.c.l.b16 %v3723
      %v3810 = vunpack.c.l.b16 %v3726
      %v3811 = vunpack.c.l.b16 %v3730
      %v3812 = vunpack.c.l.b16 %v3733
      %v3813 = vunpack.c.l.b16 %v3737
      %v3814 = vunpack.c.l.b16 %v3740
      %v3815 = vunpack.c.l.b16 %v3744
      %v3816 = vunpack.c.l.b16 %v3747
      %v3817 = vunpack.c.l.b16 %v3751
      %v3818 = vunpack.c.l.b16 %v3754
      %v3819 = vunpack.c.l.b16 %v3758
      %v3820 = vunpack.c.l.b16 %v3761
      %v3821 = vunpack.c.l.b16 %v3765
      %v3822 = vunpack.c.l.b16 %v3768
      %v3823 = vunpack.c.l.b16 %v3772
      %v3824 = vunpack.c.l.b16 %v3775
      %v3825 = vunpack.c.l.b16 %v3779
      %v3826 = vunpack.c.l.b16 %v3782
      %v3827 = vunpack.c.l.b16 %v3786
      %v3828 = vunpack.c.l.b16 %v3789
      %v3829 = vunpack.c.l.b16 %v3793
      %v3830 = vunpack.c.l.b16 %v3796
      %v3831 = vpack.c.b16 %v3800, %v3799
      %v3832 = vpack.c.b16 %v3802, %v3801
      %v3833 = vpack.c.b16 %v3804, %v3803
      %v3834 = vpack.c.b16 %v3806, %v3805
      %v3835 = vpack.c.b16 %v3808, %v3807
      %v3836 = vpack.c.b16 %v3810, %v3809
      %v3837 = vpack.c.b16 %v3812, %v3811
      %v3838 = vpack.c.b16 %v3814, %v3813
      %v3839 = vpack.c.b16 %v3816, %v3815
      %v3840 = vpack.c.b16 %v3818, %v3817
      %v3841 = vpack.c.b16 %v3820, %v3819
      %v3842 = vpack.c.b16 %v3822, %v3821
      %v3843 = vpack.c.b16 %v3824, %v3823
      %v3844 = vpack.c.b16 %v3826, %v3825
      %v3845 = vpack.c.b16 %v3828, %v3827
      %v3846 = vpack.c.b16 %v3830, %v3829
      %v3848 = vsel %vm1574, %v3831, 0
      %v3851 = vsel %vm1574, %v3832, 0
      %v3854 = vsel %vm1574, %v3833, 0
      %v3857 = vsel %vm1574, %v3834, 0
      %v3860 = vsel %vm1574, %v3835, 0
      %v3863 = vsel %vm1574, %v3836, 0
      %v3866 = vsel %vm1574, %v3837, 0
      %v3869 = vsel %vm1574, %v3838, 0
      %v3872 = vsel %vm1574, %v3839, 0
      %v3875 = vsel %vm1574, %v3840, 0
      %v3878 = vsel %vm1574, %v3841, 0
      %v3881 = vsel %vm1574, %v3842, 0
      %v3884 = vsel %vm1574, %v3843, 0
      %v3887 = vsel %vm1574, %v3844, 0
      %v3890 = vsel %vm1574, %v3845, 0
      %v3893 = vsel %vm1574, %v3846, 0
      %v3896 = vsel %vm1623, %v3798, 0
      %3898 = vmatprep.subr.bf16.mxu0 0
      %3899 = vmatpush1.bf16.msra.mxu0 %v3896
      %3900 = vmatprep.subr.bf16.mxu0 0
      %3901 = vmatpush1.bf16.msra.mxu0 0
      %3902 = vmatprep.subr.bf16.mxu0 0
      %3903 = vmatpush1.bf16.msra.mxu0 0
      %3904 = vmatprep.subr.bf16.mxu0 0
      %3905 = vmatpush1.bf16.msra.mxu0 0
      %3906 = vmatprep.subr.bf16.mxu0 0
      %3907 = vmatpush1.bf16.msra.mxu0 0
      %3908 = vmatprep.subr.bf16.mxu0 0
      %3909 = vmatpush1.bf16.msra.mxu0 0
      %3910 = vmatprep.subr.bf16.mxu0 0
      %3911 = vmatpush1.bf16.msra.mxu0 0
      %3912 = vmatprep.subr.bf16.mxu0 0
      %3913 = vmatpush1.bf16.msra.mxu0 0
      %3914 = vmatprep.subr.bf16.mxu0 0
      %3915 = vmatpush1.bf16.msra.mxu0 0
      %3916 = vmatprep.subr.bf16.mxu0 0
      %3917 = vmatpush1.bf16.msra.mxu0 0
      %3918 = vmatprep.subr.bf16.mxu0 0
      %3919 = vmatpush1.bf16.msra.mxu0 0
      %3920 = vmatprep.subr.bf16.mxu0 0
      %3921 = vmatpush1.bf16.msra.mxu0 0
      %3922 = vmatprep.subr.bf16.mxu0 0
      %3923 = vmatpush1.bf16.msra.mxu0 0
      %3924 = vmatprep.subr.bf16.mxu0 0
      %3925 = vmatpush1.bf16.msra.mxu0 0
      %3926 = vmatprep.subr.bf16.mxu0 0
      %3927 = vmatpush1.bf16.msra.mxu0 0
      %3928 = vmatprep.subr.bf16.mxu0 0
      %3929 = vmatpush1.bf16.msra.mxu0 0
      %3930 = vmatprep.mubr.bf16.mxu0 0
      %3931 = vmatmul.mubr.bf16.gmra.mrb[0].mxu0 %v3848
      %v3932 = vpop.f32.mrb[0].mxu0
      %v3933 = vadd.f32 0.0, %v3932
      %v3934 = vpop.f32.mrb[0].mxu0
      %v3935 = vpop.f32.mrb[0].mxu0
      %v3936 = vadd.f32 0.0, %v3935
      %v3937 = vpop.f32.mrb[0].mxu0
      %3938 = vmatprep.mubr.bf16.mxu0 0
      %3939 = vmatmul.mubr.bf16.gmra.mrb[0].mxu0 %v3851
      %v3940 = vpop.f32.mrb[0].mxu0
      %v3941 = vadd.f32 0.0, %v3940
      %v3942 = vpop.f32.mrb[0].mxu0
      %v3943 = vpop.f32.mrb[0].mxu0
      %v3944 = vadd.f32 0.0, %v3943
      %v3945 = vpop.f32.mrb[0].mxu0
      %3946 = vmatprep.mubr.bf16.mxu0 0
      %3947 = vmatmul.mubr.bf16.gmra.mrb[0].mxu0 %v3854
      %v3948 = vpop.f32.mrb[0].mxu0
      %v3949 = vadd.f32 0.0, %v3948
      %v3950 = vpop.f32.mrb[0].mxu0
      %v3951 = vpop.f32.mrb[0].mxu0
      %v3952 = vadd.f32 0.0, %v3951
      %v3953 = vpop.f32.mrb[0].mxu0
      %3954 = vmatprep.mubr.bf16.mxu0 0
      %3955 = vmatmul.mubr.bf16.gmra.mrb[0].mxu0 %v3857
      %v3956 = vpop.f32.mrb[0].mxu0
      %v3957 = vadd.f32 0.0, %v3956
      %v3958 = vpop.f32.mrb[0].mxu0
      %v3959 = vpop.f32.mrb[0].mxu0
      %v3960 = vadd.f32 0.0, %v3959
      %v3961 = vpop.f32.mrb[0].mxu0
      %3962 = vmatprep.mubr.bf16.mxu0 0
      %3963 = vmatmul.mubr.bf16.gmra.mrb[0].mxu0 %v3860
      %v3964 = vpop.f32.mrb[0].mxu0
      %v3965 = vadd.f32 0.0, %v3964
      %v3966 = vpop.f32.mrb[0].mxu0
      %v3967 = vpop.f32.mrb[0].mxu0
      %v3968 = vadd.f32 0.0, %v3967
      %v3969 = vpop.f32.mrb[0].mxu0
      %3970 = vmatprep.mubr.bf16.mxu0 0
      %3971 = vmatmul.mubr.bf16.gmra.mrb[0].mxu0 %v3863
      %v3972 = vpop.f32.mrb[0].mxu0
      %v3973 = vadd.f32 0.0, %v3972
      %v3974 = vpop.f32.mrb[0].mxu0
      %v3975 = vpop.f32.mrb[0].mxu0
      %v3976 = vadd.f32 0.0, %v3975
      %v3977 = vpop.f32.mrb[0].mxu0
      %3978 = vmatprep.mubr.bf16.mxu0 0
      %3979 = vmatmul.mubr.bf16.gmra.mrb[0].mxu0 %v3866
      %v3980 = vpop.f32.mrb[0].mxu0
      %v3981 = vadd.f32 0.0, %v3980
      %v3982 = vpop.f32.mrb[0].mxu0
      %v3983 = vpop.f32.mrb[0].mxu0
      %v3984 = vadd.f32 0.0, %v3983
      %v3985 = vpop.f32.mrb[0].mxu0
      %3986 = vmatprep.mubr.bf16.mxu0 0
      %3987 = vmatmul.mubr.bf16.gmra.mrb[0].mxu0 %v3869
      %v3988 = vpop.f32.mrb[0].mxu0
      %v3989 = vadd.f32 0.0, %v3988
      %v3990 = vpop.f32.mrb[0].mxu0
      %v3991 = vpop.f32.mrb[0].mxu0
      %v3992 = vadd.f32 0.0, %v3991
      %v3993 = vpop.f32.mrb[0].mxu0
      %3994 = vmatprep.mubr.bf16.mxu0 0
      %3995 = vmatmul.mubr.bf16.gmra.mrb[0].mxu0 %v3872
      %v3996 = vpop.f32.mrb[0].mxu0
      %v3997 = vadd.f32 0.0, %v3996
      %v3998 = vpop.f32.mrb[0].mxu0
      %v3999 = vpop.f32.mrb[0].mxu0
      %v4000 = vadd.f32 0.0, %v3999
      %v4001 = vpop.f32.mrb[0].mxu0
      %4002 = vmatprep.mubr.bf16.mxu0 0
      %4003 = vmatmul.mubr.bf16.gmra.mrb[0].mxu0 %v3875
      %v4004 = vpop.f32.mrb[0].mxu0
      %v4005 = vadd.f32 0.0, %v4004
      %v4006 = vpop.f32.mrb[0].mxu0
      %v4007 = vpop.f32.mrb[0].mxu0
      %v4008 = vadd.f32 0.0, %v4007
      %v4009 = vpop.f32.mrb[0].mxu0
      %4010 = vmatprep.mubr.bf16.mxu0 0
      %4011 = vmatmul.mubr.bf16.gmra.mrb[0].mxu0 %v3878
      %v4012 = vpop.f32.mrb[0].mxu0
      %v4013 = vadd.f32 0.0, %v4012
      %v4014 = vpop.f32.mrb[0].mxu0
      %v4015 = vpop.f32.mrb[0].mxu0
      %v4016 = vadd.f32 0.0, %v4015
      %v4017 = vpop.f32.mrb[0].mxu0
      %4018 = vmatprep.mubr.bf16.mxu0 0
      %4019 = vmatmul.mubr.bf16.gmra.mrb[0].mxu0 %v3881
      %v4020 = vpop.f32.mrb[0].mxu0
      %v4021 = vadd.f32 0.0, %v4020
      %v4022 = vpop.f32.mrb[0].mxu0
      %v4023 = vpop.f32.mrb[0].mxu0
      %v4024 = vadd.f32 0.0, %v4023
      %v4025 = vpop.f32.mrb[0].mxu0
      %4026 = vmatprep.mubr.bf16.mxu0 0
      %4027 = vmatmul.mubr.bf16.gmra.mrb[0].mxu0 %v3884
      %v4028 = vpop.f32.mrb[0].mxu0
      %v4029 = vadd.f32 0.0, %v4028
      %v4030 = vpop.f32.mrb[0].mxu0
      %v4031 = vpop.f32.mrb[0].mxu0
      %v4032 = vadd.f32 0.0, %v4031
      %v4033 = vpop.f32.mrb[0].mxu0
      %4034 = vmatprep.mubr.bf16.mxu0 0
      %4035 = vmatmul.mubr.bf16.gmra.mrb[0].mxu0 %v3887
      %v4036 = vpop.f32.mrb[0].mxu0
      %v4037 = vadd.f32 0.0, %v4036
      %v4038 = vpop.f32.mrb[0].mxu0
      %v4039 = vpop.f32.mrb[0].mxu0
      %v4040 = vadd.f32 0.0, %v4039
      %v4041 = vpop.f32.mrb[0].mxu0
      %4042 = vmatprep.mubr.bf16.mxu0 0
      %4043 = vmatmul.mubr.bf16.gmra.mrb[0].mxu0 %v3890
      %v4044 = vpop.f32.mrb[0].mxu0
      %v4045 = vadd.f32 0.0, %v4044
      %v4046 = vpop.f32.mrb[0].mxu0
      %v4047 = vpop.f32.mrb[0].mxu0
      %v4048 = vadd.f32 0.0, %v4047
      %v4049 = vpop.f32.mrb[0].mxu0
      %4050 = vmatprep.mubr.bf16.mxu0 0
      %4051 = vmatmul.mubr.bf16.gmra.mrb[0].mxu0 %v3893
      %v4052 = vpop.f32.mrb[0].mxu0
      %v4053 = vadd.f32 0.0, %v4052
      %v4054 = vpop.f32.mrb[0].mxu0
      %v4055 = vpop.f32.mrb[0].mxu0
      %v4056 = vadd.f32 0.0, %v4055
      %v4057 = vpop.f32.mrb[0].mxu0
      %4058 = vdwg.mxu0
      %v4059 = vadd.f32 %v3589, %v3933
      %v4060 = vadd.f32 %v3590, %v3936
      %v4061 = vadd.f32 %v3591, %v3941
      %v4062 = vadd.f32 %v3592, %v3944
      %v4063 = vadd.f32 %v3593, %v3949
      %v4064 = vadd.f32 %v3594, %v3952
      %v4065 = vadd.f32 %v3595, %v3957
      %v4066 = vadd.f32 %v3596, %v3960
      %v4067 = vadd.f32 %v3597, %v3965
      %v4068 = vadd.f32 %v3598, %v3968
      %v4069 = vadd.f32 %v3599, %v3973
      %v4070 = vadd.f32 %v3600, %v3976
      %v4071 = vadd.f32 %v3601, %v3981
      %v4072 = vadd.f32 %v3602, %v3984
      %v4073 = vadd.f32 %v3603, %v3989
      %v4074 = vadd.f32 %v3604, %v3992
      %v4075 = vadd.f32 %v3605, %v3997
      %v4076 = vadd.f32 %v3606, %v4000
      %v4077 = vadd.f32 %v3607, %v4005
      %v4078 = vadd.f32 %v3608, %v4008
      %v4079 = vadd.f32 %v3609, %v4013
      %v4080 = vadd.f32 %v3610, %v4016
      %v4081 = vadd.f32 %v3611, %v4021
      %v4082 = vadd.f32 %v3612, %v4024
      %v4083 = vadd.f32 %v3613, %v4029
      %v4084 = vadd.f32 %v3614, %v4032
      %v4085 = vadd.f32 %v3615, %v4037
      %v4086 = vadd.f32 %v3616, %v4040
      %v4087 = vadd.f32 %v3617, %v4045
      %v4088 = vadd.f32 %v3618, %v4048
      %v4089 = vadd.f32 %v3619, %v4053
      %v4090 = vadd.f32 %v3620, %v4056
      %s4091 = scalar_lea.vmem [#allocation2], 24
      %v4092 = vld [vmem:[%s4091] sm:$0xf]
      %v4093 = vld [vmem:[%s4091 + $0x4] sm:$0xf]
      %v4094 = vld [vmem:[%s4091 + $0xc] sm:$0xf]
      %v4095 = vld [vmem:[%s4091 + $0x10] sm:$0xf]
      %v4096 = vld [vmem:[%s4091 + $0x18] sm:$0xf]
      %v4097 = vld [vmem:[%s4091 + $0x1c] sm:$0xf]
      %v4098 = vld [vmem:[%s4091 + $0x24] sm:$0xf]
      %v4099 = vld [vmem:[%s4091 + $0x28] sm:$0xf]
      %v4100 = vld [vmem:[%s4091 + $0x30] sm:$0xf]
      %v4101 = vld [vmem:[%s4091 + $0x34] sm:$0xf]
      %v4102 = vld [vmem:[%s4091 + $0x3c] sm:$0xf]
      %v4103 = vld [vmem:[%s4091 + $0x40] sm:$0xf]
      %v4104 = vld [vmem:[%s4091 + $0x48] sm:$0xf]
      %v4105 = vld [vmem:[%s4091 + $0x4c] sm:$0xf]
      %v4106 = vld [vmem:[%s4091 + $0x54] sm:$0xf]
      %v4107 = vld [vmem:[%s4091 + $0x58] sm:$0xf]
      %v4108 = vld [vmem:[%s4091 + $0x60] sm:$0xf]
      %v4109 = vld [vmem:[%s4091 + $0x64] sm:$0xf]
      %v4110 = vld [vmem:[%s4091 + $0x6c] sm:$0xf]
      %v4111 = vld [vmem:[%s4091 + $0x70] sm:$0xf]
      %v4112 = vld [vmem:[%s4091 + $0x78] sm:$0xf]
      %v4113 = vld [vmem:[%s4091 + $0x7c] sm:$0xf]
      %v4114 = vld [vmem:[%s4091 + $0x84] sm:$0xf]
      %v4115 = vld [vmem:[%s4091 + $0x88] sm:$0xf]
      %v4116 = vld [vmem:[%s4091 + $0x90] sm:$0xf]
      %v4117 = vld [vmem:[%s4091 + $0x94] sm:$0xf]
      %v4118 = vld [vmem:[%s4091 + $0x9c] sm:$0xf]
      %v4119 = vld [vmem:[%s4091 + $0xa0] sm:$0xf]
      %v4120 = vld [vmem:[%s4091 + $0xa8] sm:$0xf]
      %v4121 = vld [vmem:[%s4091 + $0xac] sm:$0xf]
      %v4122 = vld [vmem:[%s4091 + $0xb4] sm:$0xf]
      %v4123 = vld [vmem:[%s4091 + $0xb8] sm:$0xf]
      %s4124 = scalar_lea.vmem %s3, 12
      %v4125 = vld [vmem:[%s4124] sm:$0x3]
      %v4158 = vunpack.c.l.b16 %v4092
      %v4159 = vunpack.c.l.b16 %v4093
      %v4160 = vunpack.c.l.b16 %v4094
      %v4161 = vunpack.c.l.b16 %v4095
      %v4162 = vunpack.c.l.b16 %v4096
      %v4163 = vunpack.c.l.b16 %v4097
      %v4164 = vunpack.c.l.b16 %v4098
      %v4165 = vunpack.c.l.b16 %v4099
      %v4166 = vunpack.c.l.b16 %v4100
      %v4167 = vunpack.c.l.b16 %v4101
      %v4168 = vunpack.c.l.b16 %v4102
      %v4169 = vunpack.c.l.b16 %v4103
      %v4170 = vunpack.c.l.b16 %v4104
      %v4171 = vunpack.c.l.b16 %v4105
      %v4172 = vunpack.c.l.b16 %v4106
      %v4173 = vunpack.c.l.b16 %v4107
      %v4174 = vunpack.c.l.b16 %v4108
      %v4175 = vunpack.c.l.b16 %v4109
      %v4176 = vunpack.c.l.b16 %v4110
      %v4177 = vunpack.c.l.b16 %v4111
      %v4178 = vunpack.c.l.b16 %v4112
      %v4179 = vunpack.c.l.b16 %v4113
      %v4180 = vunpack.c.l.b16 %v4114
      %v4181 = vunpack.c.l.b16 %v4115
      %v4182 = vunpack.c.l.b16 %v4116
      %v4183 = vunpack.c.l.b16 %v4117
      %v4184 = vunpack.c.l.b16 %v4118
      %v4185 = vunpack.c.l.b16 %v4119
      %v4186 = vunpack.c.l.b16 %v4120
      %v4187 = vunpack.c.l.b16 %v4121
      %v4188 = vunpack.c.l.b16 %v4122
      %v4189 = vunpack.c.l.b16 %v4123
      %v4190 = vpack.c.b16 %v4159, %v4158
      %v4191 = vpack.c.b16 %v4161, %v4160
      %v4192 = vpack.c.b16 %v4163, %v4162
      %v4193 = vpack.c.b16 %v4165, %v4164
      %v4194 = vpack.c.b16 %v4167, %v4166
      %v4195 = vpack.c.b16 %v4169, %v4168
      %v4196 = vpack.c.b16 %v4171, %v4170
      %v4197 = vpack.c.b16 %v4173, %v4172
      %v4198 = vpack.c.b16 %v4175, %v4174
      %v4199 = vpack.c.b16 %v4177, %v4176
      %v4200 = vpack.c.b16 %v4179, %v4178
      %v4201 = vpack.c.b16 %v4181, %v4180
      %v4202 = vpack.c.b16 %v4183, %v4182
      %v4203 = vpack.c.b16 %v4185, %v4184
      %v4204 = vpack.c.b16 %v4187, %v4186
      %v4205 = vpack.c.b16 %v4189, %v4188
      %v4207 = vsel %vm1574, %v4190, 0
      %v4210 = vsel %vm1574, %v4191, 0
      %v4213 = vsel %vm1574, %v4192, 0
      %v4216 = vsel %vm1574, %v4193, 0
      %v4219 = vsel %vm1574, %v4194, 0
      %v4222 = vsel %vm1574, %v4195, 0
      %v4225 = vsel %vm1574, %v4196, 0
      %v4228 = vsel %vm1574, %v4197, 0
      %v4231 = vsel %vm1574, %v4198, 0
      %v4234 = vsel %vm1574, %v4199, 0
      %v4237 = vsel %vm1574, %v4200, 0
      %v4240 = vsel %vm1574, %v4201, 0
      %v4243 = vsel %vm1574, %v4202, 0
      %v4246 = vsel %vm1574, %v4203, 0
      %v4249 = vsel %vm1574, %v4204, 0
      %v4252 = vsel %vm1574, %v4205, 0
      %v4255 = vsel %vm1623, %v4125, 0
      %4257 = vmatprep.subr.bf16.mxu0 0
      %4258 = vmatpush1.bf16.msra.mxu0 %v4255
      %4259 = vmatprep.subr.bf16.mxu0 0
      %4260 = vmatpush1.bf16.msra.mxu0 0
      %4261 = vmatprep.subr.bf16.mxu0 0
      %4262 = vmatpush1.bf16.msra.mxu0 0
      %4263 = vmatprep.subr.bf16.mxu0 0
      %4264 = vmatpush1.bf16.msra.mxu0 0
      %4265 = vmatprep.subr.bf16.mxu0 0
      %4266 = vmatpush1.bf16.msra.mxu0 0
      %4267 = vmatprep.subr.bf16.mxu0 0
      %4268 = vmatpush1.bf16.msra.mxu0 0
      %4269 = vmatprep.subr.bf16.mxu0 0
      %4270 = vmatpush1.bf16.msra.mxu0 0
      %4271 = vmatprep.subr.bf16.mxu0 0
      %4272 = vmatpush1.bf16.msra.mxu0 0
      %4273 = vmatprep.subr.bf16.mxu0 0
      %4274 = vmatpush1.bf16.msra.mxu0 0
      %4275 = vmatprep.subr.bf16.mxu0 0
      %4276 = vmatpush1.bf16.msra.mxu0 0
      %4277 = vmatprep.subr.bf16.mxu0 0
      %4278 = vmatpush1.bf16.msra.mxu0 0
      %4279 = vmatprep.subr.bf16.mxu0 0
      %4280 = vmatpush1.bf16.msra.mxu0 0
      %4281 = vmatprep.subr.bf16.mxu0 0
      %4282 = vmatpush1.bf16.msra.mxu0 0
      %4283 = vmatprep.subr.bf16.mxu0 0
      %4284 = vmatpush1.bf16.msra.mxu0 0
      %4285 = vmatprep.subr.bf16.mxu0 0
      %4286 = vmatpush1.bf16.msra.mxu0 0
      %4287 = vmatprep.subr.bf16.mxu0 0
      %4288 = vmatpush1.bf16.msra.mxu0 0
      %4289 = vmatprep.mubr.bf16.mxu0 0
      %4290 = vmatmul.mubr.bf16.gmra.mrb[0].mxu0 %v4207
      %v4291 = vpop.f32.mrb[0].mxu0
      %v4292 = vadd.f32 0.0, %v4291
      %v4293 = vpop.f32.mrb[0].mxu0
      %v4294 = vpop.f32.mrb[0].mxu0
      %v4295 = vadd.f32 0.0, %v4294
      %v4296 = vpop.f32.mrb[0].mxu0
      %4297 = vmatprep.mubr.bf16.mxu0 0
      %4298 = vmatmul.mubr.bf16.gmra.mrb[0].mxu0 %v4210
      %v4299 = vpop.f32.mrb[0].mxu0
      %v4300 = vadd.f32 0.0, %v4299
      %v4301 = vpop.f32.mrb[0].mxu0
      %v4302 = vpop.f32.mrb[0].mxu0
      %v4303 = vadd.f32 0.0, %v4302
      %v4304 = vpop.f32.mrb[0].mxu0
      %4305 = vmatprep.mubr.bf16.mxu0 0
      %4306 = vmatmul.mubr.bf16.gmra.mrb[0].mxu0 %v4213
      %v4307 = vpop.f32.mrb[0].mxu0
      %v4308 = vadd.f32 0.0, %v4307
      %v4309 = vpop.f32.mrb[0].mxu0
      %v4310 = vpop.f32.mrb[0].mxu0
      %v4311 = vadd.f32 0.0, %v4310
      %v4312 = vpop.f32.mrb[0].mxu0
      %4313 = vmatprep.mubr.bf16.mxu0 0
      %4314 = vmatmul.mubr.bf16.gmra.mrb[0].mxu0 %v4216
      %v4315 = vpop.f32.mrb[0].mxu0
      %v4316 = vadd.f32 0.0, %v4315
      %v4317 = vpop.f32.mrb[0].mxu0
      %v4318 = vpop.f32.mrb[0].mxu0
      %v4319 = vadd.f32 0.0, %v4318
      %v4320 = vpop.f32.mrb[0].mxu0
      %4321 = vmatprep.mubr.bf16.mxu0 0
      %4322 = vmatmul.mubr.bf16.gmra.mrb[0].mxu0 %v4219
      %v4323 = vpop.f32.mrb[0].mxu0
      %v4324 = vadd.f32 0.0, %v4323
      %v4325 = vpop.f32.mrb[0].mxu0
      %v4326 = vpop.f32.mrb[0].mxu0
      %v4327 = vadd.f32 0.0, %v4326
      %v4328 = vpop.f32.mrb[0].mxu0
      %4329 = vmatprep.mubr.bf16.mxu0 0
      %4330 = vmatmul.mubr.bf16.gmra.mrb[0].mxu0 %v4222
      %v4331 = vpop.f32.mrb[0].mxu0
      %v4332 = vadd.f32 0.0, %v4331
      %v4333 = vpop.f32.mrb[0].mxu0
      %v4334 = vpop.f32.mrb[0].mxu0
      %v4335 = vadd.f32 0.0, %v4334
      %v4336 = vpop.f32.mrb[0].mxu0
      %4337 = vmatprep.mubr.bf16.mxu0 0
      %4338 = vmatmul.mubr.bf16.gmra.mrb[0].mxu0 %v4225
      %v4339 = vpop.f32.mrb[0].mxu0
      %v4340 = vadd.f32 0.0, %v4339
      %v4341 = vpop.f32.mrb[0].mxu0
      %v4342 = vpop.f32.mrb[0].mxu0
      %v4343 = vadd.f32 0.0, %v4342
      %v4344 = vpop.f32.mrb[0].mxu0
      %4345 = vmatprep.mubr.bf16.mxu0 0
      %4346 = vmatmul.mubr.bf16.gmra.mrb[0].mxu0 %v4228
      %v4347 = vpop.f32.mrb[0].mxu0
      %v4348 = vadd.f32 0.0, %v4347
      %v4349 = vpop.f32.mrb[0].mxu0
      %v4350 = vpop.f32.mrb[0].mxu0
      %v4351 = vadd.f32 0.0, %v4350
      %v4352 = vpop.f32.mrb[0].mxu0
      %4353 = vmatprep.mubr.bf16.mxu0 0
      %4354 = vmatmul.mubr.bf16.gmra.mrb[0].mxu0 %v4231
      %v4355 = vpop.f32.mrb[0].mxu0
      %v4356 = vadd.f32 0.0, %v4355
      %v4357 = vpop.f32.mrb[0].mxu0
      %v4358 = vpop.f32.mrb[0].mxu0
      %v4359 = vadd.f32 0.0, %v4358
      %v4360 = vpop.f32.mrb[0].mxu0
      %4361 = vmatprep.mubr.bf16.mxu0 0
      %4362 = vmatmul.mubr.bf16.gmra.mrb[0].mxu0 %v4234
      %v4363 = vpop.f32.mrb[0].mxu0
      %v4364 = vadd.f32 0.0, %v4363
      %v4365 = vpop.f32.mrb[0].mxu0
      %v4366 = vpop.f32.mrb[0].mxu0
      %v4367 = vadd.f32 0.0, %v4366
      %v4368 = vpop.f32.mrb[0].mxu0
      %4369 = vmatprep.mubr.bf16.mxu0 0
      %4370 = vmatmul.mubr.bf16.gmra.mrb[0].mxu0 %v4237
      %v4371 = vpop.f32.mrb[0].mxu0
      %v4372 = vadd.f32 0.0, %v4371
      %v4373 = vpop.f32.mrb[0].mxu0
      %v4374 = vpop.f32.mrb[0].mxu0
      %v4375 = vadd.f32 0.0, %v4374
      %v4376 = vpop.f32.mrb[0].mxu0
      %4377 = vmatprep.mubr.bf16.mxu0 0
      %4378 = vmatmul.mubr.bf16.gmra.mrb[0].mxu0 %v4240
      %v4379 = vpop.f32.mrb[0].mxu0
      %v4380 = vadd.f32 0.0, %v4379
      %v4381 = vpop.f32.mrb[0].mxu0
      %v4382 = vpop.f32.mrb[0].mxu0
      %v4383 = vadd.f32 0.0, %v4382
      %v4384 = vpop.f32.mrb[0].mxu0
      %4385 = vmatprep.mubr.bf16.mxu0 0
      %4386 = vmatmul.mubr.bf16.gmra.mrb[0].mxu0 %v4243
      %v4387 = vpop.f32.mrb[0].mxu0
      %v4388 = vadd.f32 0.0, %v4387
      %v4389 = vpop.f32.mrb[0].mxu0
      %v4390 = vpop.f32.mrb[0].mxu0
      %v4391 = vadd.f32 0.0, %v4390
      %v4392 = vpop.f32.mrb[0].mxu0
      %4393 = vmatprep.mubr.bf16.mxu0 0
      %4394 = vmatmul.mubr.bf16.gmra.mrb[0].mxu0 %v4246
      %v4395 = vpop.f32.mrb[0].mxu0
      %v4396 = vadd.f32 0.0, %v4395
      %v4397 = vpop.f32.mrb[0].mxu0
      %v4398 = vpop.f32.mrb[0].mxu0
      %v4399 = vadd.f32 0.0, %v4398
      %v4400 = vpop.f32.mrb[0].mxu0
      %4401 = vmatprep.mubr.bf16.mxu0 0
      %4402 = vmatmul.mubr.bf16.gmra.mrb[0].mxu0 %v4249
      %v4403 = vpop.f32.mrb[0].mxu0
      %v4404 = vadd.f32 0.0, %v4403
      %v4405 = vpop.f32.mrb[0].mxu0
      %v4406 = vpop.f32.mrb[0].mxu0
      %v4407 = vadd.f32 0.0, %v4406
      %v4408 = vpop.f32.mrb[0].mxu0
      %4409 = vmatprep.mubr.bf16.mxu0 0
      %4410 = vmatmul.mubr.bf16.gmra.mrb[0].mxu0 %v4252
      %v4411 = vpop.f32.mrb[0].mxu0
      %v4412 = vadd.f32 0.0, %v4411
      %v4413 = vpop.f32.mrb[0].mxu0
      %v4414 = vpop.f32.mrb[0].mxu0
      %v4415 = vadd.f32 0.0, %v4414
      %v4416 = vpop.f32.mrb[0].mxu0
      %4417 = vdwg.mxu0
      %v4418 = vadd.f32 %v4059, %v4292
      %v4419 = vadd.f32 %v4060, %v4295
      %v4420 = vadd.f32 %v4061, %v4300
      %v4421 = vadd.f32 %v4062, %v4303
      %v4422 = vadd.f32 %v4063, %v4308
      %v4423 = vadd.f32 %v4064, %v4311
      %v4424 = vadd.f32 %v4065, %v4316
      %v4425 = vadd.f32 %v4066, %v4319
      %v4426 = vadd.f32 %v4067, %v4324
      %v4427 = vadd.f32 %v4068, %v4327
      %v4428 = vadd.f32 %v4069, %v4332
      %v4429 = vadd.f32 %v4070, %v4335
      %v4430 = vadd.f32 %v4071, %v4340
      %v4431 = vadd.f32 %v4072, %v4343
      %v4432 = vadd.f32 %v4073, %v4348
      %v4433 = vadd.f32 %v4074, %v4351
      %v4434 = vadd.f32 %v4075, %v4356
      %v4435 = vadd.f32 %v4076, %v4359
      %v4436 = vadd.f32 %v4077, %v4364
      %v4437 = vadd.f32 %v4078, %v4367
      %v4438 = vadd.f32 %v4079, %v4372
      %v4439 = vadd.f32 %v4080, %v4375
      %v4440 = vadd.f32 %v4081, %v4380
      %v4441 = vadd.f32 %v4082, %v4383
      %v4442 = vadd.f32 %v4083, %v4388
      %v4443 = vadd.f32 %v4084, %v4391
      %v4444 = vadd.f32 %v4085, %v4396
      %v4445 = vadd.f32 %v4086, %v4399
      %v4446 = vadd.f32 %v4087, %v4404
      %v4447 = vadd.f32 %v4088, %v4407
      %v4448 = vadd.f32 %v4089, %v4412
      %v4449 = vadd.f32 %v4090, %v4415
      %v4450 = vld [vmem:[%s4091] sm:$0xf]
      %v4451 = vld [vmem:[%s4091 + $0x4] sm:$0xf]
      %v4452 = vld [vmem:[%s4091 + $0x8] sm:$0x1]
      %v4453 = vld [vmem:[%s4091 + $0xc] sm:$0xf]
      %v4454 = vld [vmem:[%s4091 + $0x10] sm:$0xf]
      %v4455 = vld [vmem:[%s4091 + $0x14] sm:$0x1]
      %v4456 = vld [vmem:[%s4091 + $0x18] sm:$0xf]
      %v4457 = vld [vmem:[%s4091 + $0x1c] sm:$0xf]
      %v4458 = vld [vmem:[%s4091 + $0x20] sm:$0x1]
      %v4459 = vld [vmem:[%s4091 + $0x24] sm:$0xf]
      %v4460 = vld [vmem:[%s4091 + $0x28] sm:$0xf]
      %v4461 = vld [vmem:[%s4091 + $0x2c] sm:$0x1]
      %v4462 = vld [vmem:[%s4091 + $0x30] sm:$0xf]
      %v4463 = vld [vmem:[%s4091 + $0x34] sm:$0xf]
      %v4464 = vld [vmem:[%s4091 + $0x38] sm:$0x1]
      %v4465 = vld [vmem:[%s4091 + $0x3c] sm:$0xf]
      %v4466 = vld [vmem:[%s4091 + $0x40] sm:$0xf]
      %v4467 = vld [vmem:[%s4091 + $0x44] sm:$0x1]
      %v4468 = vld [vmem:[%s4091 + $0x48] sm:$0xf]
      %v4469 = vld [vmem:[%s4091 + $0x4c] sm:$0xf]
      %v4470 = vld [vmem:[%s4091 + $0x50] sm:$0x1]
      %v4471 = vld [vmem:[%s4091 + $0x54] sm:$0xf]
      %v4472 = vld [vmem:[%s4091 + $0x58] sm:$0xf]
      %v4473 = vld [vmem:[%s4091 + $0x5c] sm:$0x1]
      %v4474 = vld [vmem:[%s4091 + $0x60] sm:$0xf]
      %v4475 = vld [vmem:[%s4091 + $0x64] sm:$0xf]
      %v4476 = vld [vmem:[%s4091 + $0x68] sm:$0x1]
      %v4477 = vld [vmem:[%s4091 + $0x6c] sm:$0xf]
      %v4478 = vld [vmem:[%s4091 + $0x70] sm:$0xf]
      %v4479 = vld [vmem:[%s4091 + $0x74] sm:$0x1]
      %v4480 = vld [vmem:[%s4091 + $0x78] sm:$0xf]
      %v4481 = vld [vmem:[%s4091 + $0x7c] sm:$0xf]
      %v4482 = vld [vmem:[%s4091 + $0x80] sm:$0x1]
      %v4483 = vld [vmem:[%s4091 + $0x84] sm:$0xf]
      %v4484 = vld [vmem:[%s4091 + $0x88] sm:$0xf]
      %v4485 = vld [vmem:[%s4091 + $0x8c] sm:$0x1]
      %v4486 = vld [vmem:[%s4091 + $0x90] sm:$0xf]
      %v4487 = vld [vmem:[%s4091 + $0x94] sm:$0xf]
      %v4488 = vld [vmem:[%s4091 + $0x98] sm:$0x1]
      %v4489 = vld [vmem:[%s4091 + $0x9c] sm:$0xf]
      %v4490 = vld [vmem:[%s4091 + $0xa0] sm:$0xf]
      %v4491 = vld [vmem:[%s4091 + $0xa4] sm:$0x1]
      %v4492 = vld [vmem:[%s4091 + $0xa8] sm:$0xf]
      %v4493 = vld [vmem:[%s4091 + $0xac] sm:$0xf]
      %v4494 = vld [vmem:[%s4091 + $0xb0] sm:$0x1]
      %v4495 = vld [vmem:[%s4091 + $0xb4] sm:$0xf]
      %v4496 = vld [vmem:[%s4091 + $0xb8] sm:$0xf]
      %v4497 = vld [vmem:[%s4091 + $0xbc] sm:$0x1]
      %v4499 = vshrl.u32 %v4450, 16
      %v4501 = vrot.slane %v4499, 4
      %v4502 = vshll.u32 %v4450, 16
      %v4504 = vrot.slane %v4502, 5
      %v4505 = vor.u32 %v4501, %v4504
      %v4506 = vrot.slane %v4505, 4
      %v4508 = vshll.u32 %v4451, 16
      %v4510 = vrot.slane %v4508, 5
      %v4511 = vsel %vm1139, %v4506, %v4510
      %v4512 = vshrl.u32 %v4451, 16
      %v4514 = vrot.slane %v4512, 4
      %v4515 = vor.u32 %v4514, %v4510
      %v4516 = vrot.slane %v4515, 4
      %v4518 = vshll.u32 %v4452, 16
      %v4520 = vrot.slane %v4518, 5
      %v4521 = vsel %vm1139, %v4516, %v4520
      %v4523 = vshrl.u32 %v4453, 16
      %v4525 = vrot.slane %v4523, 4
      %v4526 = vshll.u32 %v4453, 16
      %v4528 = vrot.slane %v4526, 5
      %v4529 = vor.u32 %v4525, %v4528
      %v4530 = vrot.slane %v4529, 4
      %v4532 = vshll.u32 %v4454, 16
      %v4534 = vrot.slane %v4532, 5
      %v4535 = vsel %vm1139, %v4530, %v4534
      %v4536 = vshrl.u32 %v4454, 16
      %v4538 = vrot.slane %v4536, 4
      %v4539 = vor.u32 %v4538, %v4534
      %v4540 = vrot.slane %v4539, 4
      %v4542 = vshll.u32 %v4455, 16
      %v4544 = vrot.slane %v4542, 5
      %v4545 = vsel %vm1139, %v4540, %v4544
      %v4547 = vshrl.u32 %v4456, 16
      %v4549 = vrot.slane %v4547, 4
      %v4550 = vshll.u32 %v4456, 16
      %v4552 = vrot.slane %v4550, 5
      %v4553 = vor.u32 %v4549, %v4552
      %v4554 = vrot.slane %v4553, 4
      %v4556 = vshll.u32 %v4457, 16
      %v4558 = vrot.slane %v4556, 5
      %v4559 = vsel %vm1139, %v4554, %v4558
      %v4560 = vshrl.u32 %v4457, 16
      %v4562 = vrot.slane %v4560, 4
      %v4563 = vor.u32 %v4562, %v4558
      %v4564 = vrot.slane %v4563, 4
      %v4566 = vshll.u32 %v4458, 16
      %v4568 = vrot.slane %v4566, 5
      %v4569 = vsel %vm1139, %v4564, %v4568
      %v4571 = vshrl.u32 %v4459, 16
      %v4573 = vrot.slane %v4571, 4
      %v4574 = vshll.u32 %v4459, 16
      %v4576 = vrot.slane %v4574, 5
      %v4577 = vor.u32 %v4573, %v4576
      %v4578 = vrot.slane %v4577, 4
      %v4580 = vshll.u32 %v4460, 16
      %v4582 = vrot.slane %v4580, 5
      %v4583 = vsel %vm1139, %v4578, %v4582
      %v4584 = vshrl.u32 %v4460, 16
      %v4586 = vrot.slane %v4584, 4
      %v4587 = vor.u32 %v4586, %v4582
      %v4588 = vrot.slane %v4587, 4
      %v4590 = vshll.u32 %v4461, 16
      %v4592 = vrot.slane %v4590, 5
      %v4593 = vsel %vm1139, %v4588, %v4592
      %v4595 = vshrl.u32 %v4462, 16
      %v4597 = vrot.slane %v4595, 4
      %v4598 = vshll.u32 %v4462, 16
      %v4600 = vrot.slane %v4598, 5
      %v4601 = vor.u32 %v4597, %v4600
      %v4602 = vrot.slane %v4601, 4
      %v4604 = vshll.u32 %v4463, 16
      %v4606 = vrot.slane %v4604, 5
      %v4607 = vsel %vm1139, %v4602, %v4606
      %v4608 = vshrl.u32 %v4463, 16
      %v4610 = vrot.slane %v4608, 4
      %v4611 = vor.u32 %v4610, %v4606
      %v4612 = vrot.slane %v4611, 4
      %v4614 = vshll.u32 %v4464, 16
      %v4616 = vrot.slane %v4614, 5
      %v4617 = vsel %vm1139, %v4612, %v4616
      %v4619 = vshrl.u32 %v4465, 16
      %v4621 = vrot.slane %v4619, 4
      %v4622 = vshll.u32 %v4465, 16
      %v4624 = vrot.slane %v4622, 5
      %v4625 = vor.u32 %v4621, %v4624
      %v4626 = vrot.slane %v4625, 4
      %v4628 = vshll.u32 %v4466, 16
      %v4630 = vrot.slane %v4628, 5
      %v4631 = vsel %vm1139, %v4626, %v4630
      %v4632 = vshrl.u32 %v4466, 16
      %v4634 = vrot.slane %v4632, 4
      %v4635 = vor.u32 %v4634, %v4630
      %v4636 = vrot.slane %v4635, 4
      %v4638 = vshll.u32 %v4467, 16
      %v4640 = vrot.slane %v4638, 5
      %v4641 = vsel %vm1139, %v4636, %v4640
      %v4643 = vshrl.u32 %v4468, 16
      %v4645 = vrot.slane %v4643, 4
      %v4646 = vshll.u32 %v4468, 16
      %v4648 = vrot.slane %v4646, 5
      %v4649 = vor.u32 %v4645, %v4648
      %v4650 = vrot.slane %v4649, 4
      %v4652 = vshll.u32 %v4469, 16
      %v4654 = vrot.slane %v4652, 5
      %v4655 = vsel %vm1139, %v4650, %v4654
      %v4656 = vshrl.u32 %v4469, 16
      %v4658 = vrot.slane %v4656, 4
      %v4659 = vor.u32 %v4658, %v4654
      %v4660 = vrot.slane %v4659, 4
      %v4662 = vshll.u32 %v4470, 16
      %v4664 = vrot.slane %v4662, 5
      %v4665 = vsel %vm1139, %v4660, %v4664
      %v4667 = vshrl.u32 %v4471, 16
      %v4669 = vrot.slane %v4667, 4
      %v4670 = vshll.u32 %v4471, 16
      %v4672 = vrot.slane %v4670, 5
      %v4673 = vor.u32 %v4669, %v4672
      %v4674 = vrot.slane %v4673, 4
      %v4676 = vshll.u32 %v4472, 16
      %v4678 = vrot.slane %v4676, 5
      %v4679 = vsel %vm1139, %v4674, %v4678
      %v4680 = vshrl.u32 %v4472, 16
      %v4682 = vrot.slane %v4680, 4
      %v4683 = vor.u32 %v4682, %v4678
      %v4684 = vrot.slane %v4683, 4
      %v4686 = vshll.u32 %v4473, 16
      %v4688 = vrot.slane %v4686, 5
      %v4689 = vsel %vm1139, %v4684, %v4688
      %v4691 = vshrl.u32 %v4474, 16
      %v4693 = vrot.slane %v4691, 4
      %v4694 = vshll.u32 %v4474, 16
      %v4696 = vrot.slane %v4694, 5
      %v4697 = vor.u32 %v4693, %v4696
      %v4698 = vrot.slane %v4697, 4
      %v4700 = vshll.u32 %v4475, 16
      %v4702 = vrot.slane %v4700, 5
      %v4703 = vsel %vm1139, %v4698, %v4702
      %v4704 = vshrl.u32 %v4475, 16
      %v4706 = vrot.slane %v4704, 4
      %v4707 = vor.u32 %v4706, %v4702
      %v4708 = vrot.slane %v4707, 4
      %v4710 = vshll.u32 %v4476, 16
      %v4712 = vrot.slane %v4710, 5
      %v4713 = vsel %vm1139, %v4708, %v4712
      %v4715 = vshrl.u32 %v4477, 16
      %v4717 = vrot.slane %v4715, 4
      %v4718 = vshll.u32 %v4477, 16
      %v4720 = vrot.slane %v4718, 5
      %v4721 = vor.u32 %v4717, %v4720
      %v4722 = vrot.slane %v4721, 4
      %v4724 = vshll.u32 %v4478, 16
      %v4726 = vrot.slane %v4724, 5
      %v4727 = vsel %vm1139, %v4722, %v4726
      %v4728 = vshrl.u32 %v4478, 16
      %v4730 = vrot.slane %v4728, 4
      %v4731 = vor.u32 %v4730, %v4726
      %v4732 = vrot.slane %v4731, 4
      %v4734 = vshll.u32 %v4479, 16
      %v4736 = vrot.slane %v4734, 5
      %v4737 = vsel %vm1139, %v4732, %v4736
      %v4739 = vshrl.u32 %v4480, 16
      %v4741 = vrot.slane %v4739, 4
      %v4742 = vshll.u32 %v4480, 16
      %v4744 = vrot.slane %v4742, 5
      %v4745 = vor.u32 %v4741, %v4744
      %v4746 = vrot.slane %v4745, 4
      %v4748 = vshll.u32 %v4481, 16
      %v4750 = vrot.slane %v4748, 5
      %v4751 = vsel %vm1139, %v4746, %v4750
      %v4752 = vshrl.u32 %v4481, 16
      %v4754 = vrot.slane %v4752, 4
      %v4755 = vor.u32 %v4754, %v4750
      %v4756 = vrot.slane %v4755, 4
      %v4758 = vshll.u32 %v4482, 16
      %v4760 = vrot.slane %v4758, 5
      %v4761 = vsel %vm1139, %v4756, %v4760
      %v4763 = vshrl.u32 %v4483, 16
      %v4765 = vrot.slane %v4763, 4
      %v4766 = vshll.u32 %v4483, 16
      %v4768 = vrot.slane %v4766, 5
      %v4769 = vor.u32 %v4765, %v4768
      %v4770 = vrot.slane %v4769, 4
      %v4772 = vshll.u32 %v4484, 16
      %v4774 = vrot.slane %v4772, 5
      %v4775 = vsel %vm1139, %v4770, %v4774
      %v4776 = vshrl.u32 %v4484, 16
      %v4778 = vrot.slane %v4776, 4
      %v4779 = vor.u32 %v4778, %v4774
      %v4780 = vrot.slane %v4779, 4
      %v4782 = vshll.u32 %v4485, 16
      %v4784 = vrot.slane %v4782, 5
      %v4785 = vsel %vm1139, %v4780, %v4784
      %v4787 = vshrl.u32 %v4486, 16
      %v4789 = vrot.slane %v4787, 4
      %v4790 = vshll.u32 %v4486, 16
      %v4792 = vrot.slane %v4790, 5
      %v4793 = vor.u32 %v4789, %v4792
      %v4794 = vrot.slane %v4793, 4
      %v4796 = vshll.u32 %v4487, 16
      %v4798 = vrot.slane %v4796, 5
      %v4799 = vsel %vm1139, %v4794, %v4798
      %v4800 = vshrl.u32 %v4487, 16
      %v4802 = vrot.slane %v4800, 4
      %v4803 = vor.u32 %v4802, %v4798
      %v4804 = vrot.slane %v4803, 4
      %v4806 = vshll.u32 %v4488, 16
      %v4808 = vrot.slane %v4806, 5
      %v4809 = vsel %vm1139, %v4804, %v4808
      %v4811 = vshrl.u32 %v4489, 16
      %v4813 = vrot.slane %v4811, 4
      %v4814 = vshll.u32 %v4489, 16
      %v4816 = vrot.slane %v4814, 5
      %v4817 = vor.u32 %v4813, %v4816
      %v4818 = vrot.slane %v4817, 4
      %v4820 = vshll.u32 %v4490, 16
      %v4822 = vrot.slane %v4820, 5
      %v4823 = vsel %vm1139, %v4818, %v4822
      %v4824 = vshrl.u32 %v4490, 16
      %v4826 = vrot.slane %v4824, 4
      %v4827 = vor.u32 %v4826, %v4822
      %v4828 = vrot.slane %v4827, 4
      %v4830 = vshll.u32 %v4491, 16
      %v4832 = vrot.slane %v4830, 5
      %v4833 = vsel %vm1139, %v4828, %v4832
      %v4835 = vshrl.u32 %v4492, 16
      %v4837 = vrot.slane %v4835, 4
      %v4838 = vshll.u32 %v4492, 16
      %v4840 = vrot.slane %v4838, 5
      %v4841 = vor.u32 %v4837, %v4840
      %v4842 = vrot.slane %v4841, 4
      %v4844 = vshll.u32 %v4493, 16
      %v4846 = vrot.slane %v4844, 5
      %v4847 = vsel %vm1139, %v4842, %v4846
      %v4848 = vshrl.u32 %v4493, 16
      %v4850 = vrot.slane %v4848, 4
      %v4851 = vor.u32 %v4850, %v4846
      %v4852 = vrot.slane %v4851, 4
      %v4854 = vshll.u32 %v4494, 16
      %v4856 = vrot.slane %v4854, 5
      %v4857 = vsel %vm1139, %v4852, %v4856
      %v4859 = vshrl.u32 %v4495, 16
      %v4861 = vrot.slane %v4859, 4
      %v4862 = vshll.u32 %v4495, 16
      %v4864 = vrot.slane %v4862, 5
      %v4865 = vor.u32 %v4861, %v4864
      %v4866 = vrot.slane %v4865, 4
      %v4868 = vshll.u32 %v4496, 16
      %v4870 = vrot.slane %v4868, 5
      %v4871 = vsel %vm1139, %v4866, %v4870
      %v4872 = vshrl.u32 %v4496, 16
      %v4874 = vrot.slane %v4872, 4
      %v4875 = vor.u32 %v4874, %v4870
      %v4876 = vrot.slane %v4875, 4
      %v4878 = vshll.u32 %v4497, 16
      %v4880 = vrot.slane %v4878, 5
      %v4881 = vsel %vm1139, %v4876, %v4880
      %s4882 = scalar_lea.vmem %s3, 14
      %v4883 = vld [vmem:[%s4882] sm:$0x3]
      %v4884 = vunpack.c.l.b16 %v4511
      %v4885 = vunpack.c.l.b16 %v4521
      %v4886 = vunpack.c.l.b16 %v4535
      %v4887 = vunpack.c.l.b16 %v4545
      %v4888 = vunpack.c.l.b16 %v4559
      %v4889 = vunpack.c.l.b16 %v4569
      %v4890 = vunpack.c.l.b16 %v4583
      %v4891 = vunpack.c.l.b16 %v4593
      %v4892 = vunpack.c.l.b16 %v4607
      %v4893 = vunpack.c.l.b16 %v4617
      %v4894 = vunpack.c.l.b16 %v4631
      %v4895 = vunpack.c.l.b16 %v4641
      %v4896 = vunpack.c.l.b16 %v4655
      %v4897 = vunpack.c.l.b16 %v4665
      %v4898 = vunpack.c.l.b16 %v4679
      %v4899 = vunpack.c.l.b16 %v4689
      %v4900 = vunpack.c.l.b16 %v4703
      %v4901 = vunpack.c.l.b16 %v4713
      %v4902 = vunpack.c.l.b16 %v4727
      %v4903 = vunpack.c.l.b16 %v4737
      %v4904 = vunpack.c.l.b16 %v4751
      %v4905 = vunpack.c.l.b16 %v4761
      %v4906 = vunpack.c.l.b16 %v4775
      %v4907 = vunpack.c.l.b16 %v4785
      %v4908 = vunpack.c.l.b16 %v4799
      %v4909 = vunpack.c.l.b16 %v4809
      %v4910 = vunpack.c.l.b16 %v4823
      %v4911 = vunpack.c.l.b16 %v4833
      %v4912 = vunpack.c.l.b16 %v4847
      %v4913 = vunpack.c.l.b16 %v4857
      %v4914 = vunpack.c.l.b16 %v4871
      %v4915 = vunpack.c.l.b16 %v4881
      %v4916 = vpack.c.b16 %v4885, %v4884
      %v4917 = vpack.c.b16 %v4887, %v4886
      %v4918 = vpack.c.b16 %v4889, %v4888
      %v4919 = vpack.c.b16 %v4891, %v4890
      %v4920 = vpack.c.b16 %v4893, %v4892
      %v4921 = vpack.c.b16 %v4895, %v4894
      %v4922 = vpack.c.b16 %v4897, %v4896
      %v4923 = vpack.c.b16 %v4899, %v4898
      %v4924 = vpack.c.b16 %v4901, %v4900
      %v4925 = vpack.c.b16 %v4903, %v4902
      %v4926 = vpack.c.b16 %v4905, %v4904
      %v4927 = vpack.c.b16 %v4907, %v4906
      %v4928 = vpack.c.b16 %v4909, %v4908
      %v4929 = vpack.c.b16 %v4911, %v4910
      %v4930 = vpack.c.b16 %v4913, %v4912
      %v4931 = vpack.c.b16 %v4915, %v4914
      %v4933 = vsel %vm1574, %v4916, 0
      %v4936 = vsel %vm1574, %v4917, 0
      %v4939 = vsel %vm1574, %v4918, 0
      %v4942 = vsel %vm1574, %v4919, 0
      %v4945 = vsel %vm1574, %v4920, 0
      %v4948 = vsel %vm1574, %v4921, 0
      %v4951 = vsel %vm1574, %v4922, 0
      %v4954 = vsel %vm1574, %v4923, 0
      %v4957 = vsel %vm1574, %v4924, 0
      %v4960 = vsel %vm1574, %v4925, 0
      %v4963 = vsel %vm1574, %v4926, 0
      %v4966 = vsel %vm1574, %v4927, 0
      %v4969 = vsel %vm1574, %v4928, 0
      %v4972 = vsel %vm1574, %v4929, 0
      %v4975 = vsel %vm1574, %v4930, 0
      %v4978 = vsel %vm1574, %v4931, 0
      %v4981 = vsel %vm1623, %v4883, 0
      %4983 = vmatprep.subr.bf16.mxu0 0
      %4984 = vmatpush1.bf16.msra.mxu0 %v4981
      %4985 = vmatprep.subr.bf16.mxu0 0
      %4986 = vmatpush1.bf16.msra.mxu0 0
      %4987 = vmatprep.subr.bf16.mxu0 0
      %4988 = vmatpush1.bf16.msra.mxu0 0
      %4989 = vmatprep.subr.bf16.mxu0 0
      %4990 = vmatpush1.bf16.msra.mxu0 0
      %4991 = vmatprep.subr.bf16.mxu0 0
      %4992 = vmatpush1.bf16.msra.mxu0 0
      %4993 = vmatprep.subr.bf16.mxu0 0
      %4994 = vmatpush1.bf16.msra.mxu0 0
      %4995 = vmatprep.subr.bf16.mxu0 0
      %4996 = vmatpush1.bf16.msra.mxu0 0
      %4997 = vmatprep.subr.bf16.mxu0 0
      %4998 = vmatpush1.bf16.msra.mxu0 0
      %4999 = vmatprep.subr.bf16.mxu0 0
      %5000 = vmatpush1.bf16.msra.mxu0 0
      %5001 = vmatprep.subr.bf16.mxu0 0
      %5002 = vmatpush1.bf16.msra.mxu0 0
      %5003 = vmatprep.subr.bf16.mxu0 0
      %5004 = vmatpush1.bf16.msra.mxu0 0
      %5005 = vmatprep.subr.bf16.mxu0 0
      %5006 = vmatpush1.bf16.msra.mxu0 0
      %5007 = vmatprep.subr.bf16.mxu0 0
      %5008 = vmatpush1.bf16.msra.mxu0 0
      %5009 = vmatprep.subr.bf16.mxu0 0
      %5010 = vmatpush1.bf16.msra.mxu0 0
      %5011 = vmatprep.subr.bf16.mxu0 0
      %5012 = vmatpush1.bf16.msra.mxu0 0
      %5013 = vmatprep.subr.bf16.mxu0 0
      %5014 = vmatpush1.bf16.msra.mxu0 0
      %5015 = vmatprep.mubr.bf16.mxu0 0
      %5016 = vmatmul.mubr.bf16.gmra.mrb[0].mxu0 %v4933
      %v5017 = vpop.f32.mrb[0].mxu0
      %v5018 = vadd.f32 0.0, %v5017
      %v5019 = vpop.f32.mrb[0].mxu0
      %v5020 = vpop.f32.mrb[0].mxu0
      %v5021 = vadd.f32 0.0, %v5020
      %v5022 = vpop.f32.mrb[0].mxu0
      %5023 = vmatprep.mubr.bf16.mxu0 0
      %5024 = vmatmul.mubr.bf16.gmra.mrb[0].mxu0 %v4936
      %v5025 = vpop.f32.mrb[0].mxu0
      %v5026 = vadd.f32 0.0, %v5025
      %v5027 = vpop.f32.mrb[0].mxu0
      %v5028 = vpop.f32.mrb[0].mxu0
      %v5029 = vadd.f32 0.0, %v5028
      %v5030 = vpop.f32.mrb[0].mxu0
      %5031 = vmatprep.mubr.bf16.mxu0 0
      %5032 = vmatmul.mubr.bf16.gmra.mrb[0].mxu0 %v4939
      %v5033 = vpop.f32.mrb[0].mxu0
      %v5034 = vadd.f32 0.0, %v5033
      %v5035 = vpop.f32.mrb[0].mxu0
      %v5036 = vpop.f32.mrb[0].mxu0
      %v5037 = vadd.f32 0.0, %v5036
      %v5038 = vpop.f32.mrb[0].mxu0
      %5039 = vmatprep.mubr.bf16.mxu0 0
      %5040 = vmatmul.mubr.bf16.gmra.mrb[0].mxu0 %v4942
      %v5041 = vpop.f32.mrb[0].mxu0
      %v5042 = vadd.f32 0.0, %v5041
      %v5043 = vpop.f32.mrb[0].mxu0
      %v5044 = vpop.f32.mrb[0].mxu0
      %v5045 = vadd.f32 0.0, %v5044
      %v5046 = vpop.f32.mrb[0].mxu0
      %5047 = vmatprep.mubr.bf16.mxu0 0
      %5048 = vmatmul.mubr.bf16.gmra.mrb[0].mxu0 %v4945
      %v5049 = vpop.f32.mrb[0].mxu0
      %v5050 = vadd.f32 0.0, %v5049
      %v5051 = vpop.f32.mrb[0].mxu0
      %v5052 = vpop.f32.mrb[0].mxu0
      %v5053 = vadd.f32 0.0, %v5052
      %v5054 = vpop.f32.mrb[0].mxu0
      %5055 = vmatprep.mubr.bf16.mxu0 0
      %5056 = vmatmul.mubr.bf16.gmra.mrb[0].mxu0 %v4948
      %v5057 = vpop.f32.mrb[0].mxu0
      %v5058 = vadd.f32 0.0, %v5057
      %v5059 = vpop.f32.mrb[0].mxu0
      %v5060 = vpop.f32.mrb[0].mxu0
      %v5061 = vadd.f32 0.0, %v5060
      %v5062 = vpop.f32.mrb[0].mxu0
      %5063 = vmatprep.mubr.bf16.mxu0 0
      %5064 = vmatmul.mubr.bf16.gmra.mrb[0].mxu0 %v4951
      %v5065 = vpop.f32.mrb[0].mxu0
      %v5066 = vadd.f32 0.0, %v5065
      %v5067 = vpop.f32.mrb[0].mxu0
      %v5068 = vpop.f32.mrb[0].mxu0
      %v5069 = vadd.f32 0.0, %v5068
      %v5070 = vpop.f32.mrb[0].mxu0
      %5071 = vmatprep.mubr.bf16.mxu0 0
      %5072 = vmatmul.mubr.bf16.gmra.mrb[0].mxu0 %v4954
      %v5073 = vpop.f32.mrb[0].mxu0
      %v5074 = vadd.f32 0.0, %v5073
      %v5075 = vpop.f32.mrb[0].mxu0
      %v5076 = vpop.f32.mrb[0].mxu0
      %v5077 = vadd.f32 0.0, %v5076
      %v5078 = vpop.f32.mrb[0].mxu0
      %5079 = vmatprep.mubr.bf16.mxu0 0
      %5080 = vmatmul.mubr.bf16.gmra.mrb[0].mxu0 %v4957
      %v5081 = vpop.f32.mrb[0].mxu0
      %v5082 = vadd.f32 0.0, %v5081
      %v5083 = vpop.f32.mrb[0].mxu0
      %v5084 = vpop.f32.mrb[0].mxu0
      %v5085 = vadd.f32 0.0, %v5084
      %v5086 = vpop.f32.mrb[0].mxu0
      %5087 = vmatprep.mubr.bf16.mxu0 0
      %5088 = vmatmul.mubr.bf16.gmra.mrb[0].mxu0 %v4960
      %v5089 = vpop.f32.mrb[0].mxu0
      %v5090 = vadd.f32 0.0, %v5089
      %v5091 = vpop.f32.mrb[0].mxu0
      %v5092 = vpop.f32.mrb[0].mxu0
      %v5093 = vadd.f32 0.0, %v5092
      %v5094 = vpop.f32.mrb[0].mxu0
      %5095 = vmatprep.mubr.bf16.mxu0 0
      %5096 = vmatmul.mubr.bf16.gmra.mrb[0].mxu0 %v4963
      %v5097 = vpop.f32.mrb[0].mxu0
      %v5098 = vadd.f32 0.0, %v5097
      %v5099 = vpop.f32.mrb[0].mxu0
      %v5100 = vpop.f32.mrb[0].mxu0
      %v5101 = vadd.f32 0.0, %v5100
      %v5102 = vpop.f32.mrb[0].mxu0
      %5103 = vmatprep.mubr.bf16.mxu0 0
      %5104 = vmatmul.mubr.bf16.gmra.mrb[0].mxu0 %v4966
      %v5105 = vpop.f32.mrb[0].mxu0
      %v5106 = vadd.f32 0.0, %v5105
      %v5107 = vpop.f32.mrb[0].mxu0
      %v5108 = vpop.f32.mrb[0].mxu0
      %v5109 = vadd.f32 0.0, %v5108
      %v5110 = vpop.f32.mrb[0].mxu0
      %5111 = vmatprep.mubr.bf16.mxu0 0
      %5112 = vmatmul.mubr.bf16.gmra.mrb[0].mxu0 %v4969
      %v5113 = vpop.f32.mrb[0].mxu0
      %v5114 = vadd.f32 0.0, %v5113
      %v5115 = vpop.f32.mrb[0].mxu0
      %v5116 = vpop.f32.mrb[0].mxu0
      %v5117 = vadd.f32 0.0, %v5116
      %v5118 = vpop.f32.mrb[0].mxu0
      %5119 = vmatprep.mubr.bf16.mxu0 0
      %5120 = vmatmul.mubr.bf16.gmra.mrb[0].mxu0 %v4972
      %v5121 = vpop.f32.mrb[0].mxu0
      %v5122 = vadd.f32 0.0, %v5121
      %v5123 = vpop.f32.mrb[0].mxu0
      %v5124 = vpop.f32.mrb[0].mxu0
      %v5125 = vadd.f32 0.0, %v5124
      %v5126 = vpop.f32.mrb[0].mxu0
      %5127 = vmatprep.mubr.bf16.mxu0 0
      %5128 = vmatmul.mubr.bf16.gmra.mrb[0].mxu0 %v4975
      %v5129 = vpop.f32.mrb[0].mxu0
      %v5130 = vadd.f32 0.0, %v5129
      %v5131 = vpop.f32.mrb[0].mxu0
      %v5132 = vpop.f32.mrb[0].mxu0
      %v5133 = vadd.f32 0.0, %v5132
      %v5134 = vpop.f32.mrb[0].mxu0
      %5135 = vmatprep.mubr.bf16.mxu0 0
      %5136 = vmatmul.mubr.bf16.gmra.mrb[0].mxu0 %v4978
      %v5137 = vpop.f32.mrb[0].mxu0
      %v5138 = vadd.f32 0.0, %v5137
      %v5139 = vpop.f32.mrb[0].mxu0
      %v5140 = vpop.f32.mrb[0].mxu0
      %v5141 = vadd.f32 0.0, %v5140
      %v5142 = vpop.f32.mrb[0].mxu0
      %5143 = vdwg.mxu0
      %v5144 = vadd.f32 %v4418, %v5018
      %v5145 = vadd.f32 %v4419, %v5021
      %v5146 = vadd.f32 %v4420, %v5026
      %v5147 = vadd.f32 %v4421, %v5029
      %v5148 = vadd.f32 %v4422, %v5034
      %v5149 = vadd.f32 %v4423, %v5037
      %v5150 = vadd.f32 %v4424, %v5042
      %v5151 = vadd.f32 %v4425, %v5045
      %v5152 = vadd.f32 %v4426, %v5050
      %v5153 = vadd.f32 %v4427, %v5053
      %v5154 = vadd.f32 %v4428, %v5058
      %v5155 = vadd.f32 %v4429, %v5061
      %v5156 = vadd.f32 %v4430, %v5066
      %v5157 = vadd.f32 %v4431, %v5069
      %v5158 = vadd.f32 %v4432, %v5074
      %v5159 = vadd.f32 %v4433, %v5077
      %v5160 = vadd.f32 %v4434, %v5082
      %v5161 = vadd.f32 %v4435, %v5085
      %v5162 = vadd.f32 %v4436, %v5090
      %v5163 = vadd.f32 %v4437, %v5093
      %v5164 = vadd.f32 %v4438, %v5098
      %v5165 = vadd.f32 %v4439, %v5101
      %v5166 = vadd.f32 %v4440, %v5106
      %v5167 = vadd.f32 %v4441, %v5109
      %v5168 = vadd.f32 %v4442, %v5114
      %v5169 = vadd.f32 %v4443, %v5117
      %v5170 = vadd.f32 %v4444, %v5122
      %v5171 = vadd.f32 %v4445, %v5125
      %v5172 = vadd.f32 %v4446, %v5130
      %v5173 = vadd.f32 %v4447, %v5133
      %v5174 = vadd.f32 %v4448, %v5138
      %v5175 = vadd.f32 %v4449, %v5141
      %v5176 = vld [vmem:[%s4091] sm:$0xe]
      %v5177 = vld [vmem:[%s4091 + $0xc] sm:$0xe]
      %v5178 = vld [vmem:[%s4091 + $0x18] sm:$0xe]
      %v5179 = vld [vmem:[%s4091 + $0x24] sm:$0xe]
      %v5180 = vld [vmem:[%s4091 + $0x30] sm:$0xe]
      %v5181 = vld [vmem:[%s4091 + $0x3c] sm:$0xe]
      %v5182 = vld [vmem:[%s4091 + $0x48] sm:$0xe]
      %v5183 = vld [vmem:[%s4091 + $0x54] sm:$0xe]
      %v5184 = vld [vmem:[%s4091 + $0x60] sm:$0xe]
      %v5185 = vld [vmem:[%s4091 + $0x6c] sm:$0xe]
      %v5186 = vld [vmem:[%s4091 + $0x78] sm:$0xe]
      %v5187 = vld [vmem:[%s4091 + $0x84] sm:$0xe]
      %v5188 = vld [vmem:[%s4091 + $0x90] sm:$0xe]
      %v5189 = vld [vmem:[%s4091 + $0x9c] sm:$0xe]
      %v5190 = vld [vmem:[%s4091 + $0xa8] sm:$0xe]
      %v5191 = vld [vmem:[%s4091 + $0xb4] sm:$0xe]
      %v5240 = vrot.slane %v5176, 5
      %v5241 = vrot.slane %v5240, 4
      %v5242 = vrot.slane %v4451, 5
      %v5243 = vsel %vm2130, %v5241, %v5242
      %v5244 = vrot.slane %v5242, 4
      %v5245 = vrot.slane %v4452, 5
      %v5246 = vsel %vm2130, %v5244, %v5245
      %v5247 = vrot.slane %v5177, 5
      %v5248 = vrot.slane %v5247, 4
      %v5249 = vrot.slane %v4454, 5
      %v5250 = vsel %vm2130, %v5248, %v5249
      %v5251 = vrot.slane %v5249, 4
      %v5252 = vrot.slane %v4455, 5
      %v5253 = vsel %vm2130, %v5251, %v5252
      %v5254 = vrot.slane %v5178, 5
      %v5255 = vrot.slane %v5254, 4
      %v5256 = vrot.slane %v4457, 5
      %v5257 = vsel %vm2130, %v5255, %v5256
      %v5258 = vrot.slane %v5256, 4
      %v5259 = vrot.slane %v4458, 5
      %v5260 = vsel %vm2130, %v5258, %v5259
      %v5261 = vrot.slane %v5179, 5
      %v5262 = vrot.slane %v5261, 4
      %v5263 = vrot.slane %v4460, 5
      %v5264 = vsel %vm2130, %v5262, %v5263
      %v5265 = vrot.slane %v5263, 4
      %v5266 = vrot.slane %v4461, 5
      %v5267 = vsel %vm2130, %v5265, %v5266
      %v5268 = vrot.slane %v5180, 5
      %v5269 = vrot.slane %v5268, 4
      %v5270 = vrot.slane %v4463, 5
      %v5271 = vsel %vm2130, %v5269, %v5270
      %v5272 = vrot.slane %v5270, 4
      %v5273 = vrot.slane %v4464, 5
      %v5274 = vsel %vm2130, %v5272, %v5273
      %v5275 = vrot.slane %v5181, 5
      %v5276 = vrot.slane %v5275, 4
      %v5277 = vrot.slane %v4466, 5
      %v5278 = vsel %vm2130, %v5276, %v5277
      %v5279 = vrot.slane %v5277, 4
      %v5280 = vrot.slane %v4467, 5
      %v5281 = vsel %vm2130, %v5279, %v5280
      %v5282 = vrot.slane %v5182, 5
      %v5283 = vrot.slane %v5282, 4
      %v5284 = vrot.slane %v4469, 5
      %v5285 = vsel %vm2130, %v5283, %v5284
      %v5286 = vrot.slane %v5284, 4
      %v5287 = vrot.slane %v4470, 5
      %v5288 = vsel %vm2130, %v5286, %v5287
      %v5289 = vrot.slane %v5183, 5
      %v5290 = vrot.slane %v5289, 4
      %v5291 = vrot.slane %v4472, 5
      %v5292 = vsel %vm2130, %v5290, %v5291
      %v5293 = vrot.slane %v5291, 4
      %v5294 = vrot.slane %v4473, 5
      %v5295 = vsel %vm2130, %v5293, %v5294
      %v5296 = vrot.slane %v5184, 5
      %v5297 = vrot.slane %v5296, 4
      %v5298 = vrot.slane %v4475, 5
      %v5299 = vsel %vm2130, %v5297, %v5298
      %v5300 = vrot.slane %v5298, 4
      %v5301 = vrot.slane %v4476, 5
      %v5302 = vsel %vm2130, %v5300, %v5301
      %v5303 = vrot.slane %v5185, 5
      %v5304 = vrot.slane %v5303, 4
      %v5305 = vrot.slane %v4478, 5
      %v5306 = vsel %vm2130, %v5304, %v5305
      %v5307 = vrot.slane %v5305, 4
      %v5308 = vrot.slane %v4479, 5
      %v5309 = vsel %vm2130, %v5307, %v5308
      %v5310 = vrot.slane %v5186, 5
      %v5311 = vrot.slane %v5310, 4
      %v5312 = vrot.slane %v4481, 5
      %v5313 = vsel %vm2130, %v5311, %v5312
      %v5314 = vrot.slane %v5312, 4
      %v5315 = vrot.slane %v4482, 5
      %v5316 = vsel %vm2130, %v5314, %v5315
      %v5317 = vrot.slane %v5187, 5
      %v5318 = vrot.slane %v5317, 4
      %v5319 = vrot.slane %v4484, 5
      %v5320 = vsel %vm2130, %v5318, %v5319
      %v5321 = vrot.slane %v5319, 4
      %v5322 = vrot.slane %v4485, 5
      %v5323 = vsel %vm2130, %v5321, %v5322
      %v5324 = vrot.slane %v5188, 5
      %v5325 = vrot.slane %v5324, 4
      %v5326 = vrot.slane %v4487, 5
      %v5327 = vsel %vm2130, %v5325, %v5326
      %v5328 = vrot.slane %v5326, 4
      %v5329 = vrot.slane %v4488, 5
      %v5330 = vsel %vm2130, %v5328, %v5329
      %v5331 = vrot.slane %v5189, 5
      %v5332 = vrot.slane %v5331, 4
      %v5333 = vrot.slane %v4490, 5
      %v5334 = vsel %vm2130, %v5332, %v5333
      %v5335 = vrot.slane %v5333, 4
      %v5336 = vrot.slane %v4491, 5
      %v5337 = vsel %vm2130, %v5335, %v5336
      %v5338 = vrot.slane %v5190, 5
      %v5339 = vrot.slane %v5338, 4
      %v5340 = vrot.slane %v4493, 5
      %v5341 = vsel %vm2130, %v5339, %v5340
      %v5342 = vrot.slane %v5340, 4
      %v5343 = vrot.slane %v4494, 5
      %v5344 = vsel %vm2130, %v5342, %v5343
      %v5345 = vrot.slane %v5191, 5
      %v5346 = vrot.slane %v5345, 4
      %v5347 = vrot.slane %v4496, 5
      %v5348 = vsel %vm2130, %v5346, %v5347
      %v5349 = vrot.slane %v5347, 4
      %v5350 = vrot.slane %v4497, 5
      %v5351 = vsel %vm2130, %v5349, %v5350
      %s5352 = scalar_lea.vmem %s3, 16
      %v5353 = vld [vmem:[%s5352] sm:$0x3]
      %v5354 = vunpack.c.l.b16 %v5243
      %v5355 = vunpack.c.l.b16 %v5246
      %v5356 = vunpack.c.l.b16 %v5250
      %v5357 = vunpack.c.l.b16 %v5253
      %v5358 = vunpack.c.l.b16 %v5257
      %v5359 = vunpack.c.l.b16 %v5260
      %v5360 = vunpack.c.l.b16 %v5264
      %v5361 = vunpack.c.l.b16 %v5267
      %v5362 = vunpack.c.l.b16 %v5271
      %v5363 = vunpack.c.l.b16 %v5274
      %v5364 = vunpack.c.l.b16 %v5278
      %v5365 = vunpack.c.l.b16 %v5281
      %v5366 = vunpack.c.l.b16 %v5285
      %v5367 = vunpack.c.l.b16 %v5288
      %v5368 = vunpack.c.l.b16 %v5292
      %v5369 = vunpack.c.l.b16 %v5295
      %v5370 = vunpack.c.l.b16 %v5299
      %v5371 = vunpack.c.l.b16 %v5302
      %v5372 = vunpack.c.l.b16 %v5306
      %v5373 = vunpack.c.l.b16 %v5309
      %v5374 = vunpack.c.l.b16 %v5313
      %v5375 = vunpack.c.l.b16 %v5316
      %v5376 = vunpack.c.l.b16 %v5320
      %v5377 = vunpack.c.l.b16 %v5323
      %v5378 = vunpack.c.l.b16 %v5327
      %v5379 = vunpack.c.l.b16 %v5330
      %v5380 = vunpack.c.l.b16 %v5334
      %v5381 = vunpack.c.l.b16 %v5337
      %v5382 = vunpack.c.l.b16 %v5341
      %v5383 = vunpack.c.l.b16 %v5344
      %v5384 = vunpack.c.l.b16 %v5348
      %v5385 = vunpack.c.l.b16 %v5351
      %v5386 = vpack.c.b16 %v5355, %v5354
      %v5387 = vpack.c.b16 %v5357, %v5356
      %v5388 = vpack.c.b16 %v5359, %v5358
      %v5389 = vpack.c.b16 %v5361, %v5360
      %v5390 = vpack.c.b16 %v5363, %v5362
      %v5391 = vpack.c.b16 %v5365, %v5364
      %v5392 = vpack.c.b16 %v5367, %v5366
      %v5393 = vpack.c.b16 %v5369, %v5368
      %v5394 = vpack.c.b16 %v5371, %v5370
      %v5395 = vpack.c.b16 %v5373, %v5372
      %v5396 = vpack.c.b16 %v5375, %v5374
      %v5397 = vpack.c.b16 %v5377, %v5376
      %v5398 = vpack.c.b16 %v5379, %v5378
      %v5399 = vpack.c.b16 %v5381, %v5380
      %v5400 = vpack.c.b16 %v5383, %v5382
      %v5401 = vpack.c.b16 %v5385, %v5384
      %v5403 = vsel %vm1574, %v5386, 0
      %v5406 = vsel %vm1574, %v5387, 0
      %v5409 = vsel %vm1574, %v5388, 0
      %v5412 = vsel %vm1574, %v5389, 0
      %v5415 = vsel %vm1574, %v5390, 0
      %v5418 = vsel %vm1574, %v5391, 0
      %v5421 = vsel %vm1574, %v5392, 0
      %v5424 = vsel %vm1574, %v5393, 0
      %v5427 = vsel %vm1574, %v5394, 0
      %v5430 = vsel %vm1574, %v5395, 0
      %v5433 = vsel %vm1574, %v5396, 0
      %v5436 = vsel %vm1574, %v5397, 0
      %v5439 = vsel %vm1574, %v5398, 0
      %v5442 = vsel %vm1574, %v5399, 0
      %v5445 = vsel %vm1574, %v5400, 0
      %v5448 = vsel %vm1574, %v5401, 0
      %v5451 = vsel %vm1623, %v5353, 0
      %5453 = vmatprep.subr.bf16.mxu0 0
      %5454 = vmatpush1.bf16.msra.mxu0 %v5451
      %5455 = vmatprep.subr.bf16.mxu0 0
      %5456 = vmatpush1.bf16.msra.mxu0 0
      %5457 = vmatprep.subr.bf16.mxu0 0
      %5458 = vmatpush1.bf16.msra.mxu0 0
      %5459 = vmatprep.subr.bf16.mxu0 0
      %5460 = vmatpush1.bf16.msra.mxu0 0
      %5461 = vmatprep.subr.bf16.mxu0 0
      %5462 = vmatpush1.bf16.msra.mxu0 0
      %5463 = vmatprep.subr.bf16.mxu0 0
      %5464 = vmatpush1.bf16.msra.mxu0 0
      %5465 = vmatprep.subr.bf16.mxu0 0
      %5466 = vmatpush1.bf16.msra.mxu0 0
      %5467 = vmatprep.subr.bf16.mxu0 0
      %5468 = vmatpush1.bf16.msra.mxu0 0
      %5469 = vmatprep.subr.bf16.mxu0 0
      %5470 = vmatpush1.bf16.msra.mxu0 0
      %5471 = vmatprep.subr.bf16.mxu0 0
      %5472 = vmatpush1.bf16.msra.mxu0 0
      %5473 = vmatprep.subr.bf16.mxu0 0
      %5474 = vmatpush1.bf16.msra.mxu0 0
      %5475 = vmatprep.subr.bf16.mxu0 0
      %5476 = vmatpush1.bf16.msra.mxu0 0
      %5477 = vmatprep.subr.bf16.mxu0 0
      %5478 = vmatpush1.bf16.msra.mxu0 0
      %5479 = vmatprep.subr.bf16.mxu0 0
      %5480 = vmatpush1.bf16.msra.mxu0 0
      %5481 = vmatprep.subr.bf16.mxu0 0
      %5482 = vmatpush1.bf16.msra.mxu0 0
      %5483 = vmatprep.subr.bf16.mxu0 0
      %5484 = vmatpush1.bf16.msra.mxu0 0
      %5485 = vmatprep.mubr.bf16.mxu0 0
      %5486 = vmatmul.mubr.bf16.gmra.mrb[0].mxu0 %v5403
      %v5487 = vpop.f32.mrb[0].mxu0
      %v5488 = vadd.f32 0.0, %v5487
      %v5489 = vpop.f32.mrb[0].mxu0
      %v5490 = vpop.f32.mrb[0].mxu0
      %v5491 = vadd.f32 0.0, %v5490
      %v5492 = vpop.f32.mrb[0].mxu0
      %5493 = vmatprep.mubr.bf16.mxu0 0
      %5494 = vmatmul.mubr.bf16.gmra.mrb[0].mxu0 %v5406
      %v5495 = vpop.f32.mrb[0].mxu0
      %v5496 = vadd.f32 0.0, %v5495
      %v5497 = vpop.f32.mrb[0].mxu0
      %v5498 = vpop.f32.mrb[0].mxu0
      %v5499 = vadd.f32 0.0, %v5498
      %v5500 = vpop.f32.mrb[0].mxu0
      %5501 = vmatprep.mubr.bf16.mxu0 0
      %5502 = vmatmul.mubr.bf16.gmra.mrb[0].mxu0 %v5409
      %v5503 = vpop.f32.mrb[0].mxu0
      %v5504 = vadd.f32 0.0, %v5503
      %v5505 = vpop.f32.mrb[0].mxu0
      %v5506 = vpop.f32.mrb[0].mxu0
      %v5507 = vadd.f32 0.0, %v5506
      %v5508 = vpop.f32.mrb[0].mxu0
      %5509 = vmatprep.mubr.bf16.mxu0 0
      %5510 = vmatmul.mubr.bf16.gmra.mrb[0].mxu0 %v5412
      %v5511 = vpop.f32.mrb[0].mxu0
      %v5512 = vadd.f32 0.0, %v5511
      %v5513 = vpop.f32.mrb[0].mxu0
      %v5514 = vpop.f32.mrb[0].mxu0
      %v5515 = vadd.f32 0.0, %v5514
      %v5516 = vpop.f32.mrb[0].mxu0
      %5517 = vmatprep.mubr.bf16.mxu0 0
      %5518 = vmatmul.mubr.bf16.gmra.mrb[0].mxu0 %v5415
      %v5519 = vpop.f32.mrb[0].mxu0
      %v5520 = vadd.f32 0.0, %v5519
      %v5521 = vpop.f32.mrb[0].mxu0
      %v5522 = vpop.f32.mrb[0].mxu0
      %v5523 = vadd.f32 0.0, %v5522
      %v5524 = vpop.f32.mrb[0].mxu0
      %5525 = vmatprep.mubr.bf16.mxu0 0
      %5526 = vmatmul.mubr.bf16.gmra.mrb[0].mxu0 %v5418
      %v5527 = vpop.f32.mrb[0].mxu0
      %v5528 = vadd.f32 0.0, %v5527
      %v5529 = vpop.f32.mrb[0].mxu0
      %v5530 = vpop.f32.mrb[0].mxu0
      %v5531 = vadd.f32 0.0, %v5530
      %v5532 = vpop.f32.mrb[0].mxu0
      %5533 = vmatprep.mubr.bf16.mxu0 0
      %5534 = vmatmul.mubr.bf16.gmra.mrb[0].mxu0 %v5421
      %v5535 = vpop.f32.mrb[0].mxu0
      %v5536 = vadd.f32 0.0, %v5535
      %v5537 = vpop.f32.mrb[0].mxu0
      %v5538 = vpop.f32.mrb[0].mxu0
      %v5539 = vadd.f32 0.0, %v5538
      %v5540 = vpop.f32.mrb[0].mxu0
      %5541 = vmatprep.mubr.bf16.mxu0 0
      %5542 = vmatmul.mubr.bf16.gmra.mrb[0].mxu0 %v5424
      %v5543 = vpop.f32.mrb[0].mxu0
      %v5544 = vadd.f32 0.0, %v5543
      %v5545 = vpop.f32.mrb[0].mxu0
      %v5546 = vpop.f32.mrb[0].mxu0
      %v5547 = vadd.f32 0.0, %v5546
      %v5548 = vpop.f32.mrb[0].mxu0
      %5549 = vmatprep.mubr.bf16.mxu0 0
      %5550 = vmatmul.mubr.bf16.gmra.mrb[0].mxu0 %v5427
      %v5551 = vpop.f32.mrb[0].mxu0
      %v5552 = vadd.f32 0.0, %v5551
      %v5553 = vpop.f32.mrb[0].mxu0
      %v5554 = vpop.f32.mrb[0].mxu0
      %v5555 = vadd.f32 0.0, %v5554
      %v5556 = vpop.f32.mrb[0].mxu0
      %5557 = vmatprep.mubr.bf16.mxu0 0
      %5558 = vmatmul.mubr.bf16.gmra.mrb[0].mxu0 %v5430
      %v5559 = vpop.f32.mrb[0].mxu0
      %v5560 = vadd.f32 0.0, %v5559
      %v5561 = vpop.f32.mrb[0].mxu0
      %v5562 = vpop.f32.mrb[0].mxu0
      %v5563 = vadd.f32 0.0, %v5562
      %v5564 = vpop.f32.mrb[0].mxu0
      %5565 = vmatprep.mubr.bf16.mxu0 0
      %5566 = vmatmul.mubr.bf16.gmra.mrb[0].mxu0 %v5433
      %v5567 = vpop.f32.mrb[0].mxu0
      %v5568 = vadd.f32 0.0, %v5567
      %v5569 = vpop.f32.mrb[0].mxu0
      %v5570 = vpop.f32.mrb[0].mxu0
      %v5571 = vadd.f32 0.0, %v5570
      %v5572 = vpop.f32.mrb[0].mxu0
      %5573 = vmatprep.mubr.bf16.mxu0 0
      %5574 = vmatmul.mubr.bf16.gmra.mrb[0].mxu0 %v5436
      %v5575 = vpop.f32.mrb[0].mxu0
      %v5576 = vadd.f32 0.0, %v5575
      %v5577 = vpop.f32.mrb[0].mxu0
      %v5578 = vpop.f32.mrb[0].mxu0
      %v5579 = vadd.f32 0.0, %v5578
      %v5580 = vpop.f32.mrb[0].mxu0
      %5581 = vmatprep.mubr.bf16.mxu0 0
      %5582 = vmatmul.mubr.bf16.gmra.mrb[0].mxu0 %v5439
      %v5583 = vpop.f32.mrb[0].mxu0
      %v5584 = vadd.f32 0.0, %v5583
      %v5585 = vpop.f32.mrb[0].mxu0
      %v5586 = vpop.f32.mrb[0].mxu0
      %v5587 = vadd.f32 0.0, %v5586
      %v5588 = vpop.f32.mrb[0].mxu0
      %5589 = vmatprep.mubr.bf16.mxu0 0
      %5590 = vmatmul.mubr.bf16.gmra.mrb[0].mxu0 %v5442
      %v5591 = vpop.f32.mrb[0].mxu0
      %v5592 = vadd.f32 0.0, %v5591
      %v5593 = vpop.f32.mrb[0].mxu0
      %v5594 = vpop.f32.mrb[0].mxu0
      %v5595 = vadd.f32 0.0, %v5594
      %v5596 = vpop.f32.mrb[0].mxu0
      %5597 = vmatprep.mubr.bf16.mxu0 0
      %5598 = vmatmul.mubr.bf16.gmra.mrb[0].mxu0 %v5445
      %v5599 = vpop.f32.mrb[0].mxu0
      %v5600 = vadd.f32 0.0, %v5599
      %v5601 = vpop.f32.mrb[0].mxu0
      %v5602 = vpop.f32.mrb[0].mxu0
      %v5603 = vadd.f32 0.0, %v5602
      %v5604 = vpop.f32.mrb[0].mxu0
      %5605 = vmatprep.mubr.bf16.mxu0 0
      %5606 = vmatmul.mubr.bf16.gmra.mrb[0].mxu0 %v5448
      %v5607 = vpop.f32.mrb[0].mxu0
      %v5608 = vadd.f32 0.0, %v5607
      %v5609 = vpop.f32.mrb[0].mxu0
      %v5610 = vpop.f32.mrb[0].mxu0
      %v5611 = vadd.f32 0.0, %v5610
      %v5612 = vpop.f32.mrb[0].mxu0
      %5613 = vdwg.mxu0
      %v5614 = vadd.f32 %v5144, %v5488
      %v5615 = vadd.f32 %v5145, %v5491
      %v5616 = vadd.f32 %v5146, %v5496
      %v5617 = vadd.f32 %v5147, %v5499
      %v5618 = vadd.f32 %v5148, %v5504
      %v5619 = vadd.f32 %v5149, %v5507
      %v5620 = vadd.f32 %v5150, %v5512
      %v5621 = vadd.f32 %v5151, %v5515
      %v5622 = vadd.f32 %v5152, %v5520
      %v5623 = vadd.f32 %v5153, %v5523
      %v5624 = vadd.f32 %v5154, %v5528
      %v5625 = vadd.f32 %v5155, %v5531
      %v5626 = vadd.f32 %v5156, %v5536
      %v5627 = vadd.f32 %v5157, %v5539
      %v5628 = vadd.f32 %v5158, %v5544
      %v5629 = vadd.f32 %v5159, %v5547
      %v5630 = vadd.f32 %v5160, %v5552
      %v5631 = vadd.f32 %v5161, %v5555
      %v5632 = vadd.f32 %v5162, %v5560
      %v5633 = vadd.f32 %v5163, %v5563
      %v5634 = vadd.f32 %v5164, %v5568
      %v5635 = vadd.f32 %v5165, %v5571
      %v5636 = vadd.f32 %v5166, %v5576
      %v5637 = vadd.f32 %v5167, %v5579
      %v5638 = vadd.f32 %v5168, %v5584
      %v5639 = vadd.f32 %v5169, %v5587
      %v5640 = vadd.f32 %v5170, %v5592
      %v5641 = vadd.f32 %v5171, %v5595
      %v5642 = vadd.f32 %v5172, %v5600
      %v5643 = vadd.f32 %v5173, %v5603
      %v5644 = vadd.f32 %v5174, %v5608
      %v5645 = vadd.f32 %v5175, %v5611
      %v5646 = vld [vmem:[%s4] sm:$0x1]
      %v5648 = vlaneseq
      %v5649 = vshrl.u32 %v5648, 7
      %v5650 = vsub.s32 0, %v5649
      %v5651 = vrot.slane %v5646, %v5650
      %v5653 = vadd.f32 %v5614, %v5651
      %v5654 = vadd.f32 %v5615, %v5651
      %v5655 = vadd.f32 %v5616, %v5651
      %v5656 = vadd.f32 %v5617, %v5651
      %v5657 = vadd.f32 %v5618, %v5651
      %v5658 = vadd.f32 %v5619, %v5651
      %v5659 = vadd.f32 %v5620, %v5651
      %v5660 = vadd.f32 %v5621, %v5651
      %v5661 = vadd.f32 %v5622, %v5651
      %v5662 = vadd.f32 %v5623, %v5651
      %v5663 = vadd.f32 %v5624, %v5651
      %v5664 = vadd.f32 %v5625, %v5651
      %v5665 = vadd.f32 %v5626, %v5651
      %v5666 = vadd.f32 %v5627, %v5651
      %v5667 = vadd.f32 %v5628, %v5651
      %v5668 = vadd.f32 %v5629, %v5651
      %v5669 = vadd.f32 %v5630, %v5651
      %v5670 = vadd.f32 %v5631, %v5651
      %v5671 = vadd.f32 %v5632, %v5651
      %v5672 = vadd.f32 %v5633, %v5651
      %v5673 = vadd.f32 %v5634, %v5651
      %v5674 = vadd.f32 %v5635, %v5651
      %v5675 = vadd.f32 %v5636, %v5651
      %v5676 = vadd.f32 %v5637, %v5651
      %v5677 = vadd.f32 %v5638, %v5651
      %v5678 = vadd.f32 %v5639, %v5651
      %v5679 = vadd.f32 %v5640, %v5651
      %v5680 = vadd.f32 %v5641, %v5651
      %v5681 = vadd.f32 %v5642, %v5651
      %v5682 = vadd.f32 %v5643, %v5651
      %v5683 = vadd.f32 %v5644, %v5651
      %v5684 = vadd.f32 %v5645, %v5651
      %v5685 = vmax.f32 %v5653, 0.0
      %v5686 = vmax.f32 %v5654, 0.0
      %v5687 = vmax.f32 %v5655, 0.0
      %v5688 = vmax.f32 %v5656, 0.0
      %v5689 = vmax.f32 %v5657, 0.0
      %v5690 = vmax.f32 %v5658, 0.0
      %v5691 = vmax.f32 %v5659, 0.0
      %v5692 = vmax.f32 %v5660, 0.0
      %v5693 = vmax.f32 %v5661, 0.0
      %v5694 = vmax.f32 %v5662, 0.0
      %v5695 = vmax.f32 %v5663, 0.0
      %v5696 = vmax.f32 %v5664, 0.0
      %v5697 = vmax.f32 %v5665, 0.0
      %v5698 = vmax.f32 %v5666, 0.0
      %v5699 = vmax.f32 %v5667, 0.0
      %v5700 = vmax.f32 %v5668, 0.0
      %v5701 = vmax.f32 %v5669, 0.0
      %v5702 = vmax.f32 %v5670, 0.0
      %v5703 = vmax.f32 %v5671, 0.0
      %v5704 = vmax.f32 %v5672, 0.0
      %v5705 = vmax.f32 %v5673, 0.0
      %v5706 = vmax.f32 %v5674, 0.0
      %v5707 = vmax.f32 %v5675, 0.0
      %v5708 = vmax.f32 %v5676, 0.0
      %v5709 = vmax.f32 %v5677, 0.0
      %v5710 = vmax.f32 %v5678, 0.0
      %v5711 = vmax.f32 %v5679, 0.0
      %v5712 = vmax.f32 %v5680, 0.0
      %v5713 = vmax.f32 %v5681, 0.0
      %v5714 = vmax.f32 %v5682, 0.0
      %v5715 = vmax.f32 %v5683, 0.0
      %v5716 = vmax.f32 %v5684, 0.0
      %5749 = vrot.lane.b32.xlu0 %v5685, 4
      %v5750 = vpop.permute.xlu0 %5749
      %5751 = vrot.lane.b32.xlu0 %v5686, 4
      %v5752 = vpop.permute.xlu0 %5751
      %5753 = vrot.lane.b32.xlu0 %v5687, 4
      %v5754 = vpop.permute.xlu0 %5753
      %5755 = vrot.lane.b32.xlu0 %v5688, 4
      %v5756 = vpop.permute.xlu0 %5755
      %5757 = vrot.lane.b32.xlu0 %v5689, 4
      %v5758 = vpop.permute.xlu0 %5757
      %5759 = vrot.lane.b32.xlu0 %v5690, 4
      %v5760 = vpop.permute.xlu0 %5759
      %5761 = vrot.lane.b32.xlu0 %v5691, 4
      %v5762 = vpop.permute.xlu0 %5761
      %5763 = vrot.lane.b32.xlu0 %v5692, 4
      %v5764 = vpop.permute.xlu0 %5763
      %5765 = vrot.lane.b32.xlu0 %v5693, 4
      %v5766 = vpop.permute.xlu0 %5765
      %5767 = vrot.lane.b32.xlu0 %v5694, 4
      %v5768 = vpop.permute.xlu0 %5767
      %5769 = vrot.lane.b32.xlu0 %v5695, 4
      %v5770 = vpop.permute.xlu0 %5769
      %5771 = vrot.lane.b32.xlu0 %v5696, 4
      %v5772 = vpop.permute.xlu0 %5771
      %5773 = vrot.lane.b32.xlu0 %v5697, 4
      %v5774 = vpop.permute.xlu0 %5773
      %5775 = vrot.lane.b32.xlu0 %v5698, 4
      %v5776 = vpop.permute.xlu0 %5775
      %5777 = vrot.lane.b32.xlu0 %v5699, 4
      %v5778 = vpop.permute.xlu0 %5777
      %5779 = vrot.lane.b32.xlu0 %v5700, 4
      %v5780 = vpop.permute.xlu0 %5779
      %5781 = vrot.lane.b32.xlu0 %v5701, 4
      %v5782 = vpop.permute.xlu0 %5781
      %5783 = vrot.lane.b32.xlu0 %v5702, 4
      %v5784 = vpop.permute.xlu0 %5783
      %5785 = vrot.lane.b32.xlu0 %v5703, 4
      %v5786 = vpop.permute.xlu0 %5785
      %5787 = vrot.lane.b32.xlu0 %v5704, 4
      %v5788 = vpop.permute.xlu0 %5787
      %5789 = vrot.lane.b32.xlu0 %v5705, 4
      %v5790 = vpop.permute.xlu0 %5789
      %5791 = vrot.lane.b32.xlu0 %v5706, 4
      %v5792 = vpop.permute.xlu0 %5791
      %5793 = vrot.lane.b32.xlu0 %v5707, 4
      %v5794 = vpop.permute.xlu0 %5793
      %5795 = vrot.lane.b32.xlu0 %v5708, 4
      %v5796 = vpop.permute.xlu0 %5795
      %5797 = vrot.lane.b32.xlu0 %v5709, 4
      %v5798 = vpop.permute.xlu0 %5797
      %5799 = vrot.lane.b32.xlu0 %v5710, 4
      %v5800 = vpop.permute.xlu0 %5799
      %5801 = vrot.lane.b32.xlu0 %v5711, 4
      %v5802 = vpop.permute.xlu0 %5801
      %5803 = vrot.lane.b32.xlu0 %v5712, 4
      %v5804 = vpop.permute.xlu0 %5803
      %5805 = vrot.lane.b32.xlu0 %v5713, 4
      %v5806 = vpop.permute.xlu0 %5805
      %5807 = vrot.lane.b32.xlu0 %v5714, 4
      %v5808 = vpop.permute.xlu0 %5807
      %5809 = vrot.lane.b32.xlu0 %v5715, 4
      %v5810 = vpop.permute.xlu0 %5809
      %5811 = vrot.lane.b32.xlu0 %v5716, 4
      %v5812 = vpop.permute.xlu0 %5811
      %v5845 = vsel %vm1574, %v338, %v5750
      %v5846 = vsel %vm1574, %v339, %v5752
      %v5847 = vsel %vm1574, %v340, %v5754
      %v5848 = vsel %vm1574, %v341, %v5756
      %v5849 = vsel %vm1574, %v342, %v5758
      %v5850 = vsel %vm1574, %v343, %v5760
      %v5851 = vsel %vm1574, %v344, %v5762
      %v5852 = vsel %vm1574, %v345, %v5764
      %v5853 = vsel %vm1574, %v346, %v5766
      %v5854 = vsel %vm1574, %v347, %v5768
      %v5855 = vsel %vm1574, %v348, %v5770
      %v5856 = vsel %vm1574, %v349, %v5772
      %v5857 = vsel %vm1574, %v350, %v5774
      %v5858 = vsel %vm1574, %v351, %v5776
      %v5859 = vsel %vm1574, %v352, %v5778
      %v5860 = vsel %vm1574, %v353, %v5780
      %v5861 = vsel %vm1574, %v354, %v5782
      %v5862 = vsel %vm1574, %v355, %v5784
      %v5863 = vsel %vm1574, %v356, %v5786
      %v5864 = vsel %vm1574, %v357, %v5788
      %v5865 = vsel %vm1574, %v358, %v5790
      %v5866 = vsel %vm1574, %v359, %v5792
      %v5867 = vsel %vm1574, %v360, %v5794
      %v5868 = vsel %vm1574, %v361, %v5796
      %v5869 = vsel %vm1574, %v362, %v5798
      %v5870 = vsel %vm1574, %v363, %v5800
      %v5871 = vsel %vm1574, %v364, %v5802
      %v5872 = vsel %vm1574, %v365, %v5804
      %v5873 = vsel %vm1574, %v366, %v5806
      %v5874 = vsel %vm1574, %v367, %v5808
      %v5875 = vsel %vm1574, %v368, %v5810
      %v5876 = vsel %vm1574, %v369, %v5812
      %vm5877 = vcmask 97280
      %5878 = vst.msk [vmem:[%s335] sm:$0xff] %vm5877, %v5845
      %5879 = vst.msk [vmem:[%s335 + $0x8] sm:$0xff] %vm5877, %v5846
      %5880 = vst.msk [vmem:[%s335 + $0x10] sm:$0xff] %vm5877, %v5847
      %5881 = vst.msk [vmem:[%s335 + $0x18] sm:$0xff] %vm5877, %v5848
      %5882 = vst.msk [vmem:[%s335 + $0x20] sm:$0xff] %vm5877, %v5849
      %5883 = vst.msk [vmem:[%s335 + $0x28] sm:$0xff] %vm5877, %v5850
      %5884 = vst.msk [vmem:[%s335 + $0x30] sm:$0xff] %vm5877, %v5851
      %5885 = vst.msk [vmem:[%s335 + $0x38] sm:$0xff] %vm5877, %v5852
      %5886 = vst.msk [vmem:[%s335 + $0x40] sm:$0xff] %vm5877, %v5853
      %5887 = vst.msk [vmem:[%s335 + $0x48] sm:$0xff] %vm5877, %v5854
      %5888 = vst.msk [vmem:[%s335 + $0x50] sm:$0xff] %vm5877, %v5855
      %5889 = vst.msk [vmem:[%s335 + $0x58] sm:$0xff] %vm5877, %v5856
      %5890 = vst.msk [vmem:[%s335 + $0x60] sm:$0xff] %vm5877, %v5857
      %5891 = vst.msk [vmem:[%s335 + $0x68] sm:$0xff] %vm5877, %v5858
      %5892 = vst.msk [vmem:[%s335 + $0x70] sm:$0xff] %vm5877, %v5859
      %5893 = vst.msk [vmem:[%s335 + $0x78] sm:$0xff] %vm5877, %v5860
      %5894 = vst.msk [vmem:[%s335 + $0x80] sm:$0xff] %vm5877, %v5861
      %5895 = vst.msk [vmem:[%s335 + $0x88] sm:$0xff] %vm5877, %v5862
      %5896 = vst.msk [vmem:[%s335 + $0x90] sm:$0xff] %vm5877, %v5863
      %5897 = vst.msk [vmem:[%s335 + $0x98] sm:$0xff] %vm5877, %v5864
      %5898 = vst.msk [vmem:[%s335 + $0xa0] sm:$0xff] %vm5877, %v5865
      %5899 = vst.msk [vmem:[%s335 + $0xa8] sm:$0xff] %vm5877, %v5866
      %5900 = vst.msk [vmem:[%s335 + $0xb0] sm:$0xff] %vm5877, %v5867
      %5901 = vst.msk [vmem:[%s335 + $0xb8] sm:$0xff] %vm5877, %v5868
      %5902 = vst.msk [vmem:[%s335 + $0xc0] sm:$0xff] %vm5877, %v5869
      %5903 = vst.msk [vmem:[%s335 + $0xc8] sm:$0xff] %vm5877, %v5870
      %5904 = vst.msk [vmem:[%s335 + $0xd0] sm:$0xff] %vm5877, %v5871
      %5905 = vst.msk [vmem:[%s335 + $0xd8] sm:$0xff] %vm5877, %v5872
      %5906 = vst.msk [vmem:[%s335 + $0xe0] sm:$0xff] %vm5877, %v5873
      %5907 = vst.msk [vmem:[%s335 + $0xe8] sm:$0xff] %vm5877, %v5874
      %5908 = vst.msk [vmem:[%s335 + $0xf0] sm:$0xff] %vm5877, %v5875
      %5909 = vst.msk [vmem:[%s335 + $0xf8] sm:$0xff] %vm5877, %v5876
      %s5910 = smul.u32 16, %s21
      %p5911 = scmp.lt.s32.totalorder %s20, 1
      %s5912 = scalar_select %p5911, %s20, 1
      %p5913 = scmp.lt.s32.totalorder %s5910, 15
      %s5914 = scalar_select %p5913, %s5910, 15
      %s5915 = smul.addr %s5914, 2
      %s5916 = smul.addr %s5912, 32
      %s5917 = sadd.s32 %s5915, %s5916
      %s5918 = smul.addr %s5917, 8
      %s5919 = scalar_lea.vmem %s5, %s5918
      // Predicated region
      $region41: #{tpu_custom_call.1} parent=39 // pred_check
        %p5920 = pneg %p174
      $region42: #{tpu_custom_call.1} parent=39 // pred_check_branch
        %5922 = sbr.rel (%p5920) target = $region44
      $region43: #{tpu_custom_call.1} parent=39 // pred_region
        %s5923 = smul.u32 16, %s21
      $region44: #{tpu_custom_call.1} parent=39 // pred_fallthru
        _
    $region40: #{tpu_custom_call.1} parent=5 // pred_fallthru
      _
    %p5924 = scmp.le.s32.totalorder 2, %s11
    // Predicated region
    $region45: #{tpu_custom_call.1} parent=5 // pred_check
      %p5925 = pneg %p5924
    $region46: #{tpu_custom_call.1} parent=5 // pred_check_branch
      %5927 = sbr.rel (%p5925) target = $region48
    $region47: #{tpu_custom_call.1} parent=5 // pred_region
      %s5928 = ssub.s32 %s11, 2
      // Predicated region
      $region49: #{tpu_custom_call.1} parent=47 // pred_check
        %p5929 = pneg %p180
      $region50: #{tpu_custom_call.1} parent=47 // pred_check_branch
        %5931 = sbr.rel (%p5929) target = $region52
      $region51: #{tpu_custom_call.1} parent=47 // pred_region
        %s5932 = smul.u32 16, %s23
        %p5933 = scmp.lt.s32.totalorder %s22, 1
        %s5934 = scalar_select %p5933, %s22, 1
        %p5935 = scmp.lt.s32.totalorder %s5932, 15
        %s5936 = scalar_select %p5935, %s5932, 15
        %s5937 = smul.addr %s5936, 2
        %s5938 = smul.addr %s5934, 32
        %s5939 = sadd.s32 %s5937, %s5938
        %s5940 = smul.addr %s5939, 8
        %s5941 = scalar_lea.vmem %s5, %s5940
      $region52: #{tpu_custom_call.1} parent=47 // pred_fallthru
        _
    $region48: #{tpu_custom_call.1} parent=5 // pred_fallthru
      _
  $region6: #{tpu_custom_call.1} parent=0 // loop_footer
    %s15 = sadd.s32 1, %s11
  $region7: #{tpu_custom_call.1} parent=0 // loop_footer_branch
    %10 = sbr.rel target = $region3
  $region8: #{tpu_custom_call.1} parent=0 // loop_exit
    _

</llo_original>
